<compile_context>
chip_gen: v7x
topology: tpu7x:2x2x1
jax: 0.10.0
libtpu: 0.0.40
codegen_flags: <defaults>
</compile_context>

<pallas_src>
import functools
import math

import jax
import jax.numpy as jnp
from jax import lax
from jax.experimental import pallas as pl
from jax.experimental.pallas import tpu as pltpu

# ----------------------------- configuration -----------------------------
PAD_ID      = 0
LEN_MAX_SEQ = 32
N_SRC_VOCAB = 50
D_MODEL     = 64
D_INNER     = 128
N_HEAD      = 2
N_LAYERS    = 2
LN_EPS      = 1e-5                      # torch.nn.LayerNorm default
MASK_BIAS   = -1e9                      # additive bias for padded keys
D_HEAD      = D_MODEL // N_HEAD
SCORE_SCALE = 1.0 / math.sqrt(D_HEAD)   # folded into wq / bq at pack time

VEC_ROWS  = 8                           # packed bias / LayerNorm slab: (L, 8, 128) f32
VEC_LANES = 128
assert 2 * D_MODEL <= VEC_LANES and D_INNER <= VEC_LANES


# ----------------------------- shared math -----------------------------
def _layer_norm(x, gamma, beta):
    mu = jnp.mean(x, axis=-1, keepdims=True)
    var = jnp.mean((x - mu) ** 2, axis=-1, keepdims=True)
    return (x - mu) * lax.rsqrt(var + LN_EPS) * gamma + beta


# ----------------------------- Pallas kernel -----------------------------
def encoder_kernel(b_blk, seq_len,
                   x_ref, npm_ref, kmask_ref,
                   wqkv_ref, wo_ref, w1_ref, w2_ref, vec_ref,
                   out_ref, ctx_sc):
    """All N_LAYERS FFT blocks fused; one batch-block (merged into M rows) per grid step."""
    f32, bf16 = jnp.float32, jnp.bfloat16
    T = seq_len

    x   = x_ref[...]                                   # (M, D)   f32, M = b_blk*T
    npm = npm_ref[...]                                 # (M, 1)   non-pad row mask
    # per-batch additive key-pad bias, (1, T) each (static Python list)
    kbias = [(1.0 - kmask_ref[b]) * MASK_BIAS for b in range(b_blk)]

    for l in range(N_LAYERS):                          # static loop: both layers in one kernel
        w_qkv = wqkv_ref[l]                            # (D, 3D)       bf16 (Q cols pre-scaled)
        w_o   = wo_ref[l]                              # (D, D)        bf16
        w_1   = w1_ref[l]                              # (D, D_INNER)  bf16
        w_2   = w2_ref[l]                              # (D_INNER, D)  bf16
        vec   = vec_ref[l]                             # (8, 128)      f32 biases / LN params

        # ---- fused QKV projection over the whole batch block ----
        qkv = jnp.dot(x.astype(bf16), w_qkv, preferred_element_type=f32)        # (M, 3D)
        q = (qkv[:, 0 * D_MODEL:1 * D_MODEL] + vec[0:1, 0:D_MODEL]).astype(bf16)
        k = (qkv[:, 1 * D_MODEL:2 * D_MODEL] + vec[0:1, D_MODEL:2 * D_MODEL]).astype(bf16)
        v = (qkv[:, 2 * D_MODEL:3 * D_MODEL] + vec[1:2, 0:D_MODEL]).astype(bf16)

        # ---- multi-head self-attention (static per-(batch, head) 2-D loop) ----
        for b in range(b_blk):
            r0 = b * T
            for h in range(N_HEAD):
                c0 = h * D_HEAD
                qh = q[r0:r0 + T, c0:c0 + D_HEAD]
                kh = k[r0:r0 + T, c0:c0 + D_HEAD]
                vh = v[r0:r0 + T, c0:c0 + D_HEAD]
                scores = lax.dot_general(qh, kh, (((1,), (1,)), ((), ())),
                                         preferred_element_type=f32) + kbias[b]   # (T, T)
                m = jnp.max(scores, axis=-1, keepdims=True)
                e = jnp.exp(scores - m)
                probs = e * pl.reciprocal(jnp.sum(e, axis=-1, keepdims=True), approx=True)
                ctx = jnp.dot(probs.astype(bf16), vh, preferred_element_type=f32)  # (T, Dh)
                ctx_sc[pl.ds(r0, T), pl.ds(c0, D_HEAD)] = ctx

        # one output projection for the whole batch block
        attn = jnp.dot(ctx_sc[...].astype(bf16), w_o, preferred_element_type=f32) \
               + vec[1:2, D_MODEL:2 * D_MODEL]

        y = _layer_norm(x + attn, vec[4:5, 0:D_MODEL], vec[4:5, D_MODEL:2 * D_MODEL])
        y = y * npm                                                              # *= non_pad_mask

        # ---- position-wise feed-forward ----
        h1 = jnp.dot(y.astype(bf16), w_1, preferred_element_type=f32) + vec[2:3, 0:D_INNER]
        h1 = jnp.maximum(h1, 0.0)
        ff = jnp.dot(h1.astype(bf16), w_2, preferred_element_type=f32) + vec[3:4, 0:D_MODEL]
        z = _layer_norm(y + ff, vec[5:6, 0:D_MODEL], vec[5:6, D_MODEL:2 * D_MODEL])
        x = z * npm                                                              # *= non_pad_mask

    out_ref[...] = x


def _choose_batch_block(batch, seq_len, max_rows=4096):
    """Fewest, fattest grid steps: largest divisor of batch with b_blk*T rows within budget."""
    best = 1
    for d in range(1, batch + 1):
        if batch % d == 0 and d * seq_len <= max_rows:
            best = d
    return best


def encoder_forward(x2d, npm2d, kmask3d, wqkv, wo, w1, w2, vec, *, batch, seq_len, b_blk):
    """Single pallas_call covering all layers; grid iterates over batch blocks."""
    M = b_blk * seq_len
    kernel = functools.partial(encoder_kernel, b_blk, seq_len)
    in_specs = [
        pl.BlockSpec((M, D_MODEL), lambda i: (i, 0)),            # merged activations
        pl.BlockSpec((M, 1), lambda i: (i, 0)),                  # non-pad row mask (column form)
        pl.BlockSpec((b_blk, 1, seq_len), lambda i: (i, 0, 0)),  # key mask (row form per batch)
        pl.BlockSpec(wqkv.shape, lambda i: (0, 0, 0)),           # weights: constant index_map
        pl.BlockSpec(wo.shape,   lambda i: (0, 0, 0)),
        pl.BlockSpec(w1.shape,   lambda i: (0, 0, 0)),
        pl.BlockSpec(w2.shape,   lambda i: (0, 0, 0)),
        pl.BlockSpec(vec.shape,  lambda i: (0, 0, 0)),
    ]
    return pl.pallas_call(
        kernel,
        out_shape=jax.ShapeDtypeStruct((batch * seq_len, D_MODEL), jnp.float32),
        grid_spec=pltpu.PrefetchScalarGridSpec(
            num_scalar_prefetch=0,
            grid=(batch // b_blk,),
            in_specs=in_specs,
            out_specs=pl.BlockSpec((M, D_MODEL), lambda i: (i, 0)),
            scratch_shapes=[pltpu.VMEM((M, D_MODEL), jnp.float32)],   # per-head ctx staging
        ),
        compiler_params=pltpu.CompilerParams(dimension_semantics=("parallel",)),
    )(x2d, npm2d, kmask3d, wqkv, wo, w1, w2, vec)


# ----------------------------- parameter packing (host side, once) -----------------------------
def pack_params(layer_params):
    """Pack per-layer params into few MXU/DMA-friendly slabs, stacked over layers (bf16 weights).

    SCORE_SCALE is folded into the Q columns / bias.  Call again if layer_params change.
    """
    wqkv_l, wo_l, w1_l, w2_l, vec_l = [], [], [], [], []
    for p in layer_params:
        (wq, bq, wk, bk, wv, bv, wo, bo, ln1g, ln1b, w1, b1, w2, b2, ln2g, ln2b) = p
        wqkv_l.append(jnp.concatenate([wq * SCORE_SCALE, wk, wv], axis=1).astype(jnp.bfloat16))
        wo_l.append(wo.astype(jnp.bfloat16))
        w1_l.append(w1.astype(jnp.bfloat16))
        w2_l.append(w2.astype(jnp.bfloat16))
        vec = jnp.zeros((VEC_ROWS, VEC_LANES), jnp.float32)
        vec = vec.at[0, 0:D_MODEL].set(bq[0] * SCORE_SCALE).at[0, D_MODEL:2 * D_MODEL].set(bk[0])
        vec = vec.at[1, 0:D_MODEL].set(bv[0]).at[1, D_MODEL:2 * D_MODEL].set(bo[0])
        vec = vec.at[2, 0:D_INNER].set(b1[0])
        vec = vec.at[3, 0:D_MODEL].set(b2[0])
        vec = vec.at[4, 0:D_MODEL].set(ln1g[0]).at[4, D_MODEL:2 * D_MODEL].set(ln1b[0])
        vec = vec.at[5, 0:D_MODEL].set(ln2g[0]).at[5, D_MODEL:2 * D_MODEL].set(ln2b[0])
        vec_l.append(vec)
    return (jnp.stack(wqkv_l), jnp.stack(wo_l), jnp.stack(w1_l),
            jnp.stack(w2_l), jnp.stack(vec_l))


# ----------------------------- glue (plain JAX) -----------------------------
def sinusoid_table(n_position, d_hid):
    pos = jnp.arange(n_position, dtype=jnp.float32)[:, None]          # (P, 1)
    i = jnp.arange(d_hid)                                             # (D,)
    angle = pos / jnp.power(10000.0, (2 * (i // 2)).astype(jnp.float32) / d_hid)
    table = jnp.where(i % 2 == 0, jnp.sin(angle), jnp.cos(angle))
    table = table.at[0].set(0.0)                                      # padding_idx = 0
    return table.astype(jnp.float32)


def init_layer_params(key):
    """Deterministic synthetic init; order is the PyTorch-style per-layer list."""
    ks = jax.random.split(key, 10)
    w = lambda k, s: (0.05 * jax.random.normal(k, s)).astype(jnp.float32)
    wq, wk, wv, wo = (w(ks[i], (D_MODEL, D_MODEL)) for i in range(4))
    bq, bk, bv, bo = (w(ks[4 + i], (1, D_MODEL)) for i in range(4))
    w1 = w(ks[8], (D_MODEL, D_INNER))
    b1 = jnp.zeros((1, D_INNER), jnp.float32)
    w2 = w(ks[9], (D_INNER, D_MODEL))
    b2 = jnp.zeros((1, D_MODEL), jnp.float32)
    ln1g = jnp.ones((1, D_MODEL), jnp.float32)
    ln1b = jnp.zeros((1, D_MODEL), jnp.float32)
    ln2g = jnp.ones((1, D_MODEL), jnp.float32)
    ln2b = jnp.zeros((1, D_MODEL), jnp.float32)
    return [wq, bq, wk, bk, wv, bv, wo, bo, ln1g, ln1b, w1, b1, w2, b2, ln2g, ln2b]


@jax.jit
def fastspeech_encoder(src_seq, src_pos, word_emb, pos_table, wqkv, wo, w1, w2, vec):
    B, T = src_seq.shape
    non_pad = (src_seq != PAD_ID).astype(jnp.float32)                 # (B, T)
    npm = non_pad[:, :, None]                                         # (B, T, 1)
    # TODO(synk): embedding gathers (word + positional lookup) stay in plain JAX glue.
    x = (word_emb[src_seq] + pos_table[src_pos]).astype(jnp.float32)  # (B, T, D)
    b_blk = _choose_batch_block(B, T)                                 # demo: full batch, grid=(1,)
    out2d = encoder_forward(
        x.reshape(B * T, D_MODEL),            # merged (B*T, D) slab (layout-free leading merge)
        non_pad.reshape(B * T, 1),            # non-pad row mask in column form
        non_pad[:, None, :],                  # key mask in row form (B, 1, T)
        wqkv, wo, w1, w2, vec,
        batch=B, seq_len=T, b_blk=b_blk)
    return out2d.reshape(B, T, D_MODEL), npm


# ----------------------------- pure-JAX reference -----------------------------
def reference_encoder(src_seq, src_pos, word_emb, pos_table, layer_params):
    """Reference with the same bf16-matmul / f32-accumulation numerics as the kernel."""
    bf16, f32 = jnp.bfloat16, jnp.float32
    B, T = src_seq.shape
    kbias = jnp.where(src_seq == PAD_ID, MASK_BIAS, 0.0).astype(f32)[:, None, None, :]
    npm = (src_seq != PAD_ID).astype(f32)[:, :, None]
    x = (word_emb[src_seq] + pos_table[src_pos]).astype(f32)
    for p in layer_params:
        (wq, bq, wk, bk, wv, bv, wo, bo, ln1g, ln1b, w1, b1, w2, b2, ln2g, ln2b) = p
        q = jnp.dot(x.astype(bf16), wq.astype(bf16), preferred_element_type=f32) + bq
        k = jnp.dot(x.astype(bf16), wk.astype(bf16), preferred_element_type=f32) + bk
        v = jnp.dot(x.astype(bf16), wv.astype(bf16), preferred_element_type=f32) + bv
        qh = q.reshape(B, T, N_HEAD, D_HEAD).transpose(0, 2, 1, 3).astype(bf16)
        kh = k.reshape(B, T, N_HEAD, D_HEAD).transpose(0, 2, 1, 3).astype(bf16)
        vh = v.reshape(B, T, N_HEAD, D_HEAD).transpose(0, 2, 1, 3).astype(bf16)
        scores = jnp.einsum('bhtd,bhsd->bhts', qh, kh,
                            preferred_element_type=f32) * SCORE_SCALE + kbias
        probs = jax.nn.softmax(scores, axis=-1)
        ctx = jnp.einsum('bhts,bhsd->bhtd', probs.astype(bf16), vh, preferred_element_type=f32)
        ctx = ctx.transpose(0, 2, 1, 3).reshape(B, T, D_MODEL)
        attn = jnp.dot(ctx.astype(bf16), wo.astype(bf16), preferred_element_type=f32) + bo
        y = _layer_norm(x + attn, ln1g, ln1b) * npm
        h1 = jax.nn.relu(jnp.dot(y.astype(bf16), w1.astype(bf16), preferred_element_type=f32) + b1)
        ff = jnp.dot(h1.astype(bf16), w2.astype(bf16), preferred_element_type=f32) + b2
        x = _layer_norm(y + ff, ln2g, ln2b) * npm
    return x, npm


# ----------------------------------- main -----------------------------------
if __name__ == "__main__":
    B, T = 2, 16

    key = jax.random.PRNGKey(0)
    k_emb, k_seq, *k_layers = jax.random.split(key, 2 + N_LAYERS)

    # parameters
    word_emb = (0.1 * jax.random.normal(k_emb, (N_SRC_VOCAB, D_MODEL))).astype(jnp.float32)
    word_emb = word_emb.at[PAD_ID].set(0.0)                  # nn.Embedding padding_idx
    pos_table = sinusoid_table(LEN_MAX_SEQ + 1, D_MODEL)     # frozen sinusoid embedding
    layer_params = [init_layer_params(k) for k in k_layers]
    # Weight packing hoisted out of the jitted forward path: done exactly once here.
    wqkv, wo, w1, w2, vec = pack_params(layer_params)

    # inputs: token ids with trailing padding, positions 1..len (0 at pads)
    lengths = jnp.array([16, 11], dtype=jnp.int32)
    src_seq = jax.random.randint(k_seq, (B, T), 1, N_SRC_VOCAB, dtype=jnp.int32)
    pos = jnp.arange(1, T + 1, dtype=jnp.int32)[None, :]
    valid = pos <= lengths[:, None]
    src_seq = jnp.where(valid, src_seq, PAD_ID)
    src_pos = jnp.where(valid, pos, 0)

    enc_output, non_pad_mask = fastspeech_encoder(src_seq, src_pos, word_emb, pos_table,
                                                  wqkv, wo, w1, w2, vec)
    jax.block_until_ready(enc_output)
    jax.block_until_ready(non_pad_mask)

    ref_out, ref_npm = reference_encoder(src_seq, src_pos, word_emb, pos_table, layer_params)
    ref_out = jax.block_until_ready(ref_out)

    assert enc_output.shape == (B, T, D_MODEL)
    assert non_pad_mask.shape == (B, T, 1)
    assert bool(jnp.all(jnp.isfinite(enc_output)))
    max_err = float(jnp.max(jnp.abs(enc_output - ref_out)))
    assert max_err < 5e-2, f"kernel/reference mismatch: max abs err = {max_err}"
    assert bool(jnp.all(non_pad_mask == ref_npm))
    print("KERNEL_OK")
</pallas_src>

<mosaic_0001>
module attributes {stable_mosaic.version = 11 : i64} {
  func.func @encoder_kernel(%arg0: i32, %arg1: memref<32x64xf32, #tpu.memory_space<vmem>>, %arg2: memref<32x1xf32, #tpu.memory_space<vmem>>, %arg3: memref<2x1x16xf32, #tpu.memory_space<vmem>>, %arg4: memref<2x64x192xbf16, #tpu.memory_space<vmem>>, %arg5: memref<2x64x64xbf16, #tpu.memory_space<vmem>>, %arg6: memref<2x64x128xbf16, #tpu.memory_space<vmem>>, %arg7: memref<2x128x64xbf16, #tpu.memory_space<vmem>>, %arg8: memref<2x8x128xf32, #tpu.memory_space<vmem>>, %arg9: memref<32x64xf32, #tpu.memory_space<vmem>>, %arg10: memref<32x64xf32, #tpu.memory_space<vmem>>) attributes {dimension_semantics = [#tpu.dimension_semantics<parallel>], iteration_bounds = array<i64: 1>, scalar_prefetch = 0 : i64, scratch_operands = 1 : i64, tpu.core_type = #tpu.core_type<tc>, window_params = [{transform_indices = @transform_0, window_bounds = array<i64: 32, 64>}, {transform_indices = @transform_1, window_bounds = array<i64: 32, 1>}, {transform_indices = @transform_2, window_bounds = array<i64: 2, 1, 16>}, {pipeline_mode = #tpu.pipeline_mode<synchronous>, transform_indices = @transform_3, window_bounds = array<i64: 2, 64, 192>}, {pipeline_mode = #tpu.pipeline_mode<synchronous>, transform_indices = @transform_4, window_bounds = array<i64: 2, 64, 64>}, {pipeline_mode = #tpu.pipeline_mode<synchronous>, transform_indices = @transform_5, window_bounds = array<i64: 2, 64, 128>}, {pipeline_mode = #tpu.pipeline_mode<synchronous>, transform_indices = @transform_6, window_bounds = array<i64: 2, 128, 64>}, {pipeline_mode = #tpu.pipeline_mode<synchronous>, transform_indices = @transform_7, window_bounds = array<i64: 2, 8, 128>}, {transform_indices = @transform_8, window_bounds = array<i64: 32, 64>}]} {
    %c0 = arith.constant 0 : index
    %c0_0 = arith.constant 0 : index
    %0 = vector.load %arg1[%c0, %c0_0] : memref<32x64xf32, #tpu.memory_space<vmem>>, vector<32x64xf32>
    %c0_1 = arith.constant 0 : index
    %c0_2 = arith.constant 0 : index
    %1 = vector.load %arg2[%c0_1, %c0_2] : memref<32x1xf32, #tpu.memory_space<vmem>>, vector<32x1xf32>
    %c0_3 = arith.constant 0 : index
    %c0_4 = arith.constant 0 : index
    %c0_5 = arith.constant 0 : index
    %2 = vector.load %arg3[%c0_3, %c0_4, %c0_5] : memref<2x1x16xf32, #tpu.memory_space<vmem>>, vector<1x1x16xf32>
    %3 = vector.shape_cast %2 : vector<1x1x16xf32> to vector<1x16xf32>
    %cst = arith.constant 1.000000e+00 : f32
    %4 = vector.broadcast %cst : f32 to vector<1x16xf32>
    %5 = arith.subf %4, %3 : vector<1x16xf32>
    %cst_6 = arith.constant -1.000000e+09 : f32
    %6 = vector.broadcast %cst_6 : f32 to vector<1x16xf32>
    %7 = arith.mulf %5, %6 : vector<1x16xf32>
    %c1 = arith.constant 1 : index
    %c0_7 = arith.constant 0 : index
    %c0_8 = arith.constant 0 : index
    %8 = vector.load %arg3[%c1, %c0_7, %c0_8] : memref<2x1x16xf32, #tpu.memory_space<vmem>>, vector<1x1x16xf32>
    %9 = vector.shape_cast %8 : vector<1x1x16xf32> to vector<1x16xf32>
    %cst_9 = arith.constant 1.000000e+00 : f32
    %10 = vector.broadcast %cst_9 : f32 to vector<1x16xf32>
    %11 = arith.subf %10, %9 : vector<1x16xf32>
    %cst_10 = arith.constant -1.000000e+09 : f32
    %12 = vector.broadcast %cst_10 : f32 to vector<1x16xf32>
    %13 = arith.mulf %11, %12 : vector<1x16xf32>
    %c0_11 = arith.constant 0 : index
    %c0_12 = arith.constant 0 : index
    %c0_13 = arith.constant 0 : index
    %14 = vector.load %arg4[%c0_11, %c0_12, %c0_13] : memref<2x64x192xbf16, #tpu.memory_space<vmem>>, vector<1x64x192xbf16>
    %15 = vector.shape_cast %14 : vector<1x64x192xbf16> to vector<64x192xbf16>
    %c0_14 = arith.constant 0 : index
    %c0_15 = arith.constant 0 : index
    %c0_16 = arith.constant 0 : index
    %16 = vector.load %arg5[%c0_14, %c0_15, %c0_16] : memref<2x64x64xbf16, #tpu.memory_space<vmem>>, vector<1x64x64xbf16>
    %17 = vector.shape_cast %16 : vector<1x64x64xbf16> to vector<64x64xbf16>
    %c0_17 = arith.constant 0 : index
    %c0_18 = arith.constant 0 : index
    %c0_19 = arith.constant 0 : index
    %18 = vector.load %arg6[%c0_17, %c0_18, %c0_19] : memref<2x64x128xbf16, #tpu.memory_space<vmem>>, vector<1x64x128xbf16>
    %19 = vector.shape_cast %18 : vector<1x64x128xbf16> to vector<64x128xbf16>
    %c0_20 = arith.constant 0 : index
    %c0_21 = arith.constant 0 : index
    %c0_22 = arith.constant 0 : index
    %20 = vector.load %arg7[%c0_20, %c0_21, %c0_22] : memref<2x128x64xbf16, #tpu.memory_space<vmem>>, vector<1x128x64xbf16>
    %21 = vector.shape_cast %20 : vector<1x128x64xbf16> to vector<128x64xbf16>
    %c0_23 = arith.constant 0 : index
    %c0_24 = arith.constant 0 : index
    %c0_25 = arith.constant 0 : index
    %22 = vector.load %arg8[%c0_23, %c0_24, %c0_25] : memref<2x8x128xf32, #tpu.memory_space<vmem>>, vector<1x8x128xf32>
    %23 = vector.shape_cast %22 : vector<1x8x128xf32> to vector<8x128xf32>
    %24 = arith.truncf %0 : vector<32x64xf32> to vector<32x64xbf16>
    %cst_26 = arith.constant dense<0.000000e+00> : vector<32x192xf32>
    %25 = tpu.matmul %24, %15, %cst_26 {dimension_numbers = #tpu.dot_dimension_numbers<[1], [0], [0], [1], [0, 0, 1, 1], [], []>} : vector<32x64xbf16>, vector<64x192xbf16>, vector<32x192xf32> -> vector<32x192xf32>
    %26 = vector.extract_strided_slice %25 {offsets = [0, 0], sizes = [32, 64], strides = [1, 1]} : vector<32x192xf32> to vector<32x64xf32>
    %27 = vector.extract_strided_slice %23 {offsets = [0, 0], sizes = [1, 64], strides = [1, 1]} : vector<8x128xf32> to vector<1x64xf32>
    %28 = vector.broadcast %27 : vector<1x64xf32> to vector<32x64xf32>
    %29 = arith.addf %26, %28 : vector<32x64xf32>
    %30 = arith.truncf %29 : vector<32x64xf32> to vector<32x64xbf16>
    %31 = vector.extract_strided_slice %25 {offsets = [0, 64], sizes = [32, 64], strides = [1, 1]} : vector<32x192xf32> to vector<32x64xf32>
    %32 = vector.extract_strided_slice %23 {offsets = [0, 64], sizes = [1, 64], strides = [1, 1]} : vector<8x128xf32> to vector<1x64xf32>
    %33 = vector.broadcast %32 : vector<1x64xf32> to vector<32x64xf32>
    %34 = arith.addf %31, %33 : vector<32x64xf32>
    %35 = arith.truncf %34 : vector<32x64xf32> to vector<32x64xbf16>
    %36 = vector.extract_strided_slice %25 {offsets = [0, 128], sizes = [32, 64], strides = [1, 1]} : vector<32x192xf32> to vector<32x64xf32>
    %37 = vector.extract_strided_slice %23 {offsets = [1, 0], sizes = [1, 64], strides = [1, 1]} : vector<8x128xf32> to vector<1x64xf32>
    %38 = vector.broadcast %37 : vector<1x64xf32> to vector<32x64xf32>
    %39 = arith.addf %36, %38 : vector<32x64xf32>
    %40 = arith.truncf %39 : vector<32x64xf32> to vector<32x64xbf16>
    %41 = vector.extract_strided_slice %30 {offsets = [0, 0], sizes = [16, 32], strides = [1, 1]} : vector<32x64xbf16> to vector<16x32xbf16>
    %42 = vector.extract_strided_slice %35 {offsets = [0, 0], sizes = [16, 32], strides = [1, 1]} : vector<32x64xbf16> to vector<16x32xbf16>
    %43 = vector.extract_strided_slice %40 {offsets = [0, 0], sizes = [16, 32], strides = [1, 1]} : vector<32x64xbf16> to vector<16x32xbf16>
    %cst_27 = arith.constant dense<0.000000e+00> : vector<16x16xf32>
    %44 = tpu.matmul %41, %42, %cst_27 {dimension_numbers = #tpu.dot_dimension_numbers<[1], [1], [0], [0], [0, 0, 1, 0], [], []>} : vector<16x32xbf16>, vector<16x32xbf16>, vector<16x16xf32> -> vector<16x16xf32>
    %45 = vector.broadcast %7 : vector<1x16xf32> to vector<16x16xf32>
    %46 = arith.addf %44, %45 : vector<16x16xf32>
    %cst_28 = arith.constant dense<0xFF800000> : vector<16xf32>
    %47 = vector.multi_reduction <maximumf>, %46, %cst_28 [1] : vector<16x16xf32> to vector<16xf32>
    %48 = vector.shape_cast %47 : vector<16xf32> to vector<16x1xf32>
    %49 = vector.broadcast %48 : vector<16x1xf32> to vector<16x16xf32>
    %50 = arith.subf %46, %49 : vector<16x16xf32>
    %51 = math.exp %50 : vector<16x16xf32>
    %cst_29 = arith.constant dense<0.000000e+00> : vector<16xf32>
    %52 = vector.multi_reduction <add>, %51, %cst_29 [1] : vector<16x16xf32> to vector<16xf32>
    %53 = vector.shape_cast %52 : vector<16xf32> to vector<16x1xf32>
    %54 = tpu.reciprocal %53 {approx = true} : vector<16x1xf32> -> vector<16x1xf32>
    %55 = vector.broadcast %54 : vector<16x1xf32> to vector<16x16xf32>
    %56 = arith.mulf %51, %55 : vector<16x16xf32>
    %57 = arith.truncf %56 : vector<16x16xf32> to vector<16x16xbf16>
    %cst_30 = arith.constant dense<0.000000e+00> : vector<16x32xf32>
    %58 = tpu.matmul %57, %43, %cst_30 {dimension_numbers = #tpu.dot_dimension_numbers<[1], [0], [0], [1], [0, 0, 1, 1], [], []>} : vector<16x16xbf16>, vector<16x32xbf16>, vector<16x32xf32> -> vector<16x32xf32>
    %c0_31 = arith.constant 0 : index
    %c0_32 = arith.constant 0 : index
    %59 = vector.load %arg10[%c0_31, %c0_32] : memref<32x64xf32, #tpu.memory_space<vmem>>, vector<16x32xf32>
    tpu.vector_store %arg10[%c0_31, %c0_32], %58 {strides = array<i32>} : memref<32x64xf32, #tpu.memory_space<vmem>>, vector<16x32xf32>,
    %60 = vector.extract_strided_slice %30 {offsets = [0, 32], sizes = [16, 32], strides = [1, 1]} : vector<32x64xbf16> to vector<16x32xbf16>
    %61 = vector.extract_strided_slice %35 {offsets = [0, 32], sizes = [16, 32], strides = [1, 1]} : vector<32x64xbf16> to vector<16x32xbf16>
    %62 = vector.extract_strided_slice %40 {offsets = [0, 32], sizes = [16, 32], strides = [1, 1]} : vector<32x64xbf16> to vector<16x32xbf16>
    %cst_33 = arith.constant dense<0.000000e+00> : vector<16x16xf32>
    %63 = tpu.matmul %60, %61, %cst_33 {dimension_numbers = #tpu.dot_dimension_numbers<[1], [1], [0], [0], [0, 0, 1, 0], [], []>} : vector<16x32xbf16>, vector<16x32xbf16>, vector<16x16xf32> -> vector<16x16xf32>
    %64 = vector.broadcast %7 : vector<1x16xf32> to vector<16x16xf32>
    %65 = arith.addf %63, %64 : vector<16x16xf32>
    %cst_34 = arith.constant dense<0xFF800000> : vector<16xf32>
    %66 = vector.multi_reduction <maximumf>, %65, %cst_34 [1] : vector<16x16xf32> to vector<16xf32>
    %67 = vector.shape_cast %66 : vector<16xf32> to vector<16x1xf32>
    %68 = vector.broadcast %67 : vector<16x1xf32> to vector<16x16xf32>
    %69 = arith.subf %65, %68 : vector<16x16xf32>
    %70 = math.exp %69 : vector<16x16xf32>
    %cst_35 = arith.constant dense<0.000000e+00> : vector<16xf32>
    %71 = vector.multi_reduction <add>, %70, %cst_35 [1] : vector<16x16xf32> to vector<16xf32>
    %72 = vector.shape_cast %71 : vector<16xf32> to vector<16x1xf32>
    %73 = tpu.reciprocal %72 {approx = true} : vector<16x1xf32> -> vector<16x1xf32>
    %74 = vector.broadcast %73 : vector<16x1xf32> to vector<16x16xf32>
    %75 = arith.mulf %70, %74 : vector<16x16xf32>
    %76 = arith.truncf %75 : vector<16x16xf32> to vector<16x16xbf16>
    %cst_36 = arith.constant dense<0.000000e+00> : vector<16x32xf32>
    %77 = tpu.matmul %76, %62, %cst_36 {dimension_numbers = #tpu.dot_dimension_numbers<[1], [0], [0], [1], [0, 0, 1, 1], [], []>} : vector<16x16xbf16>, vector<16x32xbf16>, vector<16x32xf32> -> vector<16x32xf32>
    %c0_37 = arith.constant 0 : index
    %c32 = arith.constant 32 : index
    %78 = vector.load %arg10[%c0_37, %c32] : memref<32x64xf32, #tpu.memory_space<vmem>>, vector<16x32xf32>
    tpu.vector_store %arg10[%c0_37, %c32], %77 {strides = array<i32>} : memref<32x64xf32, #tpu.memory_space<vmem>>, vector<16x32xf32>,
    %79 = vector.extract_strided_slice %30 {offsets = [16, 0], sizes = [16, 32], strides = [1, 1]} : vector<32x64xbf16> to vector<16x32xbf16>
    %80 = vector.extract_strided_slice %35 {offsets = [16, 0], sizes = [16, 32], strides = [1, 1]} : vector<32x64xbf16> to vector<16x32xbf16>
    %81 = vector.extract_strided_slice %40 {offsets = [16, 0], sizes = [16, 32], strides = [1, 1]} : vector<32x64xbf16> to vector<16x32xbf16>
    %cst_38 = arith.constant dense<0.000000e+00> : vector<16x16xf32>
    %82 = tpu.matmul %79, %80, %cst_38 {dimension_numbers = #tpu.dot_dimension_numbers<[1], [1], [0], [0], [0, 0, 1, 0], [], []>} : vector<16x32xbf16>, vector<16x32xbf16>, vector<16x16xf32> -> vector<16x16xf32>
    %83 = vector.broadcast %13 : vector<1x16xf32> to vector<16x16xf32>
    %84 = arith.addf %82, %83 : vector<16x16xf32>
    %cst_39 = arith.constant dense<0xFF800000> : vector<16xf32>
    %85 = vector.multi_reduction <maximumf>, %84, %cst_39 [1] : vector<16x16xf32> to vector<16xf32>
    %86 = vector.shape_cast %85 : vector<16xf32> to vector<16x1xf32>
    %87 = vector.broadcast %86 : vector<16x1xf32> to vector<16x16xf32>
    %88 = arith.subf %84, %87 : vector<16x16xf32>
    %89 = math.exp %88 : vector<16x16xf32>
    %cst_40 = arith.constant dense<0.000000e+00> : vector<16xf32>
    %90 = vector.multi_reduction <add>, %89, %cst_40 [1] : vector<16x16xf32> to vector<16xf32>
    %91 = vector.shape_cast %90 : vector<16xf32> to vector<16x1xf32>
    %92 = tpu.reciprocal %91 {approx = true} : vector<16x1xf32> -> vector<16x1xf32>
    %93 = vector.broadcast %92 : vector<16x1xf32> to vector<16x16xf32>
    %94 = arith.mulf %89, %93 : vector<16x16xf32>
    %95 = arith.truncf %94 : vector<16x16xf32> to vector<16x16xbf16>
    %cst_41 = arith.constant dense<0.000000e+00> : vector<16x32xf32>
    %96 = tpu.matmul %95, %81, %cst_41 {dimension_numbers = #tpu.dot_dimension_numbers<[1], [0], [0], [1], [0, 0, 1, 1], [], []>} : vector<16x16xbf16>, vector<16x32xbf16>, vector<16x32xf32> -> vector<16x32xf32>
    %c16 = arith.constant 16 : index
    %c0_42 = arith.constant 0 : index
    %97 = vector.load %arg10[%c16, %c0_42] : memref<32x64xf32, #tpu.memory_space<vmem>>, vector<16x32xf32>
    tpu.vector_store %arg10[%c16, %c0_42], %96 {strides = array<i32>} : memref<32x64xf32, #tpu.memory_space<vmem>>, vector<16x32xf32>,
    %98 = vector.extract_strided_slice %30 {offsets = [16, 32], sizes = [16, 32], strides = [1, 1]} : vector<32x64xbf16> to vector<16x32xbf16>
    %99 = vector.extract_strided_slice %35 {offsets = [16, 32], sizes = [16, 32], strides = [1, 1]} : vector<32x64xbf16> to vector<16x32xbf16>
    %100 = vector.extract_strided_slice %40 {offsets = [16, 32], sizes = [16, 32], strides = [1, 1]} : vector<32x64xbf16> to vector<16x32xbf16>
    %cst_43 = arith.constant dense<0.000000e+00> : vector<16x16xf32>
    %101 = tpu.matmul %98, %99, %cst_43 {dimension_numbers = #tpu.dot_dimension_numbers<[1], [1], [0], [0], [0, 0, 1, 0], [], []>} : vector<16x32xbf16>, vector<16x32xbf16>, vector<16x16xf32> -> vector<16x16xf32>
    %102 = vector.broadcast %13 : vector<1x16xf32> to vector<16x16xf32>
    %103 = arith.addf %101, %102 : vector<16x16xf32>
    %cst_44 = arith.constant dense<0xFF800000> : vector<16xf32>
    %104 = vector.multi_reduction <maximumf>, %103, %cst_44 [1] : vector<16x16xf32> to vector<16xf32>
    %105 = vector.shape_cast %104 : vector<16xf32> to vector<16x1xf32>
    %106 = vector.broadcast %105 : vector<16x1xf32> to vector<16x16xf32>
    %107 = arith.subf %103, %106 : vector<16x16xf32>
    %108 = math.exp %107 : vector<16x16xf32>
    %cst_45 = arith.constant dense<0.000000e+00> : vector<16xf32>
    %109 = vector.multi_reduction <add>, %108, %cst_45 [1] : vector<16x16xf32> to vector<16xf32>
    %110 = vector.shape_cast %109 : vector<16xf32> to vector<16x1xf32>
    %111 = tpu.reciprocal %110 {approx = true} : vector<16x1xf32> -> vector<16x1xf32>
    %112 = vector.broadcast %111 : vector<16x1xf32> to vector<16x16xf32>
    %113 = arith.mulf %108, %112 : vector<16x16xf32>
    %114 = arith.truncf %113 : vector<16x16xf32> to vector<16x16xbf16>
    %cst_46 = arith.constant dense<0.000000e+00> : vector<16x32xf32>
    %115 = tpu.matmul %114, %100, %cst_46 {dimension_numbers = #tpu.dot_dimension_numbers<[1], [0], [0], [1], [0, 0, 1, 1], [], []>} : vector<16x16xbf16>, vector<16x32xbf16>, vector<16x32xf32> -> vector<16x32xf32>
    %c16_47 = arith.constant 16 : index
    %c32_48 = arith.constant 32 : index
    %116 = vector.load %arg10[%c16_47, %c32_48] : memref<32x64xf32, #tpu.memory_space<vmem>>, vector<16x32xf32>
    tpu.vector_store %arg10[%c16_47, %c32_48], %115 {strides = array<i32>} : memref<32x64xf32, #tpu.memory_space<vmem>>, vector<16x32xf32>,
    %c0_49 = arith.constant 0 : index
    %c0_50 = arith.constant 0 : index
    %117 = vector.load %arg10[%c0_49, %c0_50] : memref<32x64xf32, #tpu.memory_space<vmem>>, vector<32x64xf32>
    %118 = arith.truncf %117 : vector<32x64xf32> to vector<32x64xbf16>
    %cst_51 = arith.constant dense<0.000000e+00> : vector<32x64xf32>
    %119 = tpu.matmul %118, %17, %cst_51 {dimension_numbers = #tpu.dot_dimension_numbers<[1], [0], [0], [1], [0, 0, 1, 1], [], []>} : vector<32x64xbf16>, vector<64x64xbf16>, vector<32x64xf32> -> vector<32x64xf32>
    %120 = vector.extract_strided_slice %23 {offsets = [1, 64], sizes = [1, 64], strides = [1, 1]} : vector<8x128xf32> to vector<1x64xf32>
    %121 = vector.broadcast %120 : vector<1x64xf32> to vector<32x64xf32>
    %122 = arith.addf %119, %121 : vector<32x64xf32>
    %123 = arith.addf %0, %122 : vector<32x64xf32>
    %124 = vector.extract_strided_slice %23 {offsets = [4, 0], sizes = [1, 64], strides = [1, 1]} : vector<8x128xf32> to vector<1x64xf32>
    %125 = vector.extract_strided_slice %23 {offsets = [4, 64], sizes = [1, 64], strides = [1, 1]} : vector<8x128xf32> to vector<1x64xf32>
    %cst_52 = arith.constant dense<0.000000e+00> : vector<32xf32>
    %126 = vector.multi_reduction <add>, %123, %cst_52 [1] : vector<32x64xf32> to vector<32xf32>
    %127 = vector.shape_cast %126 : vector<32xf32> to vector<32x1xf32>
    %cst_53 = arith.constant 6.400000e+01 : f32
    %128 = vector.broadcast %cst_53 : f32 to vector<32x1xf32>
    %129 = arith.divf %127, %128 : vector<32x1xf32>
    %130 = vector.broadcast %129 : vector<32x1xf32> to vector<32x64xf32>
    %131 = arith.subf %123, %130 : vector<32x64xf32>
    %132 = arith.mulf %131, %131 : vector<32x64xf32>
    %cst_54 = arith.constant dense<0.000000e+00> : vector<32xf32>
    %133 = vector.multi_reduction <add>, %132, %cst_54 [1] : vector<32x64xf32> to vector<32xf32>
    %134 = vector.shape_cast %133 : vector<32xf32> to vector<32x1xf32>
    %cst_55 = arith.constant 6.400000e+01 : f32
    %135 = vector.broadcast %cst_55 : f32 to vector<32x1xf32>
    %136 = arith.divf %134, %135 : vector<32x1xf32>
    %137 = vector.broadcast %129 : vector<32x1xf32> to vector<32x64xf32>
    %138 = arith.subf %123, %137 : vector<32x64xf32>
    %cst_56 = arith.constant 9.99999974E-6 : f32
    %139 = vector.broadcast %cst_56 : f32 to vector<32x1xf32>
    %140 = arith.addf %136, %139 : vector<32x1xf32>
    %141 = math.rsqrt %140 : vector<32x1xf32>
    %142 = vector.broadcast %141 : vector<32x1xf32> to vector<32x64xf32>
    %143 = arith.mulf %138, %142 : vector<32x64xf32>
    %144 = vector.broadcast %124 : vector<1x64xf32> to vector<32x64xf32>
    %145 = arith.mulf %143, %144 : vector<32x64xf32>
    %146 = vector.broadcast %125 : vector<1x64xf32> to vector<32x64xf32>
    %147 = arith.addf %145, %146 : vector<32x64xf32>
    %148 = vector.broadcast %1 : vector<32x1xf32> to vector<32x64xf32>
    %149 = arith.mulf %147, %148 : vector<32x64xf32>
    %150 = arith.truncf %149 : vector<32x64xf32> to vector<32x64xbf16>
    %cst_57 = arith.constant dense<0.000000e+00> : vector<32x128xf32>
    %151 = tpu.matmul %150, %19, %cst_57 {dimension_numbers = #tpu.dot_dimension_numbers<[1], [0], [0], [1], [0, 0, 1, 1], [], []>} : vector<32x64xbf16>, vector<64x128xbf16>, vector<32x128xf32> -> vector<32x128xf32>
    %152 = vector.extract_strided_slice %23 {offsets = [2, 0], sizes = [1, 128], strides = [1, 1]} : vector<8x128xf32> to vector<1x128xf32>
    %153 = vector.broadcast %152 : vector<1x128xf32> to vector<32x128xf32>
    %154 = arith.addf %151, %153 : vector<32x128xf32>
    %cst_58 = arith.constant 0.000000e+00 : f32
    %155 = vector.broadcast %cst_58 : f32 to vector<32x128xf32>
    %156 = arith.maximumf %154, %155 : vector<32x128xf32>
    %157 = arith.truncf %156 : vector<32x128xf32> to vector<32x128xbf16>
    %cst_59 = arith.constant dense<0.000000e+00> : vector<32x64xf32>
    %158 = tpu.matmul %157, %21, %cst_59 {dimension_numbers = #tpu.dot_dimension_numbers<[1], [0], [0], [1], [0, 0, 1, 1], [], []>} : vector<32x128xbf16>, vector<128x64xbf16>, vector<32x64xf32> -> vector<32x64xf32>
    %159 = vector.extract_strided_slice %23 {offsets = [3, 0], sizes = [1, 64], strides = [1, 1]} : vector<8x128xf32> to vector<1x64xf32>
    %160 = vector.broadcast %159 : vector<1x64xf32> to vector<32x64xf32>
    %161 = arith.addf %158, %160 : vector<32x64xf32>
    %162 = arith.addf %149, %161 : vector<32x64xf32>
    %163 = vector.extract_strided_slice %23 {offsets = [5, 0], sizes = [1, 64], strides = [1, 1]} : vector<8x128xf32> to vector<1x64xf32>
    %164 = vector.extract_strided_slice %23 {offsets = [5, 64], sizes = [1, 64], strides = [1, 1]} : vector<8x128xf32> to vector<1x64xf32>
    %cst_60 = arith.constant dense<0.000000e+00> : vector<32xf32>
    %165 = vector.multi_reduction <add>, %162, %cst_60 [1] : vector<32x64xf32> to vector<32xf32>
    %166 = vector.shape_cast %165 : vector<32xf32> to vector<32x1xf32>
    %cst_61 = arith.constant 6.400000e+01 : f32
    %167 = vector.broadcast %cst_61 : f32 to vector<32x1xf32>
    %168 = arith.divf %166, %167 : vector<32x1xf32>
    %169 = vector.broadcast %168 : vector<32x1xf32> to vector<32x64xf32>
    %170 = arith.subf %162, %169 : vector<32x64xf32>
    %171 = arith.mulf %170, %170 : vector<32x64xf32>
    %cst_62 = arith.constant dense<0.000000e+00> : vector<32xf32>
    %172 = vector.multi_reduction <add>, %171, %cst_62 [1] : vector<32x64xf32> to vector<32xf32>
    %173 = vector.shape_cast %172 : vector<32xf32> to vector<32x1xf32>
    %cst_63 = arith.constant 6.400000e+01 : f32
    %174 = vector.broadcast %cst_63 : f32 to vector<32x1xf32>
    %175 = arith.divf %173, %174 : vector<32x1xf32>
    %176 = vector.broadcast %168 : vector<32x1xf32> to vector<32x64xf32>
    %177 = arith.subf %162, %176 : vector<32x64xf32>
    %cst_64 = arith.constant 9.99999974E-6 : f32
    %178 = vector.broadcast %cst_64 : f32 to vector<32x1xf32>
    %179 = arith.addf %175, %178 : vector<32x1xf32>
    %180 = math.rsqrt %179 : vector<32x1xf32>
    %181 = vector.broadcast %180 : vector<32x1xf32> to vector<32x64xf32>
    %182 = arith.mulf %177, %181 : vector<32x64xf32>
    %183 = vector.broadcast %163 : vector<1x64xf32> to vector<32x64xf32>
    %184 = arith.mulf %182, %183 : vector<32x64xf32>
    %185 = vector.broadcast %164 : vector<1x64xf32> to vector<32x64xf32>
    %186 = arith.addf %184, %185 : vector<32x64xf32>
    %187 = vector.broadcast %1 : vector<32x1xf32> to vector<32x64xf32>
    %188 = arith.mulf %186, %187 : vector<32x64xf32>
    %c1_65 = arith.constant 1 : index
    %c0_66 = arith.constant 0 : index
    %c0_67 = arith.constant 0 : index
    %189 = vector.load %arg4[%c1_65, %c0_66, %c0_67] : memref<2x64x192xbf16, #tpu.memory_space<vmem>>, vector<1x64x192xbf16>
    %190 = vector.shape_cast %189 : vector<1x64x192xbf16> to vector<64x192xbf16>
    %c1_68 = arith.constant 1 : index
    %c0_69 = arith.constant 0 : index
    %c0_70 = arith.constant 0 : index
    %191 = vector.load %arg5[%c1_68, %c0_69, %c0_70] : memref<2x64x64xbf16, #tpu.memory_space<vmem>>, vector<1x64x64xbf16>
    %192 = vector.shape_cast %191 : vector<1x64x64xbf16> to vector<64x64xbf16>
    %c1_71 = arith.constant 1 : index
    %c0_72 = arith.constant 0 : index
    %c0_73 = arith.constant 0 : index
    %193 = vector.load %arg6[%c1_71, %c0_72, %c0_73] : memref<2x64x128xbf16, #tpu.memory_space<vmem>>, vector<1x64x128xbf16>
    %194 = vector.shape_cast %193 : vector<1x64x128xbf16> to vector<64x128xbf16>
    %c1_74 = arith.constant 1 : index
    %c0_75 = arith.constant 0 : index
    %c0_76 = arith.constant 0 : index
    %195 = vector.load %arg7[%c1_74, %c0_75, %c0_76] : memref<2x128x64xbf16, #tpu.memory_space<vmem>>, vector<1x128x64xbf16>
    %196 = vector.shape_cast %195 : vector<1x128x64xbf16> to vector<128x64xbf16>
    %c1_77 = arith.constant 1 : index
    %c0_78 = arith.constant 0 : index
    %c0_79 = arith.constant 0 : index
    %197 = vector.load %arg8[%c1_77, %c0_78, %c0_79] : memref<2x8x128xf32, #tpu.memory_space<vmem>>, vector<1x8x128xf32>
    %198 = vector.shape_cast %197 : vector<1x8x128xf32> to vector<8x128xf32>
    %199 = arith.truncf %188 : vector<32x64xf32> to vector<32x64xbf16>
    %cst_80 = arith.constant dense<0.000000e+00> : vector<32x192xf32>
    %200 = tpu.matmul %199, %190, %cst_80 {dimension_numbers = #tpu.dot_dimension_numbers<[1], [0], [0], [1], [0, 0, 1, 1], [], []>} : vector<32x64xbf16>, vector<64x192xbf16>, vector<32x192xf32> -> vector<32x192xf32>
    %201 = vector.extract_strided_slice %200 {offsets = [0, 0], sizes = [32, 64], strides = [1, 1]} : vector<32x192xf32> to vector<32x64xf32>
    %202 = vector.extract_strided_slice %198 {offsets = [0, 0], sizes = [1, 64], strides = [1, 1]} : vector<8x128xf32> to vector<1x64xf32>
    %203 = vector.broadcast %202 : vector<1x64xf32> to vector<32x64xf32>
    %204 = arith.addf %201, %203 : vector<32x64xf32>
    %205 = arith.truncf %204 : vector<32x64xf32> to vector<32x64xbf16>
    %206 = vector.extract_strided_slice %200 {offsets = [0, 64], sizes = [32, 64], strides = [1, 1]} : vector<32x192xf32> to vector<32x64xf32>
    %207 = vector.extract_strided_slice %198 {offsets = [0, 64], sizes = [1, 64], strides = [1, 1]} : vector<8x128xf32> to vector<1x64xf32>
    %208 = vector.broadcast %207 : vector<1x64xf32> to vector<32x64xf32>
    %209 = arith.addf %206, %208 : vector<32x64xf32>
    %210 = arith.truncf %209 : vector<32x64xf32> to vector<32x64xbf16>
    %211 = vector.extract_strided_slice %200 {offsets = [0, 128], sizes = [32, 64], strides = [1, 1]} : vector<32x192xf32> to vector<32x64xf32>
    %212 = vector.extract_strided_slice %198 {offsets = [1, 0], sizes = [1, 64], strides = [1, 1]} : vector<8x128xf32> to vector<1x64xf32>
    %213 = vector.broadcast %212 : vector<1x64xf32> to vector<32x64xf32>
    %214 = arith.addf %211, %213 : vector<32x64xf32>
    %215 = arith.truncf %214 : vector<32x64xf32> to vector<32x64xbf16>
    %216 = vector.extract_strided_slice %205 {offsets = [0, 0], sizes = [16, 32], strides = [1, 1]} : vector<32x64xbf16> to vector<16x32xbf16>
    %217 = vector.extract_strided_slice %210 {offsets = [0, 0], sizes = [16, 32], strides = [1, 1]} : vector<32x64xbf16> to vector<16x32xbf16>
    %218 = vector.extract_strided_slice %215 {offsets = [0, 0], sizes = [16, 32], strides = [1, 1]} : vector<32x64xbf16> to vector<16x32xbf16>
    %cst_81 = arith.constant dense<0.000000e+00> : vector<16x16xf32>
    %219 = tpu.matmul %216, %217, %cst_81 {dimension_numbers = #tpu.dot_dimension_numbers<[1], [1], [0], [0], [0, 0, 1, 0], [], []>} : vector<16x32xbf16>, vector<16x32xbf16>, vector<16x16xf32> -> vector<16x16xf32>
    %220 = vector.broadcast %7 : vector<1x16xf32> to vector<16x16xf32>
    %221 = arith.addf %219, %220 : vector<16x16xf32>
    %cst_82 = arith.constant dense<0xFF800000> : vector<16xf32>
    %222 = vector.multi_reduction <maximumf>, %221, %cst_82 [1] : vector<16x16xf32> to vector<16xf32>
    %223 = vector.shape_cast %222 : vector<16xf32> to vector<16x1xf32>
    %224 = vector.broadcast %223 : vector<16x1xf32> to vector<16x16xf32>
    %225 = arith.subf %221, %224 : vector<16x16xf32>
    %226 = math.exp %225 : vector<16x16xf32>
    %cst_83 = arith.constant dense<0.000000e+00> : vector<16xf32>
    %227 = vector.multi_reduction <add>, %226, %cst_83 [1] : vector<16x16xf32> to vector<16xf32>
    %228 = vector.shape_cast %227 : vector<16xf32> to vector<16x1xf32>
    %229 = tpu.reciprocal %228 {approx = true} : vector<16x1xf32> -> vector<16x1xf32>
    %230 = vector.broadcast %229 : vector<16x1xf32> to vector<16x16xf32>
    %231 = arith.mulf %226, %230 : vector<16x16xf32>
    %232 = arith.truncf %231 : vector<16x16xf32> to vector<16x16xbf16>
    %cst_84 = arith.constant dense<0.000000e+00> : vector<16x32xf32>
    %233 = tpu.matmul %232, %218, %cst_84 {dimension_numbers = #tpu.dot_dimension_numbers<[1], [0], [0], [1], [0, 0, 1, 1], [], []>} : vector<16x16xbf16>, vector<16x32xbf16>, vector<16x32xf32> -> vector<16x32xf32>
    %c0_85 = arith.constant 0 : index
    %c0_86 = arith.constant 0 : index
    %234 = vector.load %arg10[%c0_85, %c0_86] : memref<32x64xf32, #tpu.memory_space<vmem>>, vector<16x32xf32>
    tpu.vector_store %arg10[%c0_85, %c0_86], %233 {strides = array<i32>} : memref<32x64xf32, #tpu.memory_space<vmem>>, vector<16x32xf32>,
    %235 = vector.extract_strided_slice %205 {offsets = [0, 32], sizes = [16, 32], strides = [1, 1]} : vector<32x64xbf16> to vector<16x32xbf16>
    %236 = vector.extract_strided_slice %210 {offsets = [0, 32], sizes = [16, 32], strides = [1, 1]} : vector<32x64xbf16> to vector<16x32xbf16>
    %237 = vector.extract_strided_slice %215 {offsets = [0, 32], sizes = [16, 32], strides = [1, 1]} : vector<32x64xbf16> to vector<16x32xbf16>
    %cst_87 = arith.constant dense<0.000000e+00> : vector<16x16xf32>
    %238 = tpu.matmul %235, %236, %cst_87 {dimension_numbers = #tpu.dot_dimension_numbers<[1], [1], [0], [0], [0, 0, 1, 0], [], []>} : vector<16x32xbf16>, vector<16x32xbf16>, vector<16x16xf32> -> vector<16x16xf32>
    %239 = vector.broadcast %7 : vector<1x16xf32> to vector<16x16xf32>
    %240 = arith.addf %238, %239 : vector<16x16xf32>
    %cst_88 = arith.constant dense<0xFF800000> : vector<16xf32>
    %241 = vector.multi_reduction <maximumf>, %240, %cst_88 [1] : vector<16x16xf32> to vector<16xf32>
    %242 = vector.shape_cast %241 : vector<16xf32> to vector<16x1xf32>
    %243 = vector.broadcast %242 : vector<16x1xf32> to vector<16x16xf32>
    %244 = arith.subf %240, %243 : vector<16x16xf32>
    %245 = math.exp %244 : vector<16x16xf32>
    %cst_89 = arith.constant dense<0.000000e+00> : vector<16xf32>
    %246 = vector.multi_reduction <add>, %245, %cst_89 [1] : vector<16x16xf32> to vector<16xf32>
    %247 = vector.shape_cast %246 : vector<16xf32> to vector<16x1xf32>
    %248 = tpu.reciprocal %247 {approx = true} : vector<16x1xf32> -> vector<16x1xf32>
    %249 = vector.broadcast %248 : vector<16x1xf32> to vector<16x16xf32>
    %250 = arith.mulf %245, %249 : vector<16x16xf32>
    %251 = arith.truncf %250 : vector<16x16xf32> to vector<16x16xbf16>
    %cst_90 = arith.constant dense<0.000000e+00> : vector<16x32xf32>
    %252 = tpu.matmul %251, %237, %cst_90 {dimension_numbers = #tpu.dot_dimension_numbers<[1], [0], [0], [1], [0, 0, 1, 1], [], []>} : vector<16x16xbf16>, vector<16x32xbf16>, vector<16x32xf32> -> vector<16x32xf32>
    %c0_91 = arith.constant 0 : index
    %c32_92 = arith.constant 32 : index
    %253 = vector.load %arg10[%c0_91, %c32_92] : memref<32x64xf32, #tpu.memory_space<vmem>>, vector<16x32xf32>
    tpu.vector_store %arg10[%c0_91, %c32_92], %252 {strides = array<i32>} : memref<32x64xf32, #tpu.memory_space<vmem>>, vector<16x32xf32>,
    %254 = vector.extract_strided_slice %205 {offsets = [16, 0], sizes = [16, 32], strides = [1, 1]} : vector<32x64xbf16> to vector<16x32xbf16>
    %255 = vector.extract_strided_slice %210 {offsets = [16, 0], sizes = [16, 32], strides = [1, 1]} : vector<32x64xbf16> to vector<16x32xbf16>
    %256 = vector.extract_strided_slice %215 {offsets = [16, 0], sizes = [16, 32], strides = [1, 1]} : vector<32x64xbf16> to vector<16x32xbf16>
    %cst_93 = arith.constant dense<0.000000e+00> : vector<16x16xf32>
    %257 = tpu.matmul %254, %255, %cst_93 {dimension_numbers = #tpu.dot_dimension_numbers<[1], [1], [0], [0], [0, 0, 1, 0], [], []>} : vector<16x32xbf16>, vector<16x32xbf16>, vector<16x16xf32> -> vector<16x16xf32>
    %258 = vector.broadcast %13 : vector<1x16xf32> to vector<16x16xf32>
    %259 = arith.addf %257, %258 : vector<16x16xf32>
    %cst_94 = arith.constant dense<0xFF800000> : vector<16xf32>
    %260 = vector.multi_reduction <maximumf>, %259, %cst_94 [1] : vector<16x16xf32> to vector<16xf32>
    %261 = vector.shape_cast %260 : vector<16xf32> to vector<16x1xf32>
    %262 = vector.broadcast %261 : vector<16x1xf32> to vector<16x16xf32>
    %263 = arith.subf %259, %262 : vector<16x16xf32>
    %264 = math.exp %263 : vector<16x16xf32>
    %cst_95 = arith.constant dense<0.000000e+00> : vector<16xf32>
    %265 = vector.multi_reduction <add>, %264, %cst_95 [1] : vector<16x16xf32> to vector<16xf32>
    %266 = vector.shape_cast %265 : vector<16xf32> to vector<16x1xf32>
    %267 = tpu.reciprocal %266 {approx = true} : vector<16x1xf32> -> vector<16x1xf32>
    %268 = vector.broadcast %267 : vector<16x1xf32> to vector<16x16xf32>
    %269 = arith.mulf %264, %268 : vector<16x16xf32>
    %270 = arith.truncf %269 : vector<16x16xf32> to vector<16x16xbf16>
    %cst_96 = arith.constant dense<0.000000e+00> : vector<16x32xf32>
    %271 = tpu.matmul %270, %256, %cst_96 {dimension_numbers = #tpu.dot_dimension_numbers<[1], [0], [0], [1], [0, 0, 1, 1], [], []>} : vector<16x16xbf16>, vector<16x32xbf16>, vector<16x32xf32> -> vector<16x32xf32>
    %c16_97 = arith.constant 16 : index
    %c0_98 = arith.constant 0 : index
    %272 = vector.load %arg10[%c16_97, %c0_98] : memref<32x64xf32, #tpu.memory_space<vmem>>, vector<16x32xf32>
    tpu.vector_store %arg10[%c16_97, %c0_98], %271 {strides = array<i32>} : memref<32x64xf32, #tpu.memory_space<vmem>>, vector<16x32xf32>,
    %273 = vector.extract_strided_slice %205 {offsets = [16, 32], sizes = [16, 32], strides = [1, 1]} : vector<32x64xbf16> to vector<16x32xbf16>
    %274 = vector.extract_strided_slice %210 {offsets = [16, 32], sizes = [16, 32], strides = [1, 1]} : vector<32x64xbf16> to vector<16x32xbf16>
    %275 = vector.extract_strided_slice %215 {offsets = [16, 32], sizes = [16, 32], strides = [1, 1]} : vector<32x64xbf16> to vector<16x32xbf16>
    %cst_99 = arith.constant dense<0.000000e+00> : vector<16x16xf32>
    %276 = tpu.matmul %273, %274, %cst_99 {dimension_numbers = #tpu.dot_dimension_numbers<[1], [1], [0], [0], [0, 0, 1, 0], [], []>} : vector<16x32xbf16>, vector<16x32xbf16>, vector<16x16xf32> -> vector<16x16xf32>
    %277 = vector.broadcast %13 : vector<1x16xf32> to vector<16x16xf32>
    %278 = arith.addf %276, %277 : vector<16x16xf32>
    %cst_100 = arith.constant dense<0xFF800000> : vector<16xf32>
    %279 = vector.multi_reduction <maximumf>, %278, %cst_100 [1] : vector<16x16xf32> to vector<16xf32>
    %280 = vector.shape_cast %279 : vector<16xf32> to vector<16x1xf32>
    %281 = vector.broadcast %280 : vector<16x1xf32> to vector<16x16xf32>
    %282 = arith.subf %278, %281 : vector<16x16xf32>
    %283 = math.exp %282 : vector<16x16xf32>
    %cst_101 = arith.constant dense<0.000000e+00> : vector<16xf32>
    %284 = vector.multi_reduction <add>, %283, %cst_101 [1] : vector<16x16xf32> to vector<16xf32>
    %285 = vector.shape_cast %284 : vector<16xf32> to vector<16x1xf32>
    %286 = tpu.reciprocal %285 {approx = true} : vector<16x1xf32> -> vector<16x1xf32>
    %287 = vector.broadcast %286 : vector<16x1xf32> to vector<16x16xf32>
    %288 = arith.mulf %283, %287 : vector<16x16xf32>
    %289 = arith.truncf %288 : vector<16x16xf32> to vector<16x16xbf16>
    %cst_102 = arith.constant dense<0.000000e+00> : vector<16x32xf32>
    %290 = tpu.matmul %289, %275, %cst_102 {dimension_numbers = #tpu.dot_dimension_numbers<[1], [0], [0], [1], [0, 0, 1, 1], [], []>} : vector<16x16xbf16>, vector<16x32xbf16>, vector<16x32xf32> -> vector<16x32xf32>
    %c16_103 = arith.constant 16 : index
    %c32_104 = arith.constant 32 : index
    %291 = vector.load %arg10[%c16_103, %c32_104] : memref<32x64xf32, #tpu.memory_space<vmem>>, vector<16x32xf32>
    tpu.vector_store %arg10[%c16_103, %c32_104], %290 {strides = array<i32>} : memref<32x64xf32, #tpu.memory_space<vmem>>, vector<16x32xf32>,
    %c0_105 = arith.constant 0 : index
    %c0_106 = arith.constant 0 : index
    %292 = vector.load %arg10[%c0_105, %c0_106] : memref<32x64xf32, #tpu.memory_space<vmem>>, vector<32x64xf32>
    %293 = arith.truncf %292 : vector<32x64xf32> to vector<32x64xbf16>
    %cst_107 = arith.constant dense<0.000000e+00> : vector<32x64xf32>
    %294 = tpu.matmul %293, %192, %cst_107 {dimension_numbers = #tpu.dot_dimension_numbers<[1], [0], [0], [1], [0, 0, 1, 1], [], []>} : vector<32x64xbf16>, vector<64x64xbf16>, vector<32x64xf32> -> vector<32x64xf32>
    %295 = vector.extract_strided_slice %198 {offsets = [1, 64], sizes = [1, 64], strides = [1, 1]} : vector<8x128xf32> to vector<1x64xf32>
    %296 = vector.broadcast %295 : vector<1x64xf32> to vector<32x64xf32>
    %297 = arith.addf %294, %296 : vector<32x64xf32>
    %298 = arith.addf %188, %297 : vector<32x64xf32>
    %299 = vector.extract_strided_slice %198 {offsets = [4, 0], sizes = [1, 64], strides = [1, 1]} : vector<8x128xf32> to vector<1x64xf32>
    %300 = vector.extract_strided_slice %198 {offsets = [4, 64], sizes = [1, 64], strides = [1, 1]} : vector<8x128xf32> to vector<1x64xf32>
    %cst_108 = arith.constant dense<0.000000e+00> : vector<32xf32>
    %301 = vector.multi_reduction <add>, %298, %cst_108 [1] : vector<32x64xf32> to vector<32xf32>
    %302 = vector.shape_cast %301 : vector<32xf32> to vector<32x1xf32>
    %cst_109 = arith.constant 6.400000e+01 : f32
    %303 = vector.broadcast %cst_109 : f32 to vector<32x1xf32>
    %304 = arith.divf %302, %303 : vector<32x1xf32>
    %305 = vector.broadcast %304 : vector<32x1xf32> to vector<32x64xf32>
    %306 = arith.subf %298, %305 : vector<32x64xf32>
    %307 = arith.mulf %306, %306 : vector<32x64xf32>
    %cst_110 = arith.constant dense<0.000000e+00> : vector<32xf32>
    %308 = vector.multi_reduction <add>, %307, %cst_110 [1] : vector<32x64xf32> to vector<32xf32>
    %309 = vector.shape_cast %308 : vector<32xf32> to vector<32x1xf32>
    %cst_111 = arith.constant 6.400000e+01 : f32
    %310 = vector.broadcast %cst_111 : f32 to vector<32x1xf32>
    %311 = arith.divf %309, %310 : vector<32x1xf32>
    %312 = vector.broadcast %304 : vector<32x1xf32> to vector<32x64xf32>
    %313 = arith.subf %298, %312 : vector<32x64xf32>
    %cst_112 = arith.constant 9.99999974E-6 : f32
    %314 = vector.broadcast %cst_112 : f32 to vector<32x1xf32>
    %315 = arith.addf %311, %314 : vector<32x1xf32>
    %316 = math.rsqrt %315 : vector<32x1xf32>
    %317 = vector.broadcast %316 : vector<32x1xf32> to vector<32x64xf32>
    %318 = arith.mulf %313, %317 : vector<32x64xf32>
    %319 = vector.broadcast %299 : vector<1x64xf32> to vector<32x64xf32>
    %320 = arith.mulf %318, %319 : vector<32x64xf32>
    %321 = vector.broadcast %300 : vector<1x64xf32> to vector<32x64xf32>
    %322 = arith.addf %320, %321 : vector<32x64xf32>
    %323 = vector.broadcast %1 : vector<32x1xf32> to vector<32x64xf32>
    %324 = arith.mulf %322, %323 : vector<32x64xf32>
    %325 = arith.truncf %324 : vector<32x64xf32> to vector<32x64xbf16>
    %cst_113 = arith.constant dense<0.000000e+00> : vector<32x128xf32>
    %326 = tpu.matmul %325, %194, %cst_113 {dimension_numbers = #tpu.dot_dimension_numbers<[1], [0], [0], [1], [0, 0, 1, 1], [], []>} : vector<32x64xbf16>, vector<64x128xbf16>, vector<32x128xf32> -> vector<32x128xf32>
    %327 = vector.extract_strided_slice %198 {offsets = [2, 0], sizes = [1, 128], strides = [1, 1]} : vector<8x128xf32> to vector<1x128xf32>
    %328 = vector.broadcast %327 : vector<1x128xf32> to vector<32x128xf32>
    %329 = arith.addf %326, %328 : vector<32x128xf32>
    %cst_114 = arith.constant 0.000000e+00 : f32
    %330 = vector.broadcast %cst_114 : f32 to vector<32x128xf32>
    %331 = arith.maximumf %329, %330 : vector<32x128xf32>
    %332 = arith.truncf %331 : vector<32x128xf32> to vector<32x128xbf16>
    %cst_115 = arith.constant dense<0.000000e+00> : vector<32x64xf32>
    %333 = tpu.matmul %332, %196, %cst_115 {dimension_numbers = #tpu.dot_dimension_numbers<[1], [0], [0], [1], [0, 0, 1, 1], [], []>} : vector<32x128xbf16>, vector<128x64xbf16>, vector<32x64xf32> -> vector<32x64xf32>
    %334 = vector.extract_strided_slice %198 {offsets = [3, 0], sizes = [1, 64], strides = [1, 1]} : vector<8x128xf32> to vector<1x64xf32>
    %335 = vector.broadcast %334 : vector<1x64xf32> to vector<32x64xf32>
    %336 = arith.addf %333, %335 : vector<32x64xf32>
    %337 = arith.addf %324, %336 : vector<32x64xf32>
    %338 = vector.extract_strided_slice %198 {offsets = [5, 0], sizes = [1, 64], strides = [1, 1]} : vector<8x128xf32> to vector<1x64xf32>
    %339 = vector.extract_strided_slice %198 {offsets = [5, 64], sizes = [1, 64], strides = [1, 1]} : vector<8x128xf32> to vector<1x64xf32>
    %cst_116 = arith.constant dense<0.000000e+00> : vector<32xf32>
    %340 = vector.multi_reduction <add>, %337, %cst_116 [1] : vector<32x64xf32> to vector<32xf32>
    %341 = vector.shape_cast %340 : vector<32xf32> to vector<32x1xf32>
    %cst_117 = arith.constant 6.400000e+01 : f32
    %342 = vector.broadcast %cst_117 : f32 to vector<32x1xf32>
    %343 = arith.divf %341, %342 : vector<32x1xf32>
    %344 = vector.broadcast %343 : vector<32x1xf32> to vector<32x64xf32>
    %345 = arith.subf %337, %344 : vector<32x64xf32>
    %346 = arith.mulf %345, %345 : vector<32x64xf32>
    %cst_118 = arith.constant dense<0.000000e+00> : vector<32xf32>
    %347 = vector.multi_reduction <add>, %346, %cst_118 [1] : vector<32x64xf32> to vector<32xf32>
    %348 = vector.shape_cast %347 : vector<32xf32> to vector<32x1xf32>
    %cst_119 = arith.constant 6.400000e+01 : f32
    %349 = vector.broadcast %cst_119 : f32 to vector<32x1xf32>
    %350 = arith.divf %348, %349 : vector<32x1xf32>
    %351 = vector.broadcast %343 : vector<32x1xf32> to vector<32x64xf32>
    %352 = arith.subf %337, %351 : vector<32x64xf32>
    %cst_120 = arith.constant 9.99999974E-6 : f32
    %353 = vector.broadcast %cst_120 : f32 to vector<32x1xf32>
    %354 = arith.addf %350, %353 : vector<32x1xf32>
    %355 = math.rsqrt %354 : vector<32x1xf32>
    %356 = vector.broadcast %355 : vector<32x1xf32> to vector<32x64xf32>
    %357 = arith.mulf %352, %356 : vector<32x64xf32>
    %358 = vector.broadcast %338 : vector<1x64xf32> to vector<32x64xf32>
    %359 = arith.mulf %357, %358 : vector<32x64xf32>
    %360 = vector.broadcast %339 : vector<1x64xf32> to vector<32x64xf32>
    %361 = arith.addf %359, %360 : vector<32x64xf32>
    %362 = vector.broadcast %1 : vector<32x1xf32> to vector<32x64xf32>
    %363 = arith.mulf %361, %362 : vector<32x64xf32>
    %c0_121 = arith.constant 0 : index
    %c0_122 = arith.constant 0 : index
    %364 = vector.load %arg9[%c0_121, %c0_122] : memref<32x64xf32, #tpu.memory_space<vmem>>, vector<32x64xf32>
    tpu.vector_store %arg9[%c0_121, %c0_122], %363 {strides = array<i32>} : memref<32x64xf32, #tpu.memory_space<vmem>>, vector<32x64xf32>,
    return
  }
  func.func @transform_0(%arg0: i32) -> (i32, i32) {
    %c0_i32 = arith.constant 0 : i32
    %c0_i32_0 = arith.constant 0 : i32
    return %arg0, %c0_i32 : i32, i32
  }
  func.func @transform_1(%arg0: i32) -> (i32, i32) {
    %c0_i32 = arith.constant 0 : i32
    %c0_i32_0 = arith.constant 0 : i32
    return %arg0, %c0_i32 : i32, i32
  }
  func.func @transform_2(%arg0: i32) -> (i32, i32, i32) {
    %c0_i32 = arith.constant 0 : i32
    %c0_i32_0 = arith.constant 0 : i32
    %c0_i32_1 = arith.constant 0 : i32
    return %arg0, %c0_i32, %c0_i32_0 : i32, i32, i32
  }
  func.func @transform_3(%arg0: i32) -> (i32, i32, i32) {
    %c0_i32 = arith.constant 0 : i32
    %c0_i32_0 = arith.constant 0 : i32
    %c0_i32_1 = arith.constant 0 : i32
    %c0_i32_2 = arith.constant 0 : i32
    return %c0_i32, %c0_i32_0, %c0_i32_1 : i32, i32, i32
  }
  func.func @transform_4(%arg0: i32) -> (i32, i32, i32) {
    %c0_i32 = arith.constant 0 : i32
    %c0_i32_0 = arith.constant 0 : i32
    %c0_i32_1 = arith.constant 0 : i32
    %c0_i32_2 = arith.constant 0 : i32
    return %c0_i32, %c0_i32_0, %c0_i32_1 : i32, i32, i32
  }
  func.func @transform_5(%arg0: i32) -> (i32, i32, i32) {
    %c0_i32 = arith.constant 0 : i32
    %c0_i32_0 = arith.constant 0 : i32
    %c0_i32_1 = arith.constant 0 : i32
    %c0_i32_2 = arith.constant 0 : i32
    return %c0_i32, %c0_i32_0, %c0_i32_1 : i32, i32, i32
  }
  func.func @transform_6(%arg0: i32) -> (i32, i32, i32) {
    %c0_i32 = arith.constant 0 : i32
    %c0_i32_0 = arith.constant 0 : i32
    %c0_i32_1 = arith.constant 0 : i32
    %c0_i32_2 = arith.constant 0 : i32
    return %c0_i32, %c0_i32_0, %c0_i32_1 : i32, i32, i32
  }
  func.func @transform_7(%arg0: i32) -> (i32, i32, i32) {
    %c0_i32 = arith.constant 0 : i32
    %c0_i32_0 = arith.constant 0 : i32
    %c0_i32_1 = arith.constant 0 : i32
    %c0_i32_2 = arith.constant 0 : i32
    return %c0_i32, %c0_i32_0, %c0_i32_1 : i32, i32, i32
  }
  func.func @transform_8(%arg0: i32) -> (i32, i32) {
    %c0_i32 = arith.constant 0 : i32
    %c0_i32_0 = arith.constant 0 : i32
    return %arg0, %c0_i32 : i32, i32
  }
}

</mosaic_0001>

<llo_original>
// kernel: fastspeech_encoder.1
$region0: #{fastspeech_encoder.1}
  #allocation0 [shape = 'u32[]', space=smem, size = 0x4, offset = 0x4, fixed_abs, tag = 'smem constant byte address 0x4 - core index']
  #allocation1 [shape = 'u32[144,128]{1,0:T(1,128)}', space=vmem, size = 0x12000, scoped, tag = 'internal scratch']
  #allocation2 [shape = 'f32[32,64]{1,0:T(8,128)}', space=vmem, size = 0x4000, scoped, tag = 'scratch operand']
  %s0 = inlined_call_operand.vmem [shape: f32[32,64], index: 0, kind: input, shape index: {}]
  %s1 = inlined_call_operand.vmem [shape: f32[32,1], index: 1, kind: input, shape index: {}]
  %s2 = inlined_call_operand.vmem [shape: f32[2,1,16], index: 2, kind: input, shape index: {}]
  %s3 = inlined_call_operand.vmem [shape: bf16[2,64,192], index: 3, kind: input, shape index: {}]
  %s4 = inlined_call_operand.vmem [shape: bf16[2,64,64], index: 4, kind: input, shape index: {}]
  %s5 = inlined_call_operand.vmem [shape: bf16[2,64,128], index: 5, kind: input, shape index: {}]
  %s6 = inlined_call_operand.vmem [shape: bf16[2,128,64], index: 6, kind: input, shape index: {}]
  %s7 = inlined_call_operand.vmem [shape: f32[2,8,128], index: 7, kind: input, shape index: {}]
  %s8 = inlined_call_operand.hbm [shape: f32[32,64], index: 8, kind: output, shape index: {}]
  %s9 = sld [smem:[#allocation0]]
  $region42: #{fastspeech_encoder.1} parent=0
    _
  %s11 = ssub.s32 1, %s9
  %s12 = scalar_select 0, %s11, %s9
  $region1: #{fastspeech_encoder.1} parent=0
    #allocation3 [shape = 'u8[16384]{0}', space=vmem, size = 0x4000, scoped, tag = 'output window, operand 0, single buffered']
    #allocation4 [shape = 's32[1]{0}', space=sflag, size = 0x4, scoped, tag = 'scoped memory for fastspeech_encoder.1']
    %13 = vsyncpa [#allocation4], 0
    // Predicated region
    $region2: #{fastspeech_encoder.1} parent=1 // pred_check
      _
    $region3: #{fastspeech_encoder.1} parent=1 // pred_check_branch
      %15 = sbr.rel (0) target = $region5
    $region4: #{fastspeech_encoder.1} parent=1 // pred_region
      _
    $region5: #{fastspeech_encoder.1} parent=1 // pred_fallthru
      _
    // Predicated region
    $region6: #{fastspeech_encoder.1} parent=1 // pred_check
      _
    $region7: #{fastspeech_encoder.1} parent=1 // pred_check_branch
      %17 = sbr.rel (0) target = $region9
    $region8: #{fastspeech_encoder.1} parent=1 // pred_region
      _
    $region9: #{fastspeech_encoder.1} parent=1 // pred_fallthru
      _
    // Predicated region
    $region10: #{fastspeech_encoder.1} parent=1 // pred_check
      _
    $region11: #{fastspeech_encoder.1} parent=1 // pred_check_branch
      %19 = sbr.rel (0) target = $region13
    $region12: #{fastspeech_encoder.1} parent=1 // pred_region
      _
    $region13: #{fastspeech_encoder.1} parent=1 // pred_fallthru
      _
    // Predicated region
    $region14: #{fastspeech_encoder.1} parent=1 // pred_check
      _
    $region15: #{fastspeech_encoder.1} parent=1 // pred_check_branch
      %21 = sbr.rel (0) target = $region17
    $region16: #{fastspeech_encoder.1} parent=1 // pred_region
      _
    $region17: #{fastspeech_encoder.1} parent=1 // pred_fallthru
      _
    // Predicated region
    $region18: #{fastspeech_encoder.1} parent=1 // pred_check
      _
    $region19: #{fastspeech_encoder.1} parent=1 // pred_check_branch
      %23 = sbr.rel (0) target = $region21
    $region20: #{fastspeech_encoder.1} parent=1 // pred_region
      _
    $region21: #{fastspeech_encoder.1} parent=1 // pred_fallthru
      _
    // Predicated region
    $region22: #{fastspeech_encoder.1} parent=1 // pred_check
      _
    $region23: #{fastspeech_encoder.1} parent=1 // pred_check_branch
      %25 = sbr.rel (0) target = $region25
    $region24: #{fastspeech_encoder.1} parent=1 // pred_region
      _
    $region25: #{fastspeech_encoder.1} parent=1 // pred_fallthru
      _
    // Predicated region
    $region26: #{fastspeech_encoder.1} parent=1 // pred_check
      _
    $region27: #{fastspeech_encoder.1} parent=1 // pred_check_branch
      %27 = sbr.rel (0) target = $region29
    $region28: #{fastspeech_encoder.1} parent=1 // pred_region
      _
    $region29: #{fastspeech_encoder.1} parent=1 // pred_fallthru
      _
    // Predicated region
    $region30: #{fastspeech_encoder.1} parent=1 // pred_check
      _
    $region31: #{fastspeech_encoder.1} parent=1 // pred_check_branch
      %29 = sbr.rel (0) target = $region33
    $region32: #{fastspeech_encoder.1} parent=1 // pred_region
      _
    $region33: #{fastspeech_encoder.1} parent=1 // pred_fallthru
      _
    %v31 = vld [vmem:[%s0] sm:$0xff]
    %v32 = vld [vmem:[%s0 + $0x8] sm:$0xff]
    %v33 = vld [vmem:[%s0 + $0x10] sm:$0xff]
    %v34 = vld [vmem:[%s0 + $0x18] sm:$0xff]
    %v35 = vld [vmem:[%s1] sm:$0xff]
    %v36 = vld [vmem:[%s1 + $0x8] sm:$0xff]
    %v37 = vld [vmem:[%s1 + $0x10] sm:$0xff]
    %v38 = vld [vmem:[%s1 + $0x18] sm:$0xff]
    %v39 = vld [vmem:[%s2] sm:$0x1]
    %v40 = vsub.f32 1.0, %v39
    %v41 = vmul.f32 %v40, -1e+09
    %s42 = scalar_lea.vmem %s2, 1
    %v43 = vld [vmem:[%s42] sm:$0x1]
    %v44 = vsub.f32 1.0, %v43
    %v45 = vmul.f32 %v44, -1e+09
    %v46 = vld [vmem:[%s3] sm:$0xff]
    %v47 = vld [vmem:[%s3 + $0x8] sm:$0xff]
    %v48 = vld [vmem:[%s3 + $0x10] sm:$0xff]
    %v49 = vld [vmem:[%s3 + $0x18] sm:$0xff]
    %v50 = vld [vmem:[%s3 + $0x20] sm:$0xff]
    %v51 = vld [vmem:[%s3 + $0x28] sm:$0xff]
    %v52 = vld [vmem:[%s3 + $0x30] sm:$0xff]
    %v53 = vld [vmem:[%s3 + $0x38] sm:$0xff]
    %v54 = vld [vmem:[%s4] sm:$0xf]
    %v55 = vld [vmem:[%s4 + $0x4] sm:$0xf]
    %v56 = vld [vmem:[%s4 + $0x8] sm:$0xf]
    %v57 = vld [vmem:[%s4 + $0xc] sm:$0xf]
    %v58 = vld [vmem:[%s4 + $0x10] sm:$0xf]
    %v59 = vld [vmem:[%s4 + $0x14] sm:$0xf]
    %v60 = vld [vmem:[%s4 + $0x18] sm:$0xf]
    %v61 = vld [vmem:[%s4 + $0x1c] sm:$0xf]
    %v62 = vld [vmem:[%s5] sm:$0xf]
    %v63 = vld [vmem:[%s5 + $0x4] sm:$0xf]
    %v64 = vld [vmem:[%s5 + $0x8] sm:$0xf]
    %v65 = vld [vmem:[%s5 + $0xc] sm:$0xf]
    %v66 = vld [vmem:[%s5 + $0x10] sm:$0xf]
    %v67 = vld [vmem:[%s5 + $0x14] sm:$0xf]
    %v68 = vld [vmem:[%s5 + $0x18] sm:$0xf]
    %v69 = vld [vmem:[%s5 + $0x1c] sm:$0xf]
    %v70 = vld [vmem:[%s6] sm:$0xf]
    %v71 = vld [vmem:[%s6 + $0x4] sm:$0xf]
    %v72 = vld [vmem:[%s6 + $0x8] sm:$0xf]
    %v73 = vld [vmem:[%s6 + $0xc] sm:$0xf]
    %v74 = vld [vmem:[%s6 + $0x10] sm:$0xf]
    %v75 = vld [vmem:[%s6 + $0x14] sm:$0xf]
    %v76 = vld [vmem:[%s6 + $0x18] sm:$0xf]
    %v77 = vld [vmem:[%s6 + $0x1c] sm:$0xf]
    %v78 = vld [vmem:[%s6 + $0x20] sm:$0xf]
    %v79 = vld [vmem:[%s6 + $0x24] sm:$0xf]
    %v80 = vld [vmem:[%s6 + $0x28] sm:$0xf]
    %v81 = vld [vmem:[%s6 + $0x2c] sm:$0xf]
    %v82 = vld [vmem:[%s6 + $0x30] sm:$0xf]
    %v83 = vld [vmem:[%s6 + $0x34] sm:$0xf]
    %v84 = vld [vmem:[%s6 + $0x38] sm:$0xf]
    %v85 = vld [vmem:[%s6 + $0x3c] sm:$0xf]
    %v86 = vld [vmem:[%s7] sm:$0xff]
    %v87 = vpack.c.bf16 %v32, %v31
    %v88 = vpack.c.bf16 %v34, %v33
    %v97 = vunpack.c.l.b16 %v46
    %v98 = vunpack.c.h.b16 %v46
    %v99 = vunpack.c.l.b16 %v47
    %v100 = vunpack.c.h.b16 %v47
    %v101 = vunpack.c.l.b16 %v48
    %v102 = vunpack.c.h.b16 %v48
    %v103 = vunpack.c.l.b16 %v49
    %v104 = vunpack.c.h.b16 %v49
    %v105 = vunpack.c.l.b16 %v50
    %v106 = vunpack.c.h.b16 %v50
    %v107 = vunpack.c.l.b16 %v51
    %v108 = vunpack.c.h.b16 %v51
    %v109 = vunpack.c.l.b16 %v52
    %v110 = vunpack.c.h.b16 %v52
    %v111 = vunpack.c.l.b16 %v53
    %v112 = vunpack.c.h.b16 %v53
    %v113 = vpack.c.b16 %v99, %v97
    %v114 = vpack.c.b16 %v100, %v98
    %v115 = vpack.c.b16 %v103, %v101
    %v116 = vpack.c.b16 %v104, %v102
    %v117 = vpack.c.b16 %v107, %v105
    %v118 = vpack.c.b16 %v108, %v106
    %v119 = vpack.c.b16 %v111, %v109
    %v120 = vpack.c.b16 %v112, %v110
    %vm129 = vcmask 523264
    %v131 = vsel %vm129, %v87, 0
    %v134 = vsel %vm129, %v88, 0
    %136 = vmatprep.subr.bf16.mxu0 %v114
    %137 = vmatpush1.bf16.msra.mxu0 %v113
    %138 = vmatprep.subr.bf16.mxu0 %v116
    %139 = vmatpush1.bf16.msra.mxu0 %v115
    %140 = vmatprep.subr.bf16.mxu0 %v118
    %141 = vmatpush1.bf16.msra.mxu0 %v117
    %142 = vmatprep.subr.bf16.mxu0 %v120
    %143 = vmatpush1.bf16.msra.mxu0 %v119
    %144 = vmatprep.subr.bf16.mxu0 0
    %145 = vmatpush1.bf16.msra.mxu0 0
    %146 = vmatprep.subr.bf16.mxu0 0
    %147 = vmatpush1.bf16.msra.mxu0 0
    %148 = vmatprep.subr.bf16.mxu0 0
    %149 = vmatpush1.bf16.msra.mxu0 0
    %150 = vmatprep.subr.bf16.mxu0 0
    %151 = vmatpush1.bf16.msra.mxu0 0
    %152 = vmatprep.subr.bf16.mxu0 0
    %153 = vmatpush1.bf16.msra.mxu0 0
    %154 = vmatprep.subr.bf16.mxu0 0
    %155 = vmatpush1.bf16.msra.mxu0 0
    %156 = vmatprep.subr.bf16.mxu0 0
    %157 = vmatpush1.bf16.msra.mxu0 0
    %158 = vmatprep.subr.bf16.mxu0 0
    %159 = vmatpush1.bf16.msra.mxu0 0
    %160 = vmatprep.subr.bf16.mxu0 0
    %161 = vmatpush1.bf16.msra.mxu0 0
    %162 = vmatprep.subr.bf16.mxu0 0
    %163 = vmatpush1.bf16.msra.mxu0 0
    %164 = vmatprep.subr.bf16.mxu0 0
    %165 = vmatpush1.bf16.msra.mxu0 0
    %166 = vmatprep.subr.bf16.mxu0 0
    %167 = vmatpush1.bf16.msra.mxu0 0
    %168 = vmatprep.mubr.bf16.mxu0 0
    %169 = vmatmul.mubr.bf16.gmra.mrb[0].mxu0 %v131
    %v170 = vpop.f32.mrb[0].mxu0
    %v171 = vadd.f32 0.0, %v170
    %v172 = vpop.f32.mrb[0].mxu0
    %v173 = vadd.f32 0.0, %v172
    %v174 = vpop.f32.mrb[0].mxu0
    %v175 = vadd.f32 0.0, %v174
    %v176 = vpop.f32.mrb[0].mxu0
    %v177 = vadd.f32 0.0, %v176
    %178 = vmatprep.mubr.bf16.mxu0 0
    %179 = vmatmul.mubr.bf16.gmra.mrb[0].mxu0 %v134
    %v180 = vpop.f32.mrb[0].mxu0
    %v181 = vadd.f32 0.0, %v180
    %v182 = vpop.f32.mrb[0].mxu0
    %v183 = vadd.f32 0.0, %v182
    %v184 = vpop.f32.mrb[0].mxu0
    %v185 = vadd.f32 0.0, %v184
    %v186 = vpop.f32.mrb[0].mxu0
    %v187 = vadd.f32 0.0, %v186
    %188 = vdwg.mxu0
    %v189 = vlaneseq
    %v190 = vshrl.u32 %v189, 7
    %v191 = vsub.s32 0, %v190
    %v192 = vrot.slane %v86, %v191
    %v193 = vadd.f32 %v171, %v192
    %v194 = vadd.f32 %v175, %v192
    %v195 = vadd.f32 %v181, %v192
    %v196 = vadd.f32 %v185, %v192
    %v197 = vpack.c.bf16 %v194, %v193
    %v198 = vpack.c.bf16 %v196, %v195
    %v199 = vlaneseq
    %v200 = vshrl.u32 %v199, 7
    %v201 = vsub.s32 1, %v200
    %v202 = vrot.slane %v86, %v201
    %v203 = vadd.f32 %v173, %v202
    %v204 = vadd.f32 %v177, %v202
    %v205 = vadd.f32 %v183, %v202
    %v206 = vadd.f32 %v187, %v202
    %v207 = vpack.c.bf16 %v204, %v203
    %v208 = vpack.c.bf16 %v206, %v205
    %v210 = vlaneseq
    %v211 = vshrl.u32 %v210, 7
    %v212 = vsub.s32 0, %v211
    %v213 = vrot.slane %v41, %v212
    %216 = vrot.lane.b32.xlu0 %v197, 64
    %v217 = vpop.permute.xlu0 %216
    %vm218 = vcmask 261120
    %v220 = vsel %vm218, %v197, 0
    %v223 = vsel %vm218, %v217, 0
    %225 = vmatprep.subr.bf16.mxu0 0
    %226 = vmatpush1.bf16.xpose.msra.mxu0 %v223
    %227 = vmatprep.subr.bf16.mxu0 0
    %228 = vmatpush1.bf16.xpose.msra.mxu0 0
    %229 = vmatprep.subr.bf16.mxu0 0
    %230 = vmatpush1.bf16.xpose.msra.mxu0 0
    %231 = vmatprep.subr.bf16.mxu0 0
    %232 = vmatpush1.bf16.xpose.msra.mxu0 0
    %233 = vmatprep.subr.bf16.mxu0 0
    %234 = vmatpush1.bf16.xpose.msra.mxu0 0
    %235 = vmatprep.subr.bf16.mxu0 0
    %236 = vmatpush1.bf16.xpose.msra.mxu0 0
    %237 = vmatprep.subr.bf16.mxu0 0
    %238 = vmatpush1.bf16.xpose.msra.mxu0 0
    %239 = vmatprep.subr.bf16.mxu0 0
    %240 = vmatpush1.bf16.xpose.msra.mxu0 0
    %241 = vmatprep.subr.bf16.mxu0 0
    %242 = vmatpush1.bf16.xpose.msra.mxu0 0
    %243 = vmatprep.subr.bf16.mxu0 0
    %244 = vmatpush1.bf16.xpose.msra.mxu0 0
    %245 = vmatprep.subr.bf16.mxu0 0
    %246 = vmatpush1.bf16.xpose.msra.mxu0 0
    %247 = vmatprep.subr.bf16.mxu0 0
    %248 = vmatpush1.bf16.xpose.msra.mxu0 0
    %249 = vmatprep.subr.bf16.mxu0 0
    %250 = vmatpush1.bf16.xpose.msra.mxu0 0
    %251 = vmatprep.subr.bf16.mxu0 0
    %252 = vmatpush1.bf16.xpose.msra.mxu0 0
    %253 = vmatprep.subr.bf16.mxu0 0
    %254 = vmatpush1.bf16.xpose.msra.mxu0 0
    %255 = vmatprep.subr.bf16.mxu0 0
    %256 = vmatpush1.bf16.xpose.msra.mxu0 0
    %257 = vmatprep.mubr.bf16.mxu0 0
    %258 = vmatmul.mubr.bf16.gmra.mrb[0].mxu0 %v220
    %v259 = vpop.f32.mrb[0].mxu0
    %v260 = vadd.f32 %v213, %v259
    %v261 = vpop.f32.mrb[0].mxu0
    %v262 = vpop.f32.mrb[0].mxu0
    %v263 = vadd.f32 %v213, %v262
    %v264 = vpop.f32.mrb[0].mxu0
    %265 = vdwg.mxu0
    %vm266 = vcmask 130048
    %v267 = vsel %vm266, %v260, -inf
    %268 = vmax.xlane.f32.xlu0 %v267
    %v269 = vpop.xlane.xlu0 %268
    %v270 = vsel %vm266, %v263, -inf
    %271 = vmax.xlane.f32.xlu0 %v270
    %v272 = vpop.xlane.xlu0 %271
    %v273 = vsub.f32 %v260, %v269
    %v274 = vsub.f32 %v263, %v272
    %v275 = vmul.f32 %v273, 1.442695
    %v276 = vpow.pop %v275
    %v277 = vmul.f32 %v274, 1.442695
    %v278 = vpow.pop %v277
    %v279 = vsel %vm266, %v276, 0.0
    %280 = vadd.xlane.f32.xlu0 %v279
    %v281 = vpop.xlane.xlu0 %280
    %v282 = vsel %vm266, %v278, 0.0
    %283 = vadd.xlane.f32.xlu0 %v282
    %v284 = vpop.xlane.xlu0 %283
    %v285 = vrcp.pop %v281
    %v286 = vrcp.pop %v284
    %v287 = vmul.f32 %v276, %v285
    %v288 = vmul.f32 %v278, %v286
    %v289 = vpack.c.bf16 %v288, %v287
    %v291 = vsel %vm266, %v289, 0
    %293 = vmatprep.subr.bf16.mxu0 0
    %294 = vmatpush1.bf16.msra.mxu0 %v207
    %295 = vmatprep.subr.bf16.mxu0 0
    %296 = vmatpush1.bf16.msra.mxu0 0
    %297 = vmatprep.subr.bf16.mxu0 0
    %298 = vmatpush1.bf16.msra.mxu0 0
    %299 = vmatprep.subr.bf16.mxu0 0
    %300 = vmatpush1.bf16.msra.mxu0 0
    %301 = vmatprep.subr.bf16.mxu0 0
    %302 = vmatpush1.bf16.msra.mxu0 0
    %303 = vmatprep.subr.bf16.mxu0 0
    %304 = vmatpush1.bf16.msra.mxu0 0
    %305 = vmatprep.subr.bf16.mxu0 0
    %306 = vmatpush1.bf16.msra.mxu0 0
    %307 = vmatprep.subr.bf16.mxu0 0
    %308 = vmatpush1.bf16.msra.mxu0 0
    %309 = vmatprep.subr.bf16.mxu0 0
    %310 = vmatpush1.bf16.msra.mxu0 0
    %311 = vmatprep.subr.bf16.mxu0 0
    %312 = vmatpush1.bf16.msra.mxu0 0
    %313 = vmatprep.subr.bf16.mxu0 0
    %314 = vmatpush1.bf16.msra.mxu0 0
    %315 = vmatprep.subr.bf16.mxu0 0
    %316 = vmatpush1.bf16.msra.mxu0 0
    %317 = vmatprep.subr.bf16.mxu0 0
    %318 = vmatpush1.bf16.msra.mxu0 0
    %319 = vmatprep.subr.bf16.mxu0 0
    %320 = vmatpush1.bf16.msra.mxu0 0
    %321 = vmatprep.subr.bf16.mxu0 0
    %322 = vmatpush1.bf16.msra.mxu0 0
    %323 = vmatprep.subr.bf16.mxu0 0
    %324 = vmatpush1.bf16.msra.mxu0 0
    %325 = vmatprep.mubr.bf16.mxu0 0
    %326 = vmatmul.mubr.bf16.gmra.mrb[0].mxu0 %v291
    %v327 = vpop.f32.mrb[0].mxu0
    %v328 = vadd.f32 0.0, %v327
    %v329 = vpop.f32.mrb[0].mxu0
    %v330 = vpop.f32.mrb[0].mxu0
    %v331 = vadd.f32 0.0, %v330
    %v332 = vpop.f32.mrb[0].mxu0
    %333 = vdwg.mxu0
    %334 = vst.msk [vmem:[#allocation2] sm:$0xff] %vm218, %v328
    %335 = vst.msk [vmem:[#allocation2 + $0x8] sm:$0xff] %vm218, %v331
    %336 = vrot.lane.b32.xlu0 %v197, 96
    %v337 = vpop.permute.xlu0 %336
    %338 = vrot.lane.b32.xlu0 %v197, 32
    %v339 = vpop.permute.xlu0 %338
    %v341 = vsel %vm218, %v337, 0
    %v344 = vsel %vm218, %v339, 0
    %346 = vmatprep.subr.bf16.mxu0 0
    %347 = vmatpush1.bf16.xpose.msra.mxu0 %v344
    %348 = vmatprep.subr.bf16.mxu0 0
    %349 = vmatpush1.bf16.xpose.msra.mxu0 0
    %350 = vmatprep.subr.bf16.mxu0 0
    %351 = vmatpush1.bf16.xpose.msra.mxu0 0
    %352 = vmatprep.subr.bf16.mxu0 0
    %353 = vmatpush1.bf16.xpose.msra.mxu0 0
    %354 = vmatprep.subr.bf16.mxu0 0
    %355 = vmatpush1.bf16.xpose.msra.mxu0 0
    %356 = vmatprep.subr.bf16.mxu0 0
    %357 = vmatpush1.bf16.xpose.msra.mxu0 0
    %358 = vmatprep.subr.bf16.mxu0 0
    %359 = vmatpush1.bf16.xpose.msra.mxu0 0
    %360 = vmatprep.subr.bf16.mxu0 0
    %361 = vmatpush1.bf16.xpose.msra.mxu0 0
    %362 = vmatprep.subr.bf16.mxu0 0
    %363 = vmatpush1.bf16.xpose.msra.mxu0 0
    %364 = vmatprep.subr.bf16.mxu0 0
    %365 = vmatpush1.bf16.xpose.msra.mxu0 0
    %366 = vmatprep.subr.bf16.mxu0 0
    %367 = vmatpush1.bf16.xpose.msra.mxu0 0
    %368 = vmatprep.subr.bf16.mxu0 0
    %369 = vmatpush1.bf16.xpose.msra.mxu0 0
    %370 = vmatprep.subr.bf16.mxu0 0
    %371 = vmatpush1.bf16.xpose.msra.mxu0 0
    %372 = vmatprep.subr.bf16.mxu0 0
    %373 = vmatpush1.bf16.xpose.msra.mxu0 0
    %374 = vmatprep.subr.bf16.mxu0 0
    %375 = vmatpush1.bf16.xpose.msra.mxu0 0
    %376 = vmatprep.subr.bf16.mxu0 0
    %377 = vmatpush1.bf16.xpose.msra.mxu0 0
    %378 = vmatprep.mubr.bf16.mxu0 0
    %379 = vmatmul.mubr.bf16.gmra.mrb[0].mxu0 %v341
    %v380 = vpop.f32.mrb[0].mxu0
    %v381 = vadd.f32 %v213, %v380
    %v382 = vpop.f32.mrb[0].mxu0
    %v383 = vpop.f32.mrb[0].mxu0
    %v384 = vadd.f32 %v213, %v383
    %v385 = vpop.f32.mrb[0].mxu0
    %386 = vdwg.mxu0
    %v387 = vsel %vm266, %v381, -inf
    %388 = vmax.xlane.f32.xlu0 %v387
    %v389 = vpop.xlane.xlu0 %388
    %v390 = vsel %vm266, %v384, -inf
    %391 = vmax.xlane.f32.xlu0 %v390
    %v392 = vpop.xlane.xlu0 %391
    %v393 = vsub.f32 %v381, %v389
    %v394 = vsub.f32 %v384, %v392
    %v395 = vmul.f32 %v393, 1.442695
    %v396 = vpow.pop %v395
    %v397 = vmul.f32 %v394, 1.442695
    %v398 = vpow.pop %v397
    %v399 = vsel %vm266, %v396, 0.0
    %400 = vadd.xlane.f32.xlu0 %v399
    %v401 = vpop.xlane.xlu0 %400
    %v402 = vsel %vm266, %v398, 0.0
    %403 = vadd.xlane.f32.xlu0 %v402
    %v404 = vpop.xlane.xlu0 %403
    %v405 = vrcp.pop %v401
    %v406 = vrcp.pop %v404
    %v407 = vmul.f32 %v396, %v405
    %v408 = vmul.f32 %v398, %v406
    %v409 = vpack.c.bf16 %v408, %v407
    %411 = vrot.lane.b32.xlu0 %v207, 96
    %v412 = vpop.permute.xlu0 %411
    %v415 = vsel %vm266, %v409, 0
    %417 = vmatprep.subr.bf16.mxu0 0
    %418 = vmatpush1.bf16.msra.mxu0 %v412
    %419 = vmatprep.subr.bf16.mxu0 0
    %420 = vmatpush1.bf16.msra.mxu0 0
    %421 = vmatprep.subr.bf16.mxu0 0
    %422 = vmatpush1.bf16.msra.mxu0 0
    %423 = vmatprep.subr.bf16.mxu0 0
    %424 = vmatpush1.bf16.msra.mxu0 0
    %425 = vmatprep.subr.bf16.mxu0 0
    %426 = vmatpush1.bf16.msra.mxu0 0
    %427 = vmatprep.subr.bf16.mxu0 0
    %428 = vmatpush1.bf16.msra.mxu0 0
    %429 = vmatprep.subr.bf16.mxu0 0
    %430 = vmatpush1.bf16.msra.mxu0 0
    %431 = vmatprep.subr.bf16.mxu0 0
    %432 = vmatpush1.bf16.msra.mxu0 0
    %433 = vmatprep.subr.bf16.mxu0 0
    %434 = vmatpush1.bf16.msra.mxu0 0
    %435 = vmatprep.subr.bf16.mxu0 0
    %436 = vmatpush1.bf16.msra.mxu0 0
    %437 = vmatprep.subr.bf16.mxu0 0
    %438 = vmatpush1.bf16.msra.mxu0 0
    %439 = vmatprep.subr.bf16.mxu0 0
    %440 = vmatpush1.bf16.msra.mxu0 0
    %441 = vmatprep.subr.bf16.mxu0 0
    %442 = vmatpush1.bf16.msra.mxu0 0
    %443 = vmatprep.subr.bf16.mxu0 0
    %444 = vmatpush1.bf16.msra.mxu0 0
    %445 = vmatprep.subr.bf16.mxu0 0
    %446 = vmatpush1.bf16.msra.mxu0 0
    %447 = vmatprep.subr.bf16.mxu0 0
    %448 = vmatpush1.bf16.msra.mxu0 0
    %449 = vmatprep.mubr.bf16.mxu0 0
    %450 = vmatmul.mubr.bf16.gmra.mrb[0].mxu0 %v415
    %v451 = vpop.f32.mrb[0].mxu0
    %v452 = vadd.f32 0.0, %v451
    %v453 = vpop.f32.mrb[0].mxu0
    %v454 = vpop.f32.mrb[0].mxu0
    %v455 = vadd.f32 0.0, %v454
    %v456 = vpop.f32.mrb[0].mxu0
    %457 = vdwg.mxu0
    %460 = vrot.lane.b32.xlu0 %v452, 32
    %v461 = vpop.permute.xlu0 %460
    %462 = vrot.lane.b32.xlu0 %v455, 32
    %v463 = vpop.permute.xlu0 %462
    %vm466 = vcmask 523520
    %467 = vst.msk [vmem:[#allocation2] sm:$0xff] %vm466, %v461
    %468 = vst.msk [vmem:[#allocation2 + $0x8] sm:$0xff] %vm466, %v463
    %v470 = vlaneseq
    %v471 = vshrl.u32 %v470, 7
    %v472 = vsub.s32 0, %v471
    %v473 = vrot.slane %v45, %v472
    %476 = vrot.lane.b32.xlu0 %v198, 64
    %v477 = vpop.permute.xlu0 %476
    %v479 = vsel %vm218, %v198, 0
    %v482 = vsel %vm218, %v477, 0
    %484 = vmatprep.subr.bf16.mxu0 0
    %485 = vmatpush1.bf16.xpose.msra.mxu0 %v482
    %486 = vmatprep.subr.bf16.mxu0 0
    %487 = vmatpush1.bf16.xpose.msra.mxu0 0
    %488 = vmatprep.subr.bf16.mxu0 0
    %489 = vmatpush1.bf16.xpose.msra.mxu0 0
    %490 = vmatprep.subr.bf16.mxu0 0
    %491 = vmatpush1.bf16.xpose.msra.mxu0 0
    %492 = vmatprep.subr.bf16.mxu0 0
    %493 = vmatpush1.bf16.xpose.msra.mxu0 0
    %494 = vmatprep.subr.bf16.mxu0 0
    %495 = vmatpush1.bf16.xpose.msra.mxu0 0
    %496 = vmatprep.subr.bf16.mxu0 0
    %497 = vmatpush1.bf16.xpose.msra.mxu0 0
    %498 = vmatprep.subr.bf16.mxu0 0
    %499 = vmatpush1.bf16.xpose.msra.mxu0 0
    %500 = vmatprep.subr.bf16.mxu0 0
    %501 = vmatpush1.bf16.xpose.msra.mxu0 0
    %502 = vmatprep.subr.bf16.mxu0 0
    %503 = vmatpush1.bf16.xpose.msra.mxu0 0
    %504 = vmatprep.subr.bf16.mxu0 0
    %505 = vmatpush1.bf16.xpose.msra.mxu0 0
    %506 = vmatprep.subr.bf16.mxu0 0
    %507 = vmatpush1.bf16.xpose.msra.mxu0 0
    %508 = vmatprep.subr.bf16.mxu0 0
    %509 = vmatpush1.bf16.xpose.msra.mxu0 0
    %510 = vmatprep.subr.bf16.mxu0 0
    %511 = vmatpush1.bf16.xpose.msra.mxu0 0
    %512 = vmatprep.subr.bf16.mxu0 0
    %513 = vmatpush1.bf16.xpose.msra.mxu0 0
    %514 = vmatprep.subr.bf16.mxu0 0
    %515 = vmatpush1.bf16.xpose.msra.mxu0 0
    %516 = vmatprep.mubr.bf16.mxu0 0
    %517 = vmatmul.mubr.bf16.gmra.mrb[0].mxu0 %v479
    %v518 = vpop.f32.mrb[0].mxu0
    %v519 = vadd.f32 %v473, %v518
    %v520 = vpop.f32.mrb[0].mxu0
    %v521 = vpop.f32.mrb[0].mxu0
    %v522 = vadd.f32 %v473, %v521
    %v523 = vpop.f32.mrb[0].mxu0
    %524 = vdwg.mxu0
    %v525 = vsel %vm266, %v519, -inf
    %526 = vmax.xlane.f32.xlu0 %v525
    %v527 = vpop.xlane.xlu0 %526
    %v528 = vsel %vm266, %v522, -inf
    %529 = vmax.xlane.f32.xlu0 %v528
    %v530 = vpop.xlane.xlu0 %529
    %v531 = vsub.f32 %v519, %v527
    %v532 = vsub.f32 %v522, %v530
    %v533 = vmul.f32 %v531, 1.442695
    %v534 = vpow.pop %v533
    %v535 = vmul.f32 %v532, 1.442695
    %v536 = vpow.pop %v535
    %v537 = vsel %vm266, %v534, 0.0
    %538 = vadd.xlane.f32.xlu0 %v537
    %v539 = vpop.xlane.xlu0 %538
    %v540 = vsel %vm266, %v536, 0.0
    %541 = vadd.xlane.f32.xlu0 %v540
    %v542 = vpop.xlane.xlu0 %541
    %v543 = vrcp.pop %v539
    %v544 = vrcp.pop %v542
    %v545 = vmul.f32 %v534, %v543
    %v546 = vmul.f32 %v536, %v544
    %v547 = vpack.c.bf16 %v546, %v545
    %v549 = vsel %vm266, %v547, 0
    %551 = vmatprep.subr.bf16.mxu0 0
    %552 = vmatpush1.bf16.msra.mxu0 %v208
    %553 = vmatprep.subr.bf16.mxu0 0
    %554 = vmatpush1.bf16.msra.mxu0 0
    %555 = vmatprep.subr.bf16.mxu0 0
    %556 = vmatpush1.bf16.msra.mxu0 0
    %557 = vmatprep.subr.bf16.mxu0 0
    %558 = vmatpush1.bf16.msra.mxu0 0
    %559 = vmatprep.subr.bf16.mxu0 0
    %560 = vmatpush1.bf16.msra.mxu0 0
    %561 = vmatprep.subr.bf16.mxu0 0
    %562 = vmatpush1.bf16.msra.mxu0 0
    %563 = vmatprep.subr.bf16.mxu0 0
    %564 = vmatpush1.bf16.msra.mxu0 0
    %565 = vmatprep.subr.bf16.mxu0 0
    %566 = vmatpush1.bf16.msra.mxu0 0
    %567 = vmatprep.subr.bf16.mxu0 0
    %568 = vmatpush1.bf16.msra.mxu0 0
    %569 = vmatprep.subr.bf16.mxu0 0
    %570 = vmatpush1.bf16.msra.mxu0 0
    %571 = vmatprep.subr.bf16.mxu0 0
    %572 = vmatpush1.bf16.msra.mxu0 0
    %573 = vmatprep.subr.bf16.mxu0 0
    %574 = vmatpush1.bf16.msra.mxu0 0
    %575 = vmatprep.subr.bf16.mxu0 0
    %576 = vmatpush1.bf16.msra.mxu0 0
    %577 = vmatprep.subr.bf16.mxu0 0
    %578 = vmatpush1.bf16.msra.mxu0 0
    %579 = vmatprep.subr.bf16.mxu0 0
    %580 = vmatpush1.bf16.msra.mxu0 0
    %581 = vmatprep.subr.bf16.mxu0 0
    %582 = vmatpush1.bf16.msra.mxu0 0
    %583 = vmatprep.mubr.bf16.mxu0 0
    %584 = vmatmul.mubr.bf16.gmra.mrb[0].mxu0 %v549
    %v585 = vpop.f32.mrb[0].mxu0
    %v586 = vadd.f32 0.0, %v585
    %v587 = vpop.f32.mrb[0].mxu0
    %v588 = vpop.f32.mrb[0].mxu0
    %v589 = vadd.f32 0.0, %v588
    %v590 = vpop.f32.mrb[0].mxu0
    %591 = vdwg.mxu0
    %592 = vst.msk [vmem:[#allocation2 + $0x10] sm:$0xff] %vm218, %v586
    %593 = vst.msk [vmem:[#allocation2 + $0x18] sm:$0xff] %vm218, %v589
    %594 = vrot.lane.b32.xlu0 %v198, 96
    %v595 = vpop.permute.xlu0 %594
    %596 = vrot.lane.b32.xlu0 %v198, 32
    %v597 = vpop.permute.xlu0 %596
    %v599 = vsel %vm218, %v595, 0
    %v602 = vsel %vm218, %v597, 0
    %604 = vmatprep.subr.bf16.mxu0 0
    %605 = vmatpush1.bf16.xpose.msra.mxu0 %v602
    %606 = vmatprep.subr.bf16.mxu0 0
    %607 = vmatpush1.bf16.xpose.msra.mxu0 0
    %608 = vmatprep.subr.bf16.mxu0 0
    %609 = vmatpush1.bf16.xpose.msra.mxu0 0
    %610 = vmatprep.subr.bf16.mxu0 0
    %611 = vmatpush1.bf16.xpose.msra.mxu0 0
    %612 = vmatprep.subr.bf16.mxu0 0
    %613 = vmatpush1.bf16.xpose.msra.mxu0 0
    %614 = vmatprep.subr.bf16.mxu0 0
    %615 = vmatpush1.bf16.xpose.msra.mxu0 0
    %616 = vmatprep.subr.bf16.mxu0 0
    %617 = vmatpush1.bf16.xpose.msra.mxu0 0
    %618 = vmatprep.subr.bf16.mxu0 0
    %619 = vmatpush1.bf16.xpose.msra.mxu0 0
    %620 = vmatprep.subr.bf16.mxu0 0
    %621 = vmatpush1.bf16.xpose.msra.mxu0 0
    %622 = vmatprep.subr.bf16.mxu0 0
    %623 = vmatpush1.bf16.xpose.msra.mxu0 0
    %624 = vmatprep.subr.bf16.mxu0 0
    %625 = vmatpush1.bf16.xpose.msra.mxu0 0
    %626 = vmatprep.subr.bf16.mxu0 0
    %627 = vmatpush1.bf16.xpose.msra.mxu0 0
    %628 = vmatprep.subr.bf16.mxu0 0
    %629 = vmatpush1.bf16.xpose.msra.mxu0 0
    %630 = vmatprep.subr.bf16.mxu0 0
    %631 = vmatpush1.bf16.xpose.msra.mxu0 0
    %632 = vmatprep.subr.bf16.mxu0 0
    %633 = vmatpush1.bf16.xpose.msra.mxu0 0
    %634 = vmatprep.subr.bf16.mxu0 0
    %635 = vmatpush1.bf16.xpose.msra.mxu0 0
    %636 = vmatprep.mubr.bf16.mxu0 0
    %637 = vmatmul.mubr.bf16.gmra.mrb[0].mxu0 %v599
    %v638 = vpop.f32.mrb[0].mxu0
    %v639 = vadd.f32 %v473, %v638
    %v640 = vpop.f32.mrb[0].mxu0
    %v641 = vpop.f32.mrb[0].mxu0
    %v642 = vadd.f32 %v473, %v641
    %v643 = vpop.f32.mrb[0].mxu0
    %644 = vdwg.mxu0
    %v645 = vsel %vm266, %v639, -inf
    %646 = vmax.xlane.f32.xlu0 %v645
    %v647 = vpop.xlane.xlu0 %646
    %v648 = vsel %vm266, %v642, -inf
    %649 = vmax.xlane.f32.xlu0 %v648
    %v650 = vpop.xlane.xlu0 %649
    %v651 = vsub.f32 %v639, %v647
    %v652 = vsub.f32 %v642, %v650
    %v653 = vmul.f32 %v651, 1.442695
    %v654 = vpow.pop %v653
    %v655 = vmul.f32 %v652, 1.442695
    %v656 = vpow.pop %v655
    %v657 = vsel %vm266, %v654, 0.0
    %658 = vadd.xlane.f32.xlu0 %v657
    %v659 = vpop.xlane.xlu0 %658
    %v660 = vsel %vm266, %v656, 0.0
    %661 = vadd.xlane.f32.xlu0 %v660
    %v662 = vpop.xlane.xlu0 %661
    %v663 = vrcp.pop %v659
    %v664 = vrcp.pop %v662
    %v665 = vmul.f32 %v654, %v663
    %v666 = vmul.f32 %v656, %v664
    %v667 = vpack.c.bf16 %v666, %v665
    %669 = vrot.lane.b32.xlu0 %v208, 96
    %v670 = vpop.permute.xlu0 %669
    %v673 = vsel %vm266, %v667, 0
    %675 = vmatprep.subr.bf16.mxu0 0
    %676 = vmatpush1.bf16.msra.mxu0 %v670
    %677 = vmatprep.subr.bf16.mxu0 0
    %678 = vmatpush1.bf16.msra.mxu0 0
    %679 = vmatprep.subr.bf16.mxu0 0
    %680 = vmatpush1.bf16.msra.mxu0 0
    %681 = vmatprep.subr.bf16.mxu0 0
    %682 = vmatpush1.bf16.msra.mxu0 0
    %683 = vmatprep.subr.bf16.mxu0 0
    %684 = vmatpush1.bf16.msra.mxu0 0
    %685 = vmatprep.subr.bf16.mxu0 0
    %686 = vmatpush1.bf16.msra.mxu0 0
    %687 = vmatprep.subr.bf16.mxu0 0
    %688 = vmatpush1.bf16.msra.mxu0 0
    %689 = vmatprep.subr.bf16.mxu0 0
    %690 = vmatpush1.bf16.msra.mxu0 0
    %691 = vmatprep.subr.bf16.mxu0 0
    %692 = vmatpush1.bf16.msra.mxu0 0
    %693 = vmatprep.subr.bf16.mxu0 0
    %694 = vmatpush1.bf16.msra.mxu0 0
    %695 = vmatprep.subr.bf16.mxu0 0
    %696 = vmatpush1.bf16.msra.mxu0 0
    %697 = vmatprep.subr.bf16.mxu0 0
    %698 = vmatpush1.bf16.msra.mxu0 0
    %699 = vmatprep.subr.bf16.mxu0 0
    %700 = vmatpush1.bf16.msra.mxu0 0
    %701 = vmatprep.subr.bf16.mxu0 0
    %702 = vmatpush1.bf16.msra.mxu0 0
    %703 = vmatprep.subr.bf16.mxu0 0
    %704 = vmatpush1.bf16.msra.mxu0 0
    %705 = vmatprep.subr.bf16.mxu0 0
    %706 = vmatpush1.bf16.msra.mxu0 0
    %707 = vmatprep.mubr.bf16.mxu0 0
    %708 = vmatmul.mubr.bf16.gmra.mrb[0].mxu0 %v673
    %v709 = vpop.f32.mrb[0].mxu0
    %v710 = vadd.f32 0.0, %v709
    %v711 = vpop.f32.mrb[0].mxu0
    %v712 = vpop.f32.mrb[0].mxu0
    %v713 = vadd.f32 0.0, %v712
    %v714 = vpop.f32.mrb[0].mxu0
    %715 = vdwg.mxu0
    %718 = vrot.lane.b32.xlu0 %v710, 32
    %v719 = vpop.permute.xlu0 %718
    %720 = vrot.lane.b32.xlu0 %v713, 32
    %v721 = vpop.permute.xlu0 %720
    %724 = vst.msk [vmem:[#allocation2 + $0x10] sm:$0xff] %vm466, %v719
    %725 = vst.msk [vmem:[#allocation2 + $0x18] sm:$0xff] %vm466, %v721
    %v726 = vld [vmem:[#allocation2] sm:$0xff]
    %v727 = vld [vmem:[#allocation2 + $0x8] sm:$0xff]
    %v728 = vld [vmem:[#allocation2 + $0x10] sm:$0xff]
    %v729 = vld [vmem:[#allocation2 + $0x18] sm:$0xff]
    %v730 = vpack.c.bf16 %v727, %v726
    %v731 = vpack.c.bf16 %v729, %v728
    %v740 = vunpack.c.l.b16 %v54
    %v741 = vunpack.c.l.b16 %v55
    %v742 = vunpack.c.l.b16 %v56
    %v743 = vunpack.c.l.b16 %v57
    %v744 = vunpack.c.l.b16 %v58
    %v745 = vunpack.c.l.b16 %v59
    %v746 = vunpack.c.l.b16 %v60
    %v747 = vunpack.c.l.b16 %v61
    %v748 = vpack.c.b16 %v741, %v740
    %v749 = vpack.c.b16 %v743, %v742
    %v750 = vpack.c.b16 %v745, %v744
    %v751 = vpack.c.b16 %v747, %v746
    %757 = vrot.lane.b32.xlu0 %v202, 64
    %v758 = vpop.permute.xlu0 %757
    %v761 = vsel %vm129, %v730, 0
    %v764 = vsel %vm129, %v731, 0
    %766 = vmatprep.subr.bf16.mxu0 0
    %767 = vmatpush1.bf16.msra.mxu0 %v748
    %768 = vmatprep.subr.bf16.mxu0 0
    %769 = vmatpush1.bf16.msra.mxu0 %v749
    %770 = vmatprep.subr.bf16.mxu0 0
    %771 = vmatpush1.bf16.msra.mxu0 %v750
    %772 = vmatprep.subr.bf16.mxu0 0
    %773 = vmatpush1.bf16.msra.mxu0 %v751
    %774 = vmatprep.subr.bf16.mxu0 0
    %775 = vmatpush1.bf16.msra.mxu0 0
    %776 = vmatprep.subr.bf16.mxu0 0
    %777 = vmatpush1.bf16.msra.mxu0 0
    %778 = vmatprep.subr.bf16.mxu0 0
    %779 = vmatpush1.bf16.msra.mxu0 0
    %780 = vmatprep.subr.bf16.mxu0 0
    %781 = vmatpush1.bf16.msra.mxu0 0
    %782 = vmatprep.subr.bf16.mxu0 0
    %783 = vmatpush1.bf16.msra.mxu0 0
    %784 = vmatprep.subr.bf16.mxu0 0
    %785 = vmatpush1.bf16.msra.mxu0 0
    %786 = vmatprep.subr.bf16.mxu0 0
    %787 = vmatpush1.bf16.msra.mxu0 0
    %788 = vmatprep.subr.bf16.mxu0 0
    %789 = vmatpush1.bf16.msra.mxu0 0
    %790 = vmatprep.subr.bf16.mxu0 0
    %791 = vmatpush1.bf16.msra.mxu0 0
    %792 = vmatprep.subr.bf16.mxu0 0
    %793 = vmatpush1.bf16.msra.mxu0 0
    %794 = vmatprep.subr.bf16.mxu0 0
    %795 = vmatpush1.bf16.msra.mxu0 0
    %796 = vmatprep.subr.bf16.mxu0 0
    %797 = vmatpush1.bf16.msra.mxu0 0
    %798 = vmatprep.mubr.bf16.mxu0 0
    %799 = vmatmul.mubr.bf16.gmra.mrb[0].mxu0 %v761
    %v800 = vpop.f32.mrb[0].mxu0
    %v801 = vadd.f32 %v758, %v800
    %v802 = vpop.f32.mrb[0].mxu0
    %v803 = vpop.f32.mrb[0].mxu0
    %v804 = vadd.f32 %v758, %v803
    %v805 = vpop.f32.mrb[0].mxu0
    %806 = vmatprep.mubr.bf16.mxu0 0
    %807 = vmatmul.mubr.bf16.gmra.mrb[0].mxu0 %v764
    %v808 = vpop.f32.mrb[0].mxu0
    %v809 = vadd.f32 %v758, %v808
    %v810 = vpop.f32.mrb[0].mxu0
    %v811 = vpop.f32.mrb[0].mxu0
    %v812 = vadd.f32 %v758, %v811
    %v813 = vpop.f32.mrb[0].mxu0
    %814 = vdwg.mxu0
    %v815 = vadd.f32 %v31, %v801
    %v816 = vadd.f32 %v32, %v804
    %v817 = vadd.f32 %v33, %v809
    %v818 = vadd.f32 %v34, %v812
    %v819 = vsel %vm129, %v815, 0.0
    %820 = vadd.xlane.f32.xlu0 %v819
    %v821 = vpop.xlane.xlu0 %820
    %v822 = vsel %vm129, %v816, 0.0
    %823 = vadd.xlane.f32.xlu0 %v822
    %v824 = vpop.xlane.xlu0 %823
    %v825 = vsel %vm129, %v817, 0.0
    %826 = vadd.xlane.f32.xlu0 %v825
    %v827 = vpop.xlane.xlu0 %826
    %v828 = vsel %vm129, %v818, 0.0
    %829 = vadd.xlane.f32.xlu0 %v828
    %v830 = vpop.xlane.xlu0 %829
    %v831 = vrcp.pop 64.0
    %v832 = vmul.f32 %v821, %v831
    %v833 = vmul.f32 %v824, %v831
    %v834 = vmul.f32 %v827, %v831
    %v835 = vmul.f32 %v830, %v831
    %v836 = vsub.f32 %v815, %v832
    %v837 = vsub.f32 %v816, %v833
    %v838 = vsub.f32 %v817, %v834
    %v839 = vsub.f32 %v818, %v835
    %v840 = vmul.f32 %v836, %v836
    %v841 = vmul.f32 %v837, %v837
    %v842 = vmul.f32 %v838, %v838
    %v843 = vmul.f32 %v839, %v839
    %v844 = vsel %vm129, %v840, 0.0
    %845 = vadd.xlane.f32.xlu0 %v844
    %v846 = vpop.xlane.xlu0 %845
    %v847 = vsel %vm129, %v841, 0.0
    %848 = vadd.xlane.f32.xlu0 %v847
    %v849 = vpop.xlane.xlu0 %848
    %v850 = vsel %vm129, %v842, 0.0
    %851 = vadd.xlane.f32.xlu0 %v850
    %v852 = vpop.xlane.xlu0 %851
    %v853 = vsel %vm129, %v843, 0.0
    %854 = vadd.xlane.f32.xlu0 %v853
    %v855 = vpop.xlane.xlu0 %854
    %v856 = vmul.f32 %v846, %v831
    %v857 = vmul.f32 %v849, %v831
    %v858 = vmul.f32 %v852, %v831
    %v859 = vmul.f32 %v855, %v831
    %v860 = vadd.f32 %v856, 1e-05
    %v861 = vadd.f32 %v857, 1e-05
    %v862 = vadd.f32 %v858, 1e-05
    %v863 = vadd.f32 %v859, 1e-05
    %v864 = vrsqrt.pop %v860
    %v865 = vrsqrt.pop %v861
    %v866 = vrsqrt.pop %v862
    %v867 = vrsqrt.pop %v863
    %v868 = vmul.f32 %v836, %v864
    %v869 = vmul.f32 %v837, %v865
    %v870 = vmul.f32 %v838, %v866
    %v871 = vmul.f32 %v839, %v867
    %v872 = vlaneseq
    %v873 = vshrl.u32 %v872, 7
    %v874 = vsub.s32 4, %v873
    %v875 = vrot.slane %v86, %v874
    %v876 = vmul.f32 %v868, %v875
    %v877 = vmul.f32 %v869, %v875
    %v878 = vmul.f32 %v870, %v875
    %v879 = vmul.f32 %v871, %v875
    %881 = vrot.lane.b32.xlu0 %v875, 64
    %v882 = vpop.permute.xlu0 %881
    %v884 = vadd.f32 %v876, %v882
    %v885 = vadd.f32 %v877, %v882
    %v886 = vadd.f32 %v878, %v882
    %v887 = vadd.f32 %v879, %v882
    %889 = vset.pattern.permute.xlu0 0
    %890 = vperm.xlu0 %889, %v35
    %v891 = vpop.permute.xlu0 %890
    %894 = vset.pattern.permute.xlu0 0
    %895 = vperm.xlu0 %894, %v36
    %v896 = vpop.permute.xlu0 %895
    %899 = vset.pattern.permute.xlu0 0
    %900 = vperm.xlu0 %899, %v37
    %v901 = vpop.permute.xlu0 %900
    %904 = vset.pattern.permute.xlu0 0
    %905 = vperm.xlu0 %904, %v38
    %v906 = vpop.permute.xlu0 %905
    %v908 = vmul.f32 %v884, %v891
    %v909 = vmul.f32 %v885, %v896
    %v910 = vmul.f32 %v886, %v901
    %v911 = vmul.f32 %v887, %v906
    %v912 = vpack.c.bf16 %v909, %v908
    %v913 = vpack.c.bf16 %v911, %v910
    %v914 = vlaneseq
    %v915 = vshrl.u32 %v914, 7
    %v916 = vsub.s32 2, %v915
    %v917 = vrot.slane %v86, %v916
    %v926 = vunpack.c.l.b16 %v62
    %v927 = vunpack.c.l.b16 %v63
    %v928 = vunpack.c.l.b16 %v64
    %v929 = vunpack.c.l.b16 %v65
    %v930 = vunpack.c.l.b16 %v66
    %v931 = vunpack.c.l.b16 %v67
    %v932 = vunpack.c.l.b16 %v68
    %v933 = vunpack.c.l.b16 %v69
    %v934 = vpack.c.b16 %v927, %v926
    %v935 = vpack.c.b16 %v929, %v928
    %v936 = vpack.c.b16 %v931, %v930
    %v937 = vpack.c.b16 %v933, %v932
    %v943 = vsel %vm129, %v912, 0
    %v946 = vsel %vm129, %v913, 0
    %948 = vmatprep.subr.bf16.mxu0 0
    %949 = vmatpush1.bf16.msra.mxu0 %v934
    %950 = vmatprep.subr.bf16.mxu0 0
    %951 = vmatpush1.bf16.msra.mxu0 %v935
    %952 = vmatprep.subr.bf16.mxu0 0
    %953 = vmatpush1.bf16.msra.mxu0 %v936
    %954 = vmatprep.subr.bf16.mxu0 0
    %955 = vmatpush1.bf16.msra.mxu0 %v937
    %956 = vmatprep.subr.bf16.mxu0 0
    %957 = vmatpush1.bf16.msra.mxu0 0
    %958 = vmatprep.subr.bf16.mxu0 0
    %959 = vmatpush1.bf16.msra.mxu0 0
    %960 = vmatprep.subr.bf16.mxu0 0
    %961 = vmatpush1.bf16.msra.mxu0 0
    %962 = vmatprep.subr.bf16.mxu0 0
    %963 = vmatpush1.bf16.msra.mxu0 0
    %964 = vmatprep.subr.bf16.mxu0 0
    %965 = vmatpush1.bf16.msra.mxu0 0
    %966 = vmatprep.subr.bf16.mxu0 0
    %967 = vmatpush1.bf16.msra.mxu0 0
    %968 = vmatprep.subr.bf16.mxu0 0
    %969 = vmatpush1.bf16.msra.mxu0 0
    %970 = vmatprep.subr.bf16.mxu0 0
    %971 = vmatpush1.bf16.msra.mxu0 0
    %972 = vmatprep.subr.bf16.mxu0 0
    %973 = vmatpush1.bf16.msra.mxu0 0
    %974 = vmatprep.subr.bf16.mxu0 0
    %975 = vmatpush1.bf16.msra.mxu0 0
    %976 = vmatprep.subr.bf16.mxu0 0
    %977 = vmatpush1.bf16.msra.mxu0 0
    %978 = vmatprep.subr.bf16.mxu0 0
    %979 = vmatpush1.bf16.msra.mxu0 0
    %980 = vmatprep.mubr.bf16.mxu0 0
    %981 = vmatmul.mubr.bf16.gmra.mrb[0].mxu0 %v943
    %v982 = vpop.f32.mrb[0].mxu0
    %v983 = vadd.f32 %v917, %v982
    %v984 = vpop.f32.mrb[0].mxu0
    %v985 = vpop.f32.mrb[0].mxu0
    %v986 = vadd.f32 %v917, %v985
    %v987 = vpop.f32.mrb[0].mxu0
    %988 = vmatprep.mubr.bf16.mxu0 0
    %989 = vmatmul.mubr.bf16.gmra.mrb[0].mxu0 %v946
    %v990 = vpop.f32.mrb[0].mxu0
    %v991 = vadd.f32 %v917, %v990
    %v992 = vpop.f32.mrb[0].mxu0
    %v993 = vpop.f32.mrb[0].mxu0
    %v994 = vadd.f32 %v917, %v993
    %v995 = vpop.f32.mrb[0].mxu0
    %996 = vdwg.mxu0
    %v997 = vmax.f32 %v983, 0.0
    %v998 = vmax.f32 %v986, 0.0
    %v999 = vmax.f32 %v991, 0.0
    %v1000 = vmax.f32 %v994, 0.0
    %v1001 = vpack.c.bf16 %v998, %v997
    %v1002 = vpack.c.bf16 %v1000, %v999
    %v1003 = vlaneseq
    %v1004 = vshrl.u32 %v1003, 7
    %v1005 = vsub.s32 3, %v1004
    %v1006 = vrot.slane %v86, %v1005
    %v1023 = vunpack.c.l.b16 %v70
    %v1024 = vunpack.c.l.b16 %v71
    %v1025 = vunpack.c.l.b16 %v72
    %v1026 = vunpack.c.l.b16 %v73
    %v1027 = vunpack.c.l.b16 %v74
    %v1028 = vunpack.c.l.b16 %v75
    %v1029 = vunpack.c.l.b16 %v76
    %v1030 = vunpack.c.l.b16 %v77
    %v1031 = vunpack.c.l.b16 %v78
    %v1032 = vunpack.c.l.b16 %v79
    %v1033 = vunpack.c.l.b16 %v80
    %v1034 = vunpack.c.l.b16 %v81
    %v1035 = vunpack.c.l.b16 %v82
    %v1036 = vunpack.c.l.b16 %v83
    %v1037 = vunpack.c.l.b16 %v84
    %v1038 = vunpack.c.l.b16 %v85
    %v1039 = vpack.c.b16 %v1024, %v1023
    %v1040 = vpack.c.b16 %v1026, %v1025
    %v1041 = vpack.c.b16 %v1028, %v1027
    %v1042 = vpack.c.b16 %v1030, %v1029
    %v1043 = vpack.c.b16 %v1032, %v1031
    %v1044 = vpack.c.b16 %v1034, %v1033
    %v1045 = vpack.c.b16 %v1036, %v1035
    %v1046 = vpack.c.b16 %v1038, %v1037
    %1055 = vmatprep.subr.bf16.mxu0 0
    %1056 = vmatpush1.bf16.msra.mxu0 %v1039
    %1057 = vmatprep.subr.bf16.mxu0 0
    %1058 = vmatpush1.bf16.msra.mxu0 %v1040
    %1059 = vmatprep.subr.bf16.mxu0 0
    %1060 = vmatpush1.bf16.msra.mxu0 %v1041
    %1061 = vmatprep.subr.bf16.mxu0 0
    %1062 = vmatpush1.bf16.msra.mxu0 %v1042
    %1063 = vmatprep.subr.bf16.mxu0 0
    %1064 = vmatpush1.bf16.msra.mxu0 %v1043
    %1065 = vmatprep.subr.bf16.mxu0 0
    %1066 = vmatpush1.bf16.msra.mxu0 %v1044
    %1067 = vmatprep.subr.bf16.mxu0 0
    %1068 = vmatpush1.bf16.msra.mxu0 %v1045
    %1069 = vmatprep.subr.bf16.mxu0 0
    %1070 = vmatpush1.bf16.msra.mxu0 %v1046
    %1071 = vmatprep.subr.bf16.mxu0 0
    %1072 = vmatpush1.bf16.msra.mxu0 0
    %1073 = vmatprep.subr.bf16.mxu0 0
    %1074 = vmatpush1.bf16.msra.mxu0 0
    %1075 = vmatprep.subr.bf16.mxu0 0
    %1076 = vmatpush1.bf16.msra.mxu0 0
    %1077 = vmatprep.subr.bf16.mxu0 0
    %1078 = vmatpush1.bf16.msra.mxu0 0
    %1079 = vmatprep.subr.bf16.mxu0 0
    %1080 = vmatpush1.bf16.msra.mxu0 0
    %1081 = vmatprep.subr.bf16.mxu0 0
    %1082 = vmatpush1.bf16.msra.mxu0 0
    %1083 = vmatprep.subr.bf16.mxu0 0
    %1084 = vmatpush1.bf16.msra.mxu0 0
    %1085 = vmatprep.subr.bf16.mxu0 0
    %1086 = vmatpush1.bf16.msra.mxu0 0
    %1087 = vmatprep.mubr.bf16.mxu0 0
    %1088 = vmatmul.mubr.bf16.gmra.mrb[0].mxu0 %v1001
    %v1089 = vpop.f32.mrb[0].mxu0
    %v1090 = vadd.f32 %v1006, %v1089
    %v1091 = vpop.f32.mrb[0].mxu0
    %v1092 = vpop.f32.mrb[0].mxu0
    %v1093 = vadd.f32 %v1006, %v1092
    %v1094 = vpop.f32.mrb[0].mxu0
    %1095 = vmatprep.mubr.bf16.mxu0 0
    %1096 = vmatmul.mubr.bf16.gmra.mrb[0].mxu0 %v1002
    %v1097 = vpop.f32.mrb[0].mxu0
    %v1098 = vadd.f32 %v1006, %v1097
    %v1099 = vpop.f32.mrb[0].mxu0
    %v1100 = vpop.f32.mrb[0].mxu0
    %v1101 = vadd.f32 %v1006, %v1100
    %v1102 = vpop.f32.mrb[0].mxu0
    %1103 = vdwg.mxu0
    %v1104 = vadd.f32 %v908, %v1090
    %v1105 = vadd.f32 %v909, %v1093
    %v1106 = vadd.f32 %v910, %v1098
    %v1107 = vadd.f32 %v911, %v1101
    %v1108 = vsel %vm129, %v1104, 0.0
    %1109 = vadd.xlane.f32.xlu0 %v1108
    %v1110 = vpop.xlane.xlu0 %1109
    %v1111 = vsel %vm129, %v1105, 0.0
    %1112 = vadd.xlane.f32.xlu0 %v1111
    %v1113 = vpop.xlane.xlu0 %1112
    %v1114 = vsel %vm129, %v1106, 0.0
    %1115 = vadd.xlane.f32.xlu0 %v1114
    %v1116 = vpop.xlane.xlu0 %1115
    %v1117 = vsel %vm129, %v1107, 0.0
    %1118 = vadd.xlane.f32.xlu0 %v1117
    %v1119 = vpop.xlane.xlu0 %1118
    %v1120 = vmul.f32 %v1110, %v831
    %v1121 = vmul.f32 %v1113, %v831
    %v1122 = vmul.f32 %v1116, %v831
    %v1123 = vmul.f32 %v1119, %v831
    %v1124 = vsub.f32 %v1104, %v1120
    %v1125 = vsub.f32 %v1105, %v1121
    %v1126 = vsub.f32 %v1106, %v1122
    %v1127 = vsub.f32 %v1107, %v1123
    %v1128 = vmul.f32 %v1124, %v1124
    %v1129 = vmul.f32 %v1125, %v1125
    %v1130 = vmul.f32 %v1126, %v1126
    %v1131 = vmul.f32 %v1127, %v1127
    %v1132 = vsel %vm129, %v1128, 0.0
    %1133 = vadd.xlane.f32.xlu0 %v1132
    %v1134 = vpop.xlane.xlu0 %1133
    %v1135 = vsel %vm129, %v1129, 0.0
    %1136 = vadd.xlane.f32.xlu0 %v1135
    %v1137 = vpop.xlane.xlu0 %1136
    %v1138 = vsel %vm129, %v1130, 0.0
    %1139 = vadd.xlane.f32.xlu0 %v1138
    %v1140 = vpop.xlane.xlu0 %1139
    %v1141 = vsel %vm129, %v1131, 0.0
    %1142 = vadd.xlane.f32.xlu0 %v1141
    %v1143 = vpop.xlane.xlu0 %1142
    %v1144 = vmul.f32 %v1134, %v831
    %v1145 = vmul.f32 %v1137, %v831
    %v1146 = vmul.f32 %v1140, %v831
    %v1147 = vmul.f32 %v1143, %v831
    %v1148 = vadd.f32 %v1144, 1e-05
    %v1149 = vadd.f32 %v1145, 1e-05
    %v1150 = vadd.f32 %v1146, 1e-05
    %v1151 = vadd.f32 %v1147, 1e-05
    %v1152 = vrsqrt.pop %v1148
    %v1153 = vrsqrt.pop %v1149
    %v1154 = vrsqrt.pop %v1150
    %v1155 = vrsqrt.pop %v1151
    %v1156 = vmul.f32 %v1124, %v1152
    %v1157 = vmul.f32 %v1125, %v1153
    %v1158 = vmul.f32 %v1126, %v1154
    %v1159 = vmul.f32 %v1127, %v1155
    %v1160 = vlaneseq
    %v1161 = vshrl.u32 %v1160, 7
    %v1162 = vsub.s32 5, %v1161
    %v1163 = vrot.slane %v86, %v1162
    %v1164 = vmul.f32 %v1156, %v1163
    %v1165 = vmul.f32 %v1157, %v1163
    %v1166 = vmul.f32 %v1158, %v1163
    %v1167 = vmul.f32 %v1159, %v1163
    %1169 = vrot.lane.b32.xlu0 %v1163, 64
    %v1170 = vpop.permute.xlu0 %1169
    %v1172 = vadd.f32 %v1164, %v1170
    %v1173 = vadd.f32 %v1165, %v1170
    %v1174 = vadd.f32 %v1166, %v1170
    %v1175 = vadd.f32 %v1167, %v1170
    %v1176 = vmul.f32 %v1172, %v891
    %v1177 = vmul.f32 %v1173, %v896
    %v1178 = vmul.f32 %v1174, %v901
    %v1179 = vmul.f32 %v1175, %v906
    %s1180 = scalar_lea.vmem %s3, 64
    %v1181 = vld [vmem:[%s1180] sm:$0xff]
    %v1182 = vld [vmem:[%s1180 + $0x8] sm:$0xff]
    %v1183 = vld [vmem:[%s1180 + $0x10] sm:$0xff]
    %v1184 = vld [vmem:[%s1180 + $0x18] sm:$0xff]
    %v1185 = vld [vmem:[%s1180 + $0x20] sm:$0xff]
    %v1186 = vld [vmem:[%s1180 + $0x28] sm:$0xff]
    %v1187 = vld [vmem:[%s1180 + $0x30] sm:$0xff]
    %v1188 = vld [vmem:[%s1180 + $0x38] sm:$0xff]
    %s1189 = scalar_lea.vmem %s4, 32
    %v1190 = vld [vmem:[%s1189] sm:$0xf]
    %v1191 = vld [vmem:[%s1189 + $0x4] sm:$0xf]
    %v1192 = vld [vmem:[%s1189 + $0x8] sm:$0xf]
    %v1193 = vld [vmem:[%s1189 + $0xc] sm:$0xf]
    %v1194 = vld [vmem:[%s1189 + $0x10] sm:$0xf]
    %v1195 = vld [vmem:[%s1189 + $0x14] sm:$0xf]
    %v1196 = vld [vmem:[%s1189 + $0x18] sm:$0xf]
    %v1197 = vld [vmem:[%s1189 + $0x1c] sm:$0xf]
    %s1198 = scalar_lea.vmem %s5, 32
    %v1199 = vld [vmem:[%s1198] sm:$0xf]
    %v1200 = vld [vmem:[%s1198 + $0x4] sm:$0xf]
    %v1201 = vld [vmem:[%s1198 + $0x8] sm:$0xf]
    %v1202 = vld [vmem:[%s1198 + $0xc] sm:$0xf]
    %v1203 = vld [vmem:[%s1198 + $0x10] sm:$0xf]
    %v1204 = vld [vmem:[%s1198 + $0x14] sm:$0xf]
    %v1205 = vld [vmem:[%s1198 + $0x18] sm:$0xf]
    %v1206 = vld [vmem:[%s1198 + $0x1c] sm:$0xf]
    %s1207 = scalar_lea.vmem %s6, 64
    %v1208 = vld [vmem:[%s1207] sm:$0xf]
    %v1209 = vld [vmem:[%s1207 + $0x4] sm:$0xf]
    %v1210 = vld [vmem:[%s1207 + $0x8] sm:$0xf]
    %v1211 = vld [vmem:[%s1207 + $0xc] sm:$0xf]
    %v1212 = vld [vmem:[%s1207 + $0x10] sm:$0xf]
    %v1213 = vld [vmem:[%s1207 + $0x14] sm:$0xf]
    %v1214 = vld [vmem:[%s1207 + $0x18] sm:$0xf]
    %v1215 = vld [vmem:[%s1207 + $0x1c] sm:$0xf]
    %v1216 = vld [vmem:[%s1207 + $0x20] sm:$0xf]
    %v1217 = vld [vmem:[%s1207 + $0x24] sm:$0xf]
    %v1218 = vld [vmem:[%s1207 + $0x28] sm:$0xf]
    %v1219 = vld [vmem:[%s1207 + $0x2c] sm:$0xf]
    %v1220 = vld [vmem:[%s1207 + $0x30] sm:$0xf]
    %v1221 = vld [vmem:[%s1207 + $0x34] sm:$0xf]
    %v1222 = vld [vmem:[%s1207 + $0x38] sm:$0xf]
    %v1223 = vld [vmem:[%s1207 + $0x3c] sm:$0xf]
    %s1224 = scalar_lea.vmem %s7, 8
    %v1225 = vld [vmem:[%s1224] sm:$0xff]
    %v1226 = vpack.c.bf16 %v1177, %v1176
    %v1227 = vpack.c.bf16 %v1179, %v1178
    %v1236 = vunpack.c.l.b16 %v1181
    %v1237 = vunpack.c.h.b16 %v1181
    %v1238 = vunpack.c.l.b16 %v1182
    %v1239 = vunpack.c.h.b16 %v1182
    %v1240 = vunpack.c.l.b16 %v1183
    %v1241 = vunpack.c.h.b16 %v1183
    %v1242 = vunpack.c.l.b16 %v1184
    %v1243 = vunpack.c.h.b16 %v1184
    %v1244 = vunpack.c.l.b16 %v1185
    %v1245 = vunpack.c.h.b16 %v1185
    %v1246 = vunpack.c.l.b16 %v1186
    %v1247 = vunpack.c.h.b16 %v1186
    %v1248 = vunpack.c.l.b16 %v1187
    %v1249 = vunpack.c.h.b16 %v1187
    %v1250 = vunpack.c.l.b16 %v1188
    %v1251 = vunpack.c.h.b16 %v1188
    %v1252 = vpack.c.b16 %v1238, %v1236
    %v1253 = vpack.c.b16 %v1239, %v1237
    %v1254 = vpack.c.b16 %v1242, %v1240
    %v1255 = vpack.c.b16 %v1243, %v1241
    %v1256 = vpack.c.b16 %v1246, %v1244
    %v1257 = vpack.c.b16 %v1247, %v1245
    %v1258 = vpack.c.b16 %v1250, %v1248
    %v1259 = vpack.c.b16 %v1251, %v1249
    %v1269 = vsel %vm129, %v1226, 0
    %v1272 = vsel %vm129, %v1227, 0
    %1274 = vmatprep.subr.bf16.mxu0 %v1253
    %1275 = vmatpush1.bf16.msra.mxu0 %v1252
    %1276 = vmatprep.subr.bf16.mxu0 %v1255
    %1277 = vmatpush1.bf16.msra.mxu0 %v1254
    %1278 = vmatprep.subr.bf16.mxu0 %v1257
    %1279 = vmatpush1.bf16.msra.mxu0 %v1256
    %1280 = vmatprep.subr.bf16.mxu0 %v1259
    %1281 = vmatpush1.bf16.msra.mxu0 %v1258
    %1282 = vmatprep.subr.bf16.mxu0 0
    %1283 = vmatpush1.bf16.msra.mxu0 0
    %1284 = vmatprep.subr.bf16.mxu0 0
    %1285 = vmatpush1.bf16.msra.mxu0 0
    %1286 = vmatprep.subr.bf16.mxu0 0
    %1287 = vmatpush1.bf16.msra.mxu0 0
    %1288 = vmatprep.subr.bf16.mxu0 0
    %1289 = vmatpush1.bf16.msra.mxu0 0
    %1290 = vmatprep.subr.bf16.mxu0 0
    %1291 = vmatpush1.bf16.msra.mxu0 0
    %1292 = vmatprep.subr.bf16.mxu0 0
    %1293 = vmatpush1.bf16.msra.mxu0 0
    %1294 = vmatprep.subr.bf16.mxu0 0
    %1295 = vmatpush1.bf16.msra.mxu0 0
    %1296 = vmatprep.subr.bf16.mxu0 0
    %1297 = vmatpush1.bf16.msra.mxu0 0
    %1298 = vmatprep.subr.bf16.mxu0 0
    %1299 = vmatpush1.bf16.msra.mxu0 0
    %1300 = vmatprep.subr.bf16.mxu0 0
    %1301 = vmatpush1.bf16.msra.mxu0 0
    %1302 = vmatprep.subr.bf16.mxu0 0
    %1303 = vmatpush1.bf16.msra.mxu0 0
    %1304 = vmatprep.subr.bf16.mxu0 0
    %1305 = vmatpush1.bf16.msra.mxu0 0
    %1306 = vmatprep.mubr.bf16.mxu0 0
    %1307 = vmatmul.mubr.bf16.gmra.mrb[0].mxu0 %v1269
    %v1308 = vpop.f32.mrb[0].mxu0
    %v1309 = vadd.f32 0.0, %v1308
    %v1310 = vpop.f32.mrb[0].mxu0
    %v1311 = vadd.f32 0.0, %v1310
    %v1312 = vpop.f32.mrb[0].mxu0
    %v1313 = vadd.f32 0.0, %v1312
    %v1314 = vpop.f32.mrb[0].mxu0
    %v1315 = vadd.f32 0.0, %v1314
    %1316 = vmatprep.mubr.bf16.mxu0 0
    %1317 = vmatmul.mubr.bf16.gmra.mrb[0].mxu0 %v1272
    %v1318 = vpop.f32.mrb[0].mxu0
    %v1319 = vadd.f32 0.0, %v1318
    %v1320 = vpop.f32.mrb[0].mxu0
    %v1321 = vadd.f32 0.0, %v1320
    %v1322 = vpop.f32.mrb[0].mxu0
    %v1323 = vadd.f32 0.0, %v1322
    %v1324 = vpop.f32.mrb[0].mxu0
    %v1325 = vadd.f32 0.0, %v1324
    %1326 = vdwg.mxu0
    %v1327 = vlaneseq
    %v1328 = vshrl.u32 %v1327, 7
    %v1329 = vsub.s32 0, %v1328
    %v1330 = vrot.slane %v1225, %v1329
    %v1331 = vadd.f32 %v1309, %v1330
    %v1332 = vadd.f32 %v1313, %v1330
    %v1333 = vadd.f32 %v1319, %v1330
    %v1334 = vadd.f32 %v1323, %v1330
    %v1335 = vpack.c.bf16 %v1332, %v1331
    %v1336 = vpack.c.bf16 %v1334, %v1333
    %v1337 = vlaneseq
    %v1338 = vshrl.u32 %v1337, 7
    %v1339 = vsub.s32 1, %v1338
    %v1340 = vrot.slane %v1225, %v1339
    %v1341 = vadd.f32 %v1311, %v1340
    %v1342 = vadd.f32 %v1315, %v1340
    %v1343 = vadd.f32 %v1321, %v1340
    %v1344 = vadd.f32 %v1325, %v1340
    %v1345 = vpack.c.bf16 %v1342, %v1341
    %v1346 = vpack.c.bf16 %v1344, %v1343
    %1348 = vrot.lane.b32.xlu0 %v1335, 64
    %v1349 = vpop.permute.xlu0 %1348
    %v1351 = vsel %vm218, %v1335, 0
    %v1354 = vsel %vm218, %v1349, 0
    %1356 = vmatprep.subr.bf16.mxu0 0
    %1357 = vmatpush1.bf16.xpose.msra.mxu0 %v1354
    %1358 = vmatprep.subr.bf16.mxu0 0
    %1359 = vmatpush1.bf16.xpose.msra.mxu0 0
    %1360 = vmatprep.subr.bf16.mxu0 0
    %1361 = vmatpush1.bf16.xpose.msra.mxu0 0
    %1362 = vmatprep.subr.bf16.mxu0 0
    %1363 = vmatpush1.bf16.xpose.msra.mxu0 0
    %1364 = vmatprep.subr.bf16.mxu0 0
    %1365 = vmatpush1.bf16.xpose.msra.mxu0 0
    %1366 = vmatprep.subr.bf16.mxu0 0
    %1367 = vmatpush1.bf16.xpose.msra.mxu0 0
    %1368 = vmatprep.subr.bf16.mxu0 0
    %1369 = vmatpush1.bf16.xpose.msra.mxu0 0
    %1370 = vmatprep.subr.bf16.mxu0 0
    %1371 = vmatpush1.bf16.xpose.msra.mxu0 0
    %1372 = vmatprep.subr.bf16.mxu0 0
    %1373 = vmatpush1.bf16.xpose.msra.mxu0 0
    %1374 = vmatprep.subr.bf16.mxu0 0
    %1375 = vmatpush1.bf16.xpose.msra.mxu0 0
    %1376 = vmatprep.subr.bf16.mxu0 0
    %1377 = vmatpush1.bf16.xpose.msra.mxu0 0
    %1378 = vmatprep.subr.bf16.mxu0 0
    %1379 = vmatpush1.bf16.xpose.msra.mxu0 0
    %1380 = vmatprep.subr.bf16.mxu0 0
    %1381 = vmatpush1.bf16.xpose.msra.mxu0 0
    %1382 = vmatprep.subr.bf16.mxu0 0
    %1383 = vmatpush1.bf16.xpose.msra.mxu0 0
    %1384 = vmatprep.subr.bf16.mxu0 0
    %1385 = vmatpush1.bf16.xpose.msra.mxu0 0
    %1386 = vmatprep.subr.bf16.mxu0 0
    %1387 = vmatpush1.bf16.xpose.msra.mxu0 0
    %1388 = vmatprep.mubr.bf16.mxu0 0
    %1389 = vmatmul.mubr.bf16.gmra.mrb[0].mxu0 %v1351
    %v1390 = vpop.f32.mrb[0].mxu0
    %v1391 = vadd.f32 %v213, %v1390
    %v1392 = vpop.f32.mrb[0].mxu0
    %v1393 = vpop.f32.mrb[0].mxu0
    %v1394 = vadd.f32 %v213, %v1393
    %v1395 = vpop.f32.mrb[0].mxu0
    %1396 = vdwg.mxu0
    %v1397 = vsel %vm266, %v1391, -inf
    %1398 = vmax.xlane.f32.xlu0 %v1397
    %v1399 = vpop.xlane.xlu0 %1398
    %v1400 = vsel %vm266, %v1394, -inf
    %1401 = vmax.xlane.f32.xlu0 %v1400
    %v1402 = vpop.xlane.xlu0 %1401
    %v1403 = vsub.f32 %v1391, %v1399
    %v1404 = vsub.f32 %v1394, %v1402
    %v1405 = vmul.f32 %v1403, 1.442695
    %v1406 = vpow.pop %v1405
    %v1407 = vmul.f32 %v1404, 1.442695
    %v1408 = vpow.pop %v1407
    %v1409 = vsel %vm266, %v1406, 0.0
    %1410 = vadd.xlane.f32.xlu0 %v1409
    %v1411 = vpop.xlane.xlu0 %1410
    %v1412 = vsel %vm266, %v1408, 0.0
    %1413 = vadd.xlane.f32.xlu0 %v1412
    %v1414 = vpop.xlane.xlu0 %1413
    %v1415 = vrcp.pop %v1411
    %v1416 = vrcp.pop %v1414
    %v1417 = vmul.f32 %v1406, %v1415
    %v1418 = vmul.f32 %v1408, %v1416
    %v1419 = vpack.c.bf16 %v1418, %v1417
    %v1421 = vsel %vm266, %v1419, 0
    %1423 = vmatprep.subr.bf16.mxu0 0
    %1424 = vmatpush1.bf16.msra.mxu0 %v1345
    %1425 = vmatprep.subr.bf16.mxu0 0
    %1426 = vmatpush1.bf16.msra.mxu0 0
    %1427 = vmatprep.subr.bf16.mxu0 0
    %1428 = vmatpush1.bf16.msra.mxu0 0
    %1429 = vmatprep.subr.bf16.mxu0 0
    %1430 = vmatpush1.bf16.msra.mxu0 0
    %1431 = vmatprep.subr.bf16.mxu0 0
    %1432 = vmatpush1.bf16.msra.mxu0 0
    %1433 = vmatprep.subr.bf16.mxu0 0
    %1434 = vmatpush1.bf16.msra.mxu0 0
    %1435 = vmatprep.subr.bf16.mxu0 0
    %1436 = vmatpush1.bf16.msra.mxu0 0
    %1437 = vmatprep.subr.bf16.mxu0 0
    %1438 = vmatpush1.bf16.msra.mxu0 0
    %1439 = vmatprep.subr.bf16.mxu0 0
    %1440 = vmatpush1.bf16.msra.mxu0 0
    %1441 = vmatprep.subr.bf16.mxu0 0
    %1442 = vmatpush1.bf16.msra.mxu0 0
    %1443 = vmatprep.subr.bf16.mxu0 0
    %1444 = vmatpush1.bf16.msra.mxu0 0
    %1445 = vmatprep.subr.bf16.mxu0 0
    %1446 = vmatpush1.bf16.msra.mxu0 0
    %1447 = vmatprep.subr.bf16.mxu0 0
    %1448 = vmatpush1.bf16.msra.mxu0 0
    %1449 = vmatprep.subr.bf16.mxu0 0
    %1450 = vmatpush1.bf16.msra.mxu0 0
    %1451 = vmatprep.subr.bf16.mxu0 0
    %1452 = vmatpush1.bf16.msra.mxu0 0
    %1453 = vmatprep.subr.bf16.mxu0 0
    %1454 = vmatpush1.bf16.msra.mxu0 0
    %1455 = vmatprep.mubr.bf16.mxu0 0
    %1456 = vmatmul.mubr.bf16.gmra.mrb[0].mxu0 %v1421
    %v1457 = vpop.f32.mrb[0].mxu0
    %v1458 = vadd.f32 0.0, %v1457
    %v1459 = vpop.f32.mrb[0].mxu0
    %v1460 = vpop.f32.mrb[0].mxu0
    %v1461 = vadd.f32 0.0, %v1460
    %v1462 = vpop.f32.mrb[0].mxu0
    %1463 = vdwg.mxu0
    %1464 = vst.msk [vmem:[#allocation2] sm:$0xff] %vm218, %v1458
    %1465 = vst.msk [vmem:[#allocation2 + $0x8] sm:$0xff] %vm218, %v1461
    %1466 = vrot.lane.b32.xlu0 %v1335, 96
    %v1467 = vpop.permute.xlu0 %1466
    %1468 = vrot.lane.b32.xlu0 %v1335, 32
    %v1469 = vpop.permute.xlu0 %1468
    %v1471 = vsel %vm218, %v1467, 0
    %v1474 = vsel %vm218, %v1469, 0
    %1476 = vmatprep.subr.bf16.mxu0 0
    %1477 = vmatpush1.bf16.xpose.msra.mxu0 %v1474
    %1478 = vmatprep.subr.bf16.mxu0 0
    %1479 = vmatpush1.bf16.xpose.msra.mxu0 0
    %1480 = vmatprep.subr.bf16.mxu0 0
    %1481 = vmatpush1.bf16.xpose.msra.mxu0 0
    %1482 = vmatprep.subr.bf16.mxu0 0
    %1483 = vmatpush1.bf16.xpose.msra.mxu0 0
    %1484 = vmatprep.subr.bf16.mxu0 0
    %1485 = vmatpush1.bf16.xpose.msra.mxu0 0
    %1486 = vmatprep.subr.bf16.mxu0 0
    %1487 = vmatpush1.bf16.xpose.msra.mxu0 0
    %1488 = vmatprep.subr.bf16.mxu0 0
    %1489 = vmatpush1.bf16.xpose.msra.mxu0 0
    %1490 = vmatprep.subr.bf16.mxu0 0
    %1491 = vmatpush1.bf16.xpose.msra.mxu0 0
    %1492 = vmatprep.subr.bf16.mxu0 0
    %1493 = vmatpush1.bf16.xpose.msra.mxu0 0
    %1494 = vmatprep.subr.bf16.mxu0 0
    %1495 = vmatpush1.bf16.xpose.msra.mxu0 0
    %1496 = vmatprep.subr.bf16.mxu0 0
    %1497 = vmatpush1.bf16.xpose.msra.mxu0 0
    %1498 = vmatprep.subr.bf16.mxu0 0
    %1499 = vmatpush1.bf16.xpose.msra.mxu0 0
    %1500 = vmatprep.subr.bf16.mxu0 0
    %1501 = vmatpush1.bf16.xpose.msra.mxu0 0
    %1502 = vmatprep.subr.bf16.mxu0 0
    %1503 = vmatpush1.bf16.xpose.msra.mxu0 0
    %1504 = vmatprep.subr.bf16.mxu0 0
    %1505 = vmatpush1.bf16.xpose.msra.mxu0 0
    %1506 = vmatprep.subr.bf16.mxu0 0
    %1507 = vmatpush1.bf16.xpose.msra.mxu0 0
    %1508 = vmatprep.mubr.bf16.mxu0 0
    %1509 = vmatmul.mubr.bf16.gmra.mrb[0].mxu0 %v1471
    %v1510 = vpop.f32.mrb[0].mxu0
    %v1511 = vadd.f32 %v213, %v1510
    %v1512 = vpop.f32.mrb[0].mxu0
    %v1513 = vpop.f32.mrb[0].mxu0
    %v1514 = vadd.f32 %v213, %v1513
    %v1515 = vpop.f32.mrb[0].mxu0
    %1516 = vdwg.mxu0
    %v1517 = vsel %vm266, %v1511, -inf
    %1518 = vmax.xlane.f32.xlu0 %v1517
    %v1519 = vpop.xlane.xlu0 %1518
    %v1520 = vsel %vm266, %v1514, -inf
    %1521 = vmax.xlane.f32.xlu0 %v1520
    %v1522 = vpop.xlane.xlu0 %1521
    %v1523 = vsub.f32 %v1511, %v1519
    %v1524 = vsub.f32 %v1514, %v1522
    %v1525 = vmul.f32 %v1523, 1.442695
    %v1526 = vpow.pop %v1525
    %v1527 = vmul.f32 %v1524, 1.442695
    %v1528 = vpow.pop %v1527
    %v1529 = vsel %vm266, %v1526, 0.0
    %1530 = vadd.xlane.f32.xlu0 %v1529
    %v1531 = vpop.xlane.xlu0 %1530
    %v1532 = vsel %vm266, %v1528, 0.0
    %1533 = vadd.xlane.f32.xlu0 %v1532
    %v1534 = vpop.xlane.xlu0 %1533
    %v1535 = vrcp.pop %v1531
    %v1536 = vrcp.pop %v1534
    %v1537 = vmul.f32 %v1526, %v1535
    %v1538 = vmul.f32 %v1528, %v1536
    %v1539 = vpack.c.bf16 %v1538, %v1537
    %1541 = vrot.lane.b32.xlu0 %v1345, 96
    %v1542 = vpop.permute.xlu0 %1541
    %v1545 = vsel %vm266, %v1539, 0
    %1547 = vmatprep.subr.bf16.mxu0 0
    %1548 = vmatpush1.bf16.msra.mxu0 %v1542
    %1549 = vmatprep.subr.bf16.mxu0 0
    %1550 = vmatpush1.bf16.msra.mxu0 0
    %1551 = vmatprep.subr.bf16.mxu0 0
    %1552 = vmatpush1.bf16.msra.mxu0 0
    %1553 = vmatprep.subr.bf16.mxu0 0
    %1554 = vmatpush1.bf16.msra.mxu0 0
    %1555 = vmatprep.subr.bf16.mxu0 0
    %1556 = vmatpush1.bf16.msra.mxu0 0
    %1557 = vmatprep.subr.bf16.mxu0 0
    %1558 = vmatpush1.bf16.msra.mxu0 0
    %1559 = vmatprep.subr.bf16.mxu0 0
    %1560 = vmatpush1.bf16.msra.mxu0 0
    %1561 = vmatprep.subr.bf16.mxu0 0
    %1562 = vmatpush1.bf16.msra.mxu0 0
    %1563 = vmatprep.subr.bf16.mxu0 0
    %1564 = vmatpush1.bf16.msra.mxu0 0
    %1565 = vmatprep.subr.bf16.mxu0 0
    %1566 = vmatpush1.bf16.msra.mxu0 0
    %1567 = vmatprep.subr.bf16.mxu0 0
    %1568 = vmatpush1.bf16.msra.mxu0 0
    %1569 = vmatprep.subr.bf16.mxu0 0
    %1570 = vmatpush1.bf16.msra.mxu0 0
    %1571 = vmatprep.subr.bf16.mxu0 0
    %1572 = vmatpush1.bf16.msra.mxu0 0
    %1573 = vmatprep.subr.bf16.mxu0 0
    %1574 = vmatpush1.bf16.msra.mxu0 0
    %1575 = vmatprep.subr.bf16.mxu0 0
    %1576 = vmatpush1.bf16.msra.mxu0 0
    %1577 = vmatprep.subr.bf16.mxu0 0
    %1578 = vmatpush1.bf16.msra.mxu0 0
    %1579 = vmatprep.mubr.bf16.mxu0 0
    %1580 = vmatmul.mubr.bf16.gmra.mrb[0].mxu0 %v1545
    %v1581 = vpop.f32.mrb[0].mxu0
    %v1582 = vadd.f32 0.0, %v1581
    %v1583 = vpop.f32.mrb[0].mxu0
    %v1584 = vpop.f32.mrb[0].mxu0
    %v1585 = vadd.f32 0.0, %v1584
    %v1586 = vpop.f32.mrb[0].mxu0
    %1587 = vdwg.mxu0
    %1590 = vrot.lane.b32.xlu0 %v1582, 32
    %v1591 = vpop.permute.xlu0 %1590
    %1592 = vrot.lane.b32.xlu0 %v1585, 32
    %v1593 = vpop.permute.xlu0 %1592
    %1596 = vst.msk [vmem:[#allocation2] sm:$0xff] %vm466, %v1591
    %1597 = vst.msk [vmem:[#allocation2 + $0x8] sm:$0xff] %vm466, %v1593
    %1599 = vrot.lane.b32.xlu0 %v1336, 64
    %v1600 = vpop.permute.xlu0 %1599
    %v1602 = vsel %vm218, %v1336, 0
    %v1605 = vsel %vm218, %v1600, 0
    %1607 = vmatprep.subr.bf16.mxu0 0
    %1608 = vmatpush1.bf16.xpose.msra.mxu0 %v1605
    %1609 = vmatprep.subr.bf16.mxu0 0
    %1610 = vmatpush1.bf16.xpose.msra.mxu0 0
    %1611 = vmatprep.subr.bf16.mxu0 0
    %1612 = vmatpush1.bf16.xpose.msra.mxu0 0
    %1613 = vmatprep.subr.bf16.mxu0 0
    %1614 = vmatpush1.bf16.xpose.msra.mxu0 0
    %1615 = vmatprep.subr.bf16.mxu0 0
    %1616 = vmatpush1.bf16.xpose.msra.mxu0 0
    %1617 = vmatprep.subr.bf16.mxu0 0
    %1618 = vmatpush1.bf16.xpose.msra.mxu0 0
    %1619 = vmatprep.subr.bf16.mxu0 0
    %1620 = vmatpush1.bf16.xpose.msra.mxu0 0
    %1621 = vmatprep.subr.bf16.mxu0 0
    %1622 = vmatpush1.bf16.xpose.msra.mxu0 0
    %1623 = vmatprep.subr.bf16.mxu0 0
    %1624 = vmatpush1.bf16.xpose.msra.mxu0 0
    %1625 = vmatprep.subr.bf16.mxu0 0
    %1626 = vmatpush1.bf16.xpose.msra.mxu0 0
    %1627 = vmatprep.subr.bf16.mxu0 0
    %1628 = vmatpush1.bf16.xpose.msra.mxu0 0
    %1629 = vmatprep.subr.bf16.mxu0 0
    %1630 = vmatpush1.bf16.xpose.msra.mxu0 0
    %1631 = vmatprep.subr.bf16.mxu0 0
    %1632 = vmatpush1.bf16.xpose.msra.mxu0 0
    %1633 = vmatprep.subr.bf16.mxu0 0
    %1634 = vmatpush1.bf16.xpose.msra.mxu0 0
    %1635 = vmatprep.subr.bf16.mxu0 0
    %1636 = vmatpush1.bf16.xpose.msra.mxu0 0
    %1637 = vmatprep.subr.bf16.mxu0 0
    %1638 = vmatpush1.bf16.xpose.msra.mxu0 0
    %1639 = vmatprep.mubr.bf16.mxu0 0
    %1640 = vmatmul.mubr.bf16.gmra.mrb[0].mxu0 %v1602
    %v1641 = vpop.f32.mrb[0].mxu0
    %v1642 = vadd.f32 %v473, %v1641
    %v1643 = vpop.f32.mrb[0].mxu0
    %v1644 = vpop.f32.mrb[0].mxu0
    %v1645 = vadd.f32 %v473, %v1644
    %v1646 = vpop.f32.mrb[0].mxu0
    %1647 = vdwg.mxu0
    %v1648 = vsel %vm266, %v1642, -inf
    %1649 = vmax.xlane.f32.xlu0 %v1648
    %v1650 = vpop.xlane.xlu0 %1649
    %v1651 = vsel %vm266, %v1645, -inf
    %1652 = vmax.xlane.f32.xlu0 %v1651
    %v1653 = vpop.xlane.xlu0 %1652
    %v1654 = vsub.f32 %v1642, %v1650
    %v1655 = vsub.f32 %v1645, %v1653
    %v1656 = vmul.f32 %v1654, 1.442695
    %v1657 = vpow.pop %v1656
    %v1658 = vmul.f32 %v1655, 1.442695
    %v1659 = vpow.pop %v1658
    %v1660 = vsel %vm266, %v1657, 0.0
    %1661 = vadd.xlane.f32.xlu0 %v1660
    %v1662 = vpop.xlane.xlu0 %1661
    %v1663 = vsel %vm266, %v1659, 0.0
    %1664 = vadd.xlane.f32.xlu0 %v1663
    %v1665 = vpop.xlane.xlu0 %1664
    %v1666 = vrcp.pop %v1662
    %v1667 = vrcp.pop %v1665
    %v1668 = vmul.f32 %v1657, %v1666
    %v1669 = vmul.f32 %v1659, %v1667
    %v1670 = vpack.c.bf16 %v1669, %v1668
    %v1672 = vsel %vm266, %v1670, 0
    %1674 = vmatprep.subr.bf16.mxu0 0
    %1675 = vmatpush1.bf16.msra.mxu0 %v1346
    %1676 = vmatprep.subr.bf16.mxu0 0
    %1677 = vmatpush1.bf16.msra.mxu0 0
    %1678 = vmatprep.subr.bf16.mxu0 0
    %1679 = vmatpush1.bf16.msra.mxu0 0
    %1680 = vmatprep.subr.bf16.mxu0 0
    %1681 = vmatpush1.bf16.msra.mxu0 0
    %1682 = vmatprep.subr.bf16.mxu0 0
    %1683 = vmatpush1.bf16.msra.mxu0 0
    %1684 = vmatprep.subr.bf16.mxu0 0
    %1685 = vmatpush1.bf16.msra.mxu0 0
    %1686 = vmatprep.subr.bf16.mxu0 0
    %1687 = vmatpush1.bf16.msra.mxu0 0
    %1688 = vmatprep.subr.bf16.mxu0 0
    %1689 = vmatpush1.bf16.msra.mxu0 0
    %1690 = vmatprep.subr.bf16.mxu0 0
    %1691 = vmatpush1.bf16.msra.mxu0 0
    %1692 = vmatprep.subr.bf16.mxu0 0
    %1693 = vmatpush1.bf16.msra.mxu0 0
    %1694 = vmatprep.subr.bf16.mxu0 0
    %1695 = vmatpush1.bf16.msra.mxu0 0
    %1696 = vmatprep.subr.bf16.mxu0 0
    %1697 = vmatpush1.bf16.msra.mxu0 0
    %1698 = vmatprep.subr.bf16.mxu0 0
    %1699 = vmatpush1.bf16.msra.mxu0 0
    %1700 = vmatprep.subr.bf16.mxu0 0
    %1701 = vmatpush1.bf16.msra.mxu0 0
    %1702 = vmatprep.subr.bf16.mxu0 0
    %1703 = vmatpush1.bf16.msra.mxu0 0
    %1704 = vmatprep.subr.bf16.mxu0 0
    %1705 = vmatpush1.bf16.msra.mxu0 0
    %1706 = vmatprep.mubr.bf16.mxu0 0
    %1707 = vmatmul.mubr.bf16.gmra.mrb[0].mxu0 %v1672
    %v1708 = vpop.f32.mrb[0].mxu0
    %v1709 = vadd.f32 0.0, %v1708
    %v1710 = vpop.f32.mrb[0].mxu0
    %v1711 = vpop.f32.mrb[0].mxu0
    %v1712 = vadd.f32 0.0, %v1711
    %v1713 = vpop.f32.mrb[0].mxu0
    %1714 = vdwg.mxu0
    %1715 = vst.msk [vmem:[#allocation2 + $0x10] sm:$0xff] %vm218, %v1709
    %1716 = vst.msk [vmem:[#allocation2 + $0x18] sm:$0xff] %vm218, %v1712
    %1717 = vrot.lane.b32.xlu0 %v1336, 96
    %v1718 = vpop.permute.xlu0 %1717
    %1719 = vrot.lane.b32.xlu0 %v1336, 32
    %v1720 = vpop.permute.xlu0 %1719
    %v1722 = vsel %vm218, %v1718, 0
    %v1725 = vsel %vm218, %v1720, 0
    %1727 = vmatprep.subr.bf16.mxu0 0
    %1728 = vmatpush1.bf16.xpose.msra.mxu0 %v1725
    %1729 = vmatprep.subr.bf16.mxu0 0
    %1730 = vmatpush1.bf16.xpose.msra.mxu0 0
    %1731 = vmatprep.subr.bf16.mxu0 0
    %1732 = vmatpush1.bf16.xpose.msra.mxu0 0
    %1733 = vmatprep.subr.bf16.mxu0 0
    %1734 = vmatpush1.bf16.xpose.msra.mxu0 0
    %1735 = vmatprep.subr.bf16.mxu0 0
    %1736 = vmatpush1.bf16.xpose.msra.mxu0 0
    %1737 = vmatprep.subr.bf16.mxu0 0
    %1738 = vmatpush1.bf16.xpose.msra.mxu0 0
    %1739 = vmatprep.subr.bf16.mxu0 0
    %1740 = vmatpush1.bf16.xpose.msra.mxu0 0
    %1741 = vmatprep.subr.bf16.mxu0 0
    %1742 = vmatpush1.bf16.xpose.msra.mxu0 0
    %1743 = vmatprep.subr.bf16.mxu0 0
    %1744 = vmatpush1.bf16.xpose.msra.mxu0 0
    %1745 = vmatprep.subr.bf16.mxu0 0
    %1746 = vmatpush1.bf16.xpose.msra.mxu0 0
    %1747 = vmatprep.subr.bf16.mxu0 0
    %1748 = vmatpush1.bf16.xpose.msra.mxu0 0
    %1749 = vmatprep.subr.bf16.mxu0 0
    %1750 = vmatpush1.bf16.xpose.msra.mxu0 0
    %1751 = vmatprep.subr.bf16.mxu0 0
    %1752 = vmatpush1.bf16.xpose.msra.mxu0 0
    %1753 = vmatprep.subr.bf16.mxu0 0
    %1754 = vmatpush1.bf16.xpose.msra.mxu0 0
    %1755 = vmatprep.subr.bf16.mxu0 0
    %1756 = vmatpush1.bf16.xpose.msra.mxu0 0
    %1757 = vmatprep.subr.bf16.mxu0 0
    %1758 = vmatpush1.bf16.xpose.msra.mxu0 0
    %1759 = vmatprep.mubr.bf16.mxu0 0
    %1760 = vmatmul.mubr.bf16.gmra.mrb[0].mxu0 %v1722
    %v1761 = vpop.f32.mrb[0].mxu0
    %v1762 = vadd.f32 %v473, %v1761
    %v1763 = vpop.f32.mrb[0].mxu0
    %v1764 = vpop.f32.mrb[0].mxu0
    %v1765 = vadd.f32 %v473, %v1764
    %v1766 = vpop.f32.mrb[0].mxu0
    %1767 = vdwg.mxu0
    %v1768 = vsel %vm266, %v1762, -inf
    %1769 = vmax.xlane.f32.xlu0 %v1768
    %v1770 = vpop.xlane.xlu0 %1769
    %v1771 = vsel %vm266, %v1765, -inf
    %1772 = vmax.xlane.f32.xlu0 %v1771
    %v1773 = vpop.xlane.xlu0 %1772
    %v1774 = vsub.f32 %v1762, %v1770
    %v1775 = vsub.f32 %v1765, %v1773
    %v1776 = vmul.f32 %v1774, 1.442695
    %v1777 = vpow.pop %v1776
    %v1778 = vmul.f32 %v1775, 1.442695
    %v1779 = vpow.pop %v1778
    %v1780 = vsel %vm266, %v1777, 0.0
    %1781 = vadd.xlane.f32.xlu0 %v1780
    %v1782 = vpop.xlane.xlu0 %1781
    %v1783 = vsel %vm266, %v1779, 0.0
    %1784 = vadd.xlane.f32.xlu0 %v1783
    %v1785 = vpop.xlane.xlu0 %1784
    %v1786 = vrcp.pop %v1782
    %v1787 = vrcp.pop %v1785
    %v1788 = vmul.f32 %v1777, %v1786
    %v1789 = vmul.f32 %v1779, %v1787
    %v1790 = vpack.c.bf16 %v1789, %v1788
    %1792 = vrot.lane.b32.xlu0 %v1346, 96
    %v1793 = vpop.permute.xlu0 %1792
    %v1796 = vsel %vm266, %v1790, 0
    %1798 = vmatprep.subr.bf16.mxu0 0
    %1799 = vmatpush1.bf16.msra.mxu0 %v1793
    %1800 = vmatprep.subr.bf16.mxu0 0
    %1801 = vmatpush1.bf16.msra.mxu0 0
    %1802 = vmatprep.subr.bf16.mxu0 0
    %1803 = vmatpush1.bf16.msra.mxu0 0
    %1804 = vmatprep.subr.bf16.mxu0 0
    %1805 = vmatpush1.bf16.msra.mxu0 0
    %1806 = vmatprep.subr.bf16.mxu0 0
    %1807 = vmatpush1.bf16.msra.mxu0 0
    %1808 = vmatprep.subr.bf16.mxu0 0
    %1809 = vmatpush1.bf16.msra.mxu0 0
    %1810 = vmatprep.subr.bf16.mxu0 0
    %1811 = vmatpush1.bf16.msra.mxu0 0
    %1812 = vmatprep.subr.bf16.mxu0 0
    %1813 = vmatpush1.bf16.msra.mxu0 0
    %1814 = vmatprep.subr.bf16.mxu0 0
    %1815 = vmatpush1.bf16.msra.mxu0 0
    %1816 = vmatprep.subr.bf16.mxu0 0
    %1817 = vmatpush1.bf16.msra.mxu0 0
    %1818 = vmatprep.subr.bf16.mxu0 0
    %1819 = vmatpush1.bf16.msra.mxu0 0
    %1820 = vmatprep.subr.bf16.mxu0 0
    %1821 = vmatpush1.bf16.msra.mxu0 0
    %1822 = vmatprep.subr.bf16.mxu0 0
    %1823 = vmatpush1.bf16.msra.mxu0 0
    %1824 = vmatprep.subr.bf16.mxu0 0
    %1825 = vmatpush1.bf16.msra.mxu0 0
    %1826 = vmatprep.subr.bf16.mxu0 0
    %1827 = vmatpush1.bf16.msra.mxu0 0
    %1828 = vmatprep.subr.bf16.mxu0 0
    %1829 = vmatpush1.bf16.msra.mxu0 0
    %1830 = vmatprep.mubr.bf16.mxu0 0
    %1831 = vmatmul.mubr.bf16.gmra.mrb[0].mxu0 %v1796
    %v1832 = vpop.f32.mrb[0].mxu0
    %v1833 = vadd.f32 0.0, %v1832
    %v1834 = vpop.f32.mrb[0].mxu0
    %v1835 = vpop.f32.mrb[0].mxu0
    %v1836 = vadd.f32 0.0, %v1835
    %v1837 = vpop.f32.mrb[0].mxu0
    %1838 = vdwg.mxu0
    %1841 = vrot.lane.b32.xlu0 %v1833, 32
    %v1842 = vpop.permute.xlu0 %1841
    %1843 = vrot.lane.b32.xlu0 %v1836, 32
    %v1844 = vpop.permute.xlu0 %1843
    %1847 = vst.msk [vmem:[#allocation2 + $0x10] sm:$0xff] %vm466, %v1842
    %1848 = vst.msk [vmem:[#allocation2 + $0x18] sm:$0xff] %vm466, %v1844
    %v1849 = vld [vmem:[#allocation2] sm:$0xff]
    %v1850 = vld [vmem:[#allocation2 + $0x8] sm:$0xff]
    %v1851 = vld [vmem:[#allocation2 + $0x10] sm:$0xff]
    %v1852 = vld [vmem:[#allocation2 + $0x18] sm:$0xff]
    %v1853 = vpack.c.bf16 %v1850, %v1849
    %v1854 = vpack.c.bf16 %v1852, %v1851
    %v1863 = vunpack.c.l.b16 %v1190
    %v1864 = vunpack.c.l.b16 %v1191
    %v1865 = vunpack.c.l.b16 %v1192
    %v1866 = vunpack.c.l.b16 %v1193
    %v1867 = vunpack.c.l.b16 %v1194
    %v1868 = vunpack.c.l.b16 %v1195
    %v1869 = vunpack.c.l.b16 %v1196
    %v1870 = vunpack.c.l.b16 %v1197
    %v1871 = vpack.c.b16 %v1864, %v1863
    %v1872 = vpack.c.b16 %v1866, %v1865
    %v1873 = vpack.c.b16 %v1868, %v1867
    %v1874 = vpack.c.b16 %v1870, %v1869
    %1880 = vrot.lane.b32.xlu0 %v1340, 64
    %v1881 = vpop.permute.xlu0 %1880
    %v1884 = vsel %vm129, %v1853, 0
    %v1887 = vsel %vm129, %v1854, 0
    %1889 = vmatprep.subr.bf16.mxu0 0
    %1890 = vmatpush1.bf16.msra.mxu0 %v1871
    %1891 = vmatprep.subr.bf16.mxu0 0
    %1892 = vmatpush1.bf16.msra.mxu0 %v1872
    %1893 = vmatprep.subr.bf16.mxu0 0
    %1894 = vmatpush1.bf16.msra.mxu0 %v1873
    %1895 = vmatprep.subr.bf16.mxu0 0
    %1896 = vmatpush1.bf16.msra.mxu0 %v1874
    %1897 = vmatprep.subr.bf16.mxu0 0
    %1898 = vmatpush1.bf16.msra.mxu0 0
    %1899 = vmatprep.subr.bf16.mxu0 0
    %1900 = vmatpush1.bf16.msra.mxu0 0
    %1901 = vmatprep.subr.bf16.mxu0 0
    %1902 = vmatpush1.bf16.msra.mxu0 0
    %1903 = vmatprep.subr.bf16.mxu0 0
    %1904 = vmatpush1.bf16.msra.mxu0 0
    %1905 = vmatprep.subr.bf16.mxu0 0
    %1906 = vmatpush1.bf16.msra.mxu0 0
    %1907 = vmatprep.subr.bf16.mxu0 0
    %1908 = vmatpush1.bf16.msra.mxu0 0
    %1909 = vmatprep.subr.bf16.mxu0 0
    %1910 = vmatpush1.bf16.msra.mxu0 0
    %1911 = vmatprep.subr.bf16.mxu0 0
    %1912 = vmatpush1.bf16.msra.mxu0 0
    %1913 = vmatprep.subr.bf16.mxu0 0
    %1914 = vmatpush1.bf16.msra.mxu0 0
    %1915 = vmatprep.subr.bf16.mxu0 0
    %1916 = vmatpush1.bf16.msra.mxu0 0
    %1917 = vmatprep.subr.bf16.mxu0 0
    %1918 = vmatpush1.bf16.msra.mxu0 0
    %1919 = vmatprep.subr.bf16.mxu0 0
    %1920 = vmatpush1.bf16.msra.mxu0 0
    %1921 = vmatprep.mubr.bf16.mxu0 0
    %1922 = vmatmul.mubr.bf16.gmra.mrb[0].mxu0 %v1884
    %v1923 = vpop.f32.mrb[0].mxu0
    %v1924 = vadd.f32 %v1881, %v1923
    %v1925 = vpop.f32.mrb[0].mxu0
    %v1926 = vpop.f32.mrb[0].mxu0
    %v1927 = vadd.f32 %v1881, %v1926
    %v1928 = vpop.f32.mrb[0].mxu0
    %1929 = vmatprep.mubr.bf16.mxu0 0
    %1930 = vmatmul.mubr.bf16.gmra.mrb[0].mxu0 %v1887
    %v1931 = vpop.f32.mrb[0].mxu0
    %v1932 = vadd.f32 %v1881, %v1931
    %v1933 = vpop.f32.mrb[0].mxu0
    %v1934 = vpop.f32.mrb[0].mxu0
    %v1935 = vadd.f32 %v1881, %v1934
    %v1936 = vpop.f32.mrb[0].mxu0
    %1937 = vdwg.mxu0
    %v1938 = vadd.f32 %v1176, %v1924
    %v1939 = vadd.f32 %v1177, %v1927
    %v1940 = vadd.f32 %v1178, %v1932
    %v1941 = vadd.f32 %v1179, %v1935
    %v1942 = vsel %vm129, %v1938, 0.0
    %1943 = vadd.xlane.f32.xlu0 %v1942
    %v1944 = vpop.xlane.xlu0 %1943
    %v1945 = vsel %vm129, %v1939, 0.0
    %1946 = vadd.xlane.f32.xlu0 %v1945
    %v1947 = vpop.xlane.xlu0 %1946
    %v1948 = vsel %vm129, %v1940, 0.0
    %1949 = vadd.xlane.f32.xlu0 %v1948
    %v1950 = vpop.xlane.xlu0 %1949
    %v1951 = vsel %vm129, %v1941, 0.0
    %1952 = vadd.xlane.f32.xlu0 %v1951
    %v1953 = vpop.xlane.xlu0 %1952
    %v1954 = vmul.f32 %v1944, %v831
    %v1955 = vmul.f32 %v1947, %v831
    %v1956 = vmul.f32 %v1950, %v831
    %v1957 = vmul.f32 %v1953, %v831
    %v1958 = vsub.f32 %v1938, %v1954
    %v1959 = vsub.f32 %v1939, %v1955
    %v1960 = vsub.f32 %v1940, %v1956
    %v1961 = vsub.f32 %v1941, %v1957
    %v1962 = vmul.f32 %v1958, %v1958
    %v1963 = vmul.f32 %v1959, %v1959
    %v1964 = vmul.f32 %v1960, %v1960
    %v1965 = vmul.f32 %v1961, %v1961
    %v1966 = vsel %vm129, %v1962, 0.0
    %1967 = vadd.xlane.f32.xlu0 %v1966
    %v1968 = vpop.xlane.xlu0 %1967
    %v1969 = vsel %vm129, %v1963, 0.0
    %1970 = vadd.xlane.f32.xlu0 %v1969
    %v1971 = vpop.xlane.xlu0 %1970
    %v1972 = vsel %vm129, %v1964, 0.0
    %1973 = vadd.xlane.f32.xlu0 %v1972
    %v1974 = vpop.xlane.xlu0 %1973
    %v1975 = vsel %vm129, %v1965, 0.0
    %1976 = vadd.xlane.f32.xlu0 %v1975
    %v1977 = vpop.xlane.xlu0 %1976
    %v1978 = vmul.f32 %v1968, %v831
    %v1979 = vmul.f32 %v1971, %v831
    %v1980 = vmul.f32 %v1974, %v831
    %v1981 = vmul.f32 %v1977, %v831
    %v1982 = vadd.f32 %v1978, 1e-05
    %v1983 = vadd.f32 %v1979, 1e-05
    %v1984 = vadd.f32 %v1980, 1e-05
    %v1985 = vadd.f32 %v1981, 1e-05
    %v1986 = vrsqrt.pop %v1982
    %v1987 = vrsqrt.pop %v1983
    %v1988 = vrsqrt.pop %v1984
    %v1989 = vrsqrt.pop %v1985
    %v1990 = vmul.f32 %v1958, %v1986
    %v1991 = vmul.f32 %v1959, %v1987
    %v1992 = vmul.f32 %v1960, %v1988
    %v1993 = vmul.f32 %v1961, %v1989
    %v1994 = vlaneseq
    %v1995 = vshrl.u32 %v1994, 7
    %v1996 = vsub.s32 4, %v1995
    %v1997 = vrot.slane %v1225, %v1996
    %v1998 = vmul.f32 %v1990, %v1997
    %v1999 = vmul.f32 %v1991, %v1997
    %v2000 = vmul.f32 %v1992, %v1997
    %v2001 = vmul.f32 %v1993, %v1997
    %2003 = vrot.lane.b32.xlu0 %v1997, 64
    %v2004 = vpop.permute.xlu0 %2003
    %v2006 = vadd.f32 %v1998, %v2004
    %v2007 = vadd.f32 %v1999, %v2004
    %v2008 = vadd.f32 %v2000, %v2004
    %v2009 = vadd.f32 %v2001, %v2004
    %v2010 = vmul.f32 %v2006, %v891
    %v2011 = vmul.f32 %v2007, %v896
    %v2012 = vmul.f32 %v2008, %v901
    %v2013 = vmul.f32 %v2009, %v906
    %v2014 = vpack.c.bf16 %v2011, %v2010
    %v2015 = vpack.c.bf16 %v2013, %v2012
    %v2016 = vlaneseq
    %v2017 = vshrl.u32 %v2016, 7
    %v2018 = vsub.s32 2, %v2017
    %v2019 = vrot.slane %v1225, %v2018
    %v2028 = vunpack.c.l.b16 %v1199
    %v2029 = vunpack.c.l.b16 %v1200
    %v2030 = vunpack.c.l.b16 %v1201
    %v2031 = vunpack.c.l.b16 %v1202
    %v2032 = vunpack.c.l.b16 %v1203
    %v2033 = vunpack.c.l.b16 %v1204
    %v2034 = vunpack.c.l.b16 %v1205
    %v2035 = vunpack.c.l.b16 %v1206
    %v2036 = vpack.c.b16 %v2029, %v2028
    %v2037 = vpack.c.b16 %v2031, %v2030
    %v2038 = vpack.c.b16 %v2033, %v2032
    %v2039 = vpack.c.b16 %v2035, %v2034
    %v2045 = vsel %vm129, %v2014, 0
    %v2048 = vsel %vm129, %v2015, 0
    %2050 = vmatprep.subr.bf16.mxu0 0
    %2051 = vmatpush1.bf16.msra.mxu0 %v2036
    %2052 = vmatprep.subr.bf16.mxu0 0
    %2053 = vmatpush1.bf16.msra.mxu0 %v2037
    %2054 = vmatprep.subr.bf16.mxu0 0
    %2055 = vmatpush1.bf16.msra.mxu0 %v2038
    %2056 = vmatprep.subr.bf16.mxu0 0
    %2057 = vmatpush1.bf16.msra.mxu0 %v2039
    %2058 = vmatprep.subr.bf16.mxu0 0
    %2059 = vmatpush1.bf16.msra.mxu0 0
    %2060 = vmatprep.subr.bf16.mxu0 0
    %2061 = vmatpush1.bf16.msra.mxu0 0
    %2062 = vmatprep.subr.bf16.mxu0 0
    %2063 = vmatpush1.bf16.msra.mxu0 0
    %2064 = vmatprep.subr.bf16.mxu0 0
    %2065 = vmatpush1.bf16.msra.mxu0 0
    %2066 = vmatprep.subr.bf16.mxu0 0
    %2067 = vmatpush1.bf16.msra.mxu0 0
    %2068 = vmatprep.subr.bf16.mxu0 0
    %2069 = vmatpush1.bf16.msra.mxu0 0
    %2070 = vmatprep.subr.bf16.mxu0 0
    %2071 = vmatpush1.bf16.msra.mxu0 0
    %2072 = vmatprep.subr.bf16.mxu0 0
    %2073 = vmatpush1.bf16.msra.mxu0 0
    %2074 = vmatprep.subr.bf16.mxu0 0
    %2075 = vmatpush1.bf16.msra.mxu0 0
    %2076 = vmatprep.subr.bf16.mxu0 0
    %2077 = vmatpush1.bf16.msra.mxu0 0
    %2078 = vmatprep.subr.bf16.mxu0 0
    %2079 = vmatpush1.bf16.msra.mxu0 0
    %2080 = vmatprep.subr.bf16.mxu0 0
    %2081 = vmatpush1.bf16.msra.mxu0 0
    %2082 = vmatprep.mubr.bf16.mxu0 0
    %2083 = vmatmul.mubr.bf16.gmra.mrb[0].mxu0 %v2045
    %v2084 = vpop.f32.mrb[0].mxu0
    %v2085 = vadd.f32 %v2019, %v2084
    %v2086 = vpop.f32.mrb[0].mxu0
    %v2087 = vpop.f32.mrb[0].mxu0
    %v2088 = vadd.f32 %v2019, %v2087
    %v2089 = vpop.f32.mrb[0].mxu0
    %2090 = vmatprep.mubr.bf16.mxu0 0
    %2091 = vmatmul.mubr.bf16.gmra.mrb[0].mxu0 %v2048
    %v2092 = vpop.f32.mrb[0].mxu0
    %v2093 = vadd.f32 %v2019, %v2092
    %v2094 = vpop.f32.mrb[0].mxu0
    %v2095 = vpop.f32.mrb[0].mxu0
    %v2096 = vadd.f32 %v2019, %v2095
    %v2097 = vpop.f32.mrb[0].mxu0
    %2098 = vdwg.mxu0
    %v2099 = vmax.f32 %v2085, 0.0
    %v2100 = vmax.f32 %v2088, 0.0
    %v2101 = vmax.f32 %v2093, 0.0
    %v2102 = vmax.f32 %v2096, 0.0
    %v2103 = vpack.c.bf16 %v2100, %v2099
    %v2104 = vpack.c.bf16 %v2102, %v2101
    %v2105 = vlaneseq
    %v2106 = vshrl.u32 %v2105, 7
    %v2107 = vsub.s32 3, %v2106
    %v2108 = vrot.slane %v1225, %v2107
    %v2125 = vunpack.c.l.b16 %v1208
    %v2126 = vunpack.c.l.b16 %v1209
    %v2127 = vunpack.c.l.b16 %v1210
    %v2128 = vunpack.c.l.b16 %v1211
    %v2129 = vunpack.c.l.b16 %v1212
    %v2130 = vunpack.c.l.b16 %v1213
    %v2131 = vunpack.c.l.b16 %v1214
    %v2132 = vunpack.c.l.b16 %v1215
    %v2133 = vunpack.c.l.b16 %v1216
    %v2134 = vunpack.c.l.b16 %v1217
    %v2135 = vunpack.c.l.b16 %v1218
    %v2136 = vunpack.c.l.b16 %v1219
    %v2137 = vunpack.c.l.b16 %v1220
    %v2138 = vunpack.c.l.b16 %v1221
    %v2139 = vunpack.c.l.b16 %v1222
    %v2140 = vunpack.c.l.b16 %v1223
    %v2141 = vpack.c.b16 %v2126, %v2125
    %v2142 = vpack.c.b16 %v2128, %v2127
    %v2143 = vpack.c.b16 %v2130, %v2129
    %v2144 = vpack.c.b16 %v2132, %v2131
    %v2145 = vpack.c.b16 %v2134, %v2133
    %v2146 = vpack.c.b16 %v2136, %v2135
    %v2147 = vpack.c.b16 %v2138, %v2137
    %v2148 = vpack.c.b16 %v2140, %v2139
    %2157 = vmatprep.subr.bf16.mxu0 0
    %2158 = vmatpush1.bf16.msra.mxu0 %v2141
    %2159 = vmatprep.subr.bf16.mxu0 0
    %2160 = vmatpush1.bf16.msra.mxu0 %v2142
    %2161 = vmatprep.subr.bf16.mxu0 0
    %2162 = vmatpush1.bf16.msra.mxu0 %v2143
    %2163 = vmatprep.subr.bf16.mxu0 0
    %2164 = vmatpush1.bf16.msra.mxu0 %v2144
    %2165 = vmatprep.subr.bf16.mxu0 0
    %2166 = vmatpush1.bf16.msra.mxu0 %v2145
    %2167 = vmatprep.subr.bf16.mxu0 0
    %2168 = vmatpush1.bf16.msra.mxu0 %v2146
    %2169 = vmatprep.subr.bf16.mxu0 0
    %2170 = vmatpush1.bf16.msra.mxu0 %v2147
    %2171 = vmatprep.subr.bf16.mxu0 0
    %2172 = vmatpush1.bf16.msra.mxu0 %v2148
    %2173 = vmatprep.subr.bf16.mxu0 0
    %2174 = vmatpush1.bf16.msra.mxu0 0
    %2175 = vmatprep.subr.bf16.mxu0 0
    %2176 = vmatpush1.bf16.msra.mxu0 0
    %2177 = vmatprep.subr.bf16.mxu0 0
    %2178 = vmatpush1.bf16.msra.mxu0 0
    %2179 = vmatprep.subr.bf16.mxu0 0
    %2180 = vmatpush1.bf16.msra.mxu0 0
    %2181 = vmatprep.subr.bf16.mxu0 0
    %2182 = vmatpush1.bf16.msra.mxu0 0
    %2183 = vmatprep.subr.bf16.mxu0 0
    %2184 = vmatpush1.bf16.msra.mxu0 0
    %2185 = vmatprep.subr.bf16.mxu0 0
    %2186 = vmatpush1.bf16.msra.mxu0 0
    %2187 = vmatprep.subr.bf16.mxu0 0
    %2188 = vmatpush1.bf16.msra.mxu0 0
    %2189 = vmatprep.mubr.bf16.mxu0 0
    %2190 = vmatmul.mubr.bf16.gmra.mrb[0].mxu0 %v2103
    %v2191 = vpop.f32.mrb[0].mxu0
    %v2192 = vadd.f32 %v2108, %v2191
    %v2193 = vpop.f32.mrb[0].mxu0
    %v2194 = vpop.f32.mrb[0].mxu0
    %v2195 = vadd.f32 %v2108, %v2194
    %v2196 = vpop.f32.mrb[0].mxu0
    %2197 = vmatprep.mubr.bf16.mxu0 0
    %2198 = vmatmul.mubr.bf16.gmra.mrb[0].mxu0 %v2104
    %v2199 = vpop.f32.mrb[0].mxu0
    %v2200 = vadd.f32 %v2108, %v2199
    %v2201 = vpop.f32.mrb[0].mxu0
    %v2202 = vpop.f32.mrb[0].mxu0
    %v2203 = vadd.f32 %v2108, %v2202
    %v2204 = vpop.f32.mrb[0].mxu0
    %2205 = vdwg.mxu0
    %v2206 = vadd.f32 %v2010, %v2192
    %v2207 = vadd.f32 %v2011, %v2195
    %v2208 = vadd.f32 %v2012, %v2200
    %v2209 = vadd.f32 %v2013, %v2203
    %v2210 = vsel %vm129, %v2206, 0.0
    %2211 = vadd.xlane.f32.xlu0 %v2210
    %v2212 = vpop.xlane.xlu0 %2211
    %v2213 = vsel %vm129, %v2207, 0.0
    %2214 = vadd.xlane.f32.xlu0 %v2213
    %v2215 = vpop.xlane.xlu0 %2214
    %v2216 = vsel %vm129, %v2208, 0.0
    %2217 = vadd.xlane.f32.xlu0 %v2216
    %v2218 = vpop.xlane.xlu0 %2217
    %v2219 = vsel %vm129, %v2209, 0.0
    %2220 = vadd.xlane.f32.xlu0 %v2219
    %v2221 = vpop.xlane.xlu0 %2220
    %v2222 = vmul.f32 %v2212, %v831
    %v2223 = vmul.f32 %v2215, %v831
    %v2224 = vmul.f32 %v2218, %v831
    %v2225 = vmul.f32 %v2221, %v831
    %v2226 = vsub.f32 %v2206, %v2222
    %v2227 = vsub.f32 %v2207, %v2223
    %v2228 = vsub.f32 %v2208, %v2224
    %v2229 = vsub.f32 %v2209, %v2225
    %v2230 = vmul.f32 %v2226, %v2226
    %v2231 = vmul.f32 %v2227, %v2227
    %v2232 = vmul.f32 %v2228, %v2228
    %v2233 = vmul.f32 %v2229, %v2229
    %v2234 = vsel %vm129, %v2230, 0.0
    %2235 = vadd.xlane.f32.xlu0 %v2234
    %v2236 = vpop.xlane.xlu0 %2235
    %v2237 = vsel %vm129, %v2231, 0.0
    %2238 = vadd.xlane.f32.xlu0 %v2237
    %v2239 = vpop.xlane.xlu0 %2238
    %v2240 = vsel %vm129, %v2232, 0.0
    %2241 = vadd.xlane.f32.xlu0 %v2240
    %v2242 = vpop.xlane.xlu0 %2241
    %v2243 = vsel %vm129, %v2233, 0.0
    %2244 = vadd.xlane.f32.xlu0 %v2243
    %v2245 = vpop.xlane.xlu0 %2244
    %v2246 = vmul.f32 %v2236, %v831
    %v2247 = vmul.f32 %v2239, %v831
    %v2248 = vmul.f32 %v2242, %v831
    %v2249 = vmul.f32 %v2245, %v831
    %v2250 = vadd.f32 %v2246, 1e-05
    %v2251 = vadd.f32 %v2247, 1e-05
    %v2252 = vadd.f32 %v2248, 1e-05
    %v2253 = vadd.f32 %v2249, 1e-05
    %v2254 = vrsqrt.pop %v2250
    %v2255 = vrsqrt.pop %v2251
    %v2256 = vrsqrt.pop %v2252
    %v2257 = vrsqrt.pop %v2253
    %v2258 = vmul.f32 %v2226, %v2254
    %v2259 = vmul.f32 %v2227, %v2255
    %v2260 = vmul.f32 %v2228, %v2256
    %v2261 = vmul.f32 %v2229, %v2257
    %v2262 = vlaneseq
    %v2263 = vshrl.u32 %v2262, 7
    %v2264 = vsub.s32 5, %v2263
    %v2265 = vrot.slane %v1225, %v2264
    %v2266 = vmul.f32 %v2258, %v2265
    %v2267 = vmul.f32 %v2259, %v2265
    %v2268 = vmul.f32 %v2260, %v2265
    %v2269 = vmul.f32 %v2261, %v2265
    %2271 = vrot.lane.b32.xlu0 %v2265, 64
    %v2272 = vpop.permute.xlu0 %2271
    %v2274 = vadd.f32 %v2266, %v2272
    %v2275 = vadd.f32 %v2267, %v2272
    %v2276 = vadd.f32 %v2268, %v2272
    %v2277 = vadd.f32 %v2269, %v2272
    %v2278 = vmul.f32 %v2274, %v891
    %v2279 = vmul.f32 %v2275, %v896
    %v2280 = vmul.f32 %v2276, %v901
    %v2281 = vmul.f32 %v2277, %v906
    %2282 = vst.msk [vmem:[#allocation3] sm:$0xff] %vm129, %v2278
    %2283 = vst.msk [vmem:[#allocation3 + $0x8] sm:$0xff] %vm129, %v2279
    %2284 = vst.msk [vmem:[#allocation3 + $0x10] sm:$0xff] %vm129, %v2280
    %2285 = vst.msk [vmem:[#allocation3 + $0x18] sm:$0xff] %vm129, %v2281
    // Predicated region
    $region34: #{fastspeech_encoder.1} parent=1 // pred_check
      _
    $region35: #{fastspeech_encoder.1} parent=1 // pred_check_branch
      %2287 = sbr.rel (0) target = $region37
    $region36: #{fastspeech_encoder.1} parent=1 // pred_region
      %s2289 = ssub.s32 512, 512
      %2290 = vsyncadd [#allocation4], %s2289
      %s2291 = sshll.u32 [#allocation3], 4
      %s2292 = int_to_ptr.vmem [resolvable:$true] %s2291
      %2297 = dma.vmem_to_hbm [thread:$0]  %s2292, 512, %s8, [#allocation4], 128, 128, 8
    $region37: #{fastspeech_encoder.1} parent=1 // pred_fallthru
      _
    // Predicated region
    $region38: #{fastspeech_encoder.1} parent=1 // pred_check
      _
    $region39: #{fastspeech_encoder.1} parent=1 // pred_check_branch
      %2299 = sbr.rel (0) target = $region41
    $region40: #{fastspeech_encoder.1} parent=1 // pred_region
      %2300 = dma.done [#allocation4], 512
    $region41: #{fastspeech_encoder.1} parent=1 // pred_fallthru
      _
    %2301 = vsyncpa [#allocation4], 1

</llo_original>
